<compile_context>
chip_gen: v6e
topology: v6e:2x2x1
jax: 0.10.0
libtpu: 0.0.40
codegen_flags: <defaults>
</compile_context>

<pallas_src>
import jax
import jax.numpy as jnp
from jax.experimental import pallas as pl
from jax.experimental.pallas import tpu as pltpu


# ----------------------------------------------------------------------------
# Fused forward kernel.
# ----------------------------------------------------------------------------
def _summarizer_kernel(x_ref, w_in_ref, b_in_ref, whh_ref,
                       dec_in_ref, h0_ref, c0_ref,
                       w_attn_ref, b_attn_ref,
                       w_dec_ref, b_dec_ref,
                       w_gen_ref, b_gen_ref,
                       w_ptr_ref, b_ptr_ref,
                       final_ref, h1_ref, c1_ref):
    B, H = h0_ref.shape
    S = x_ref.shape[0] // B
    H2, H3, H6, G8 = 2 * H, 3 * H, 6 * H, 8 * H

    # ---- (1) hoisted input projection for BOTH directions (bf16 MXU, f32 acc).
    #      Recurrent biases are pre-folded into b_in; gin[t] is a full-lane vreg
    #      holding [fwd gates of t | bwd gates of S-1-t] in [i,i,f,f,o,o,g,g] order.
    gin = jnp.dot(x_ref[...], w_in_ref[...],
                  preferred_element_type=jnp.float32) + b_in_ref[...]
    gin = gin.reshape(S, B, G8)

    whh = whh_ref[...]                                    # (2H, 8H) bf16, block-sparse

    # ---- (2) bidirectional recurrence, fully unrolled; ONE fused recurrent matmul
    #      per step; states live in vregs (no VMEM scratch stores).
    h_fb = jnp.zeros((B, H2), jnp.float32)                # [h_fwd | h_bwd]
    c_fb = jnp.zeros((B, H2), jnp.float32)
    steps = []
    for step in range(S):
        gates = gin[step] + jnp.dot(h_fb.astype(jnp.bfloat16), whh,
                                    preferred_element_type=jnp.float32)
        sig = jax.nn.sigmoid(gates[:, :H6])               # [i_fb | f_fb | o_fb]
        g_t = jnp.tanh(gates[:, H6:])                     # g_fb
        c_fb = sig[:, H2:2 * H2] * c_fb + sig[:, :H2] * g_t
        h_fb = sig[:, 2 * H2:H6] * jnp.tanh(c_fb)
        steps.append(h_fb)

    # Encoder outputs in true time order: enc[t] = [h_fwd(t) | h_bwd(t)].
    enc2d = jnp.concatenate(
        [jnp.concatenate([steps[t][:, :H], steps[S - 1 - t][:, H:]], axis=-1)
         for t in range(S)], axis=0)                      # (S*B, 2H), time-major rows
    enc_all = enc2d.reshape(S, B, H2)                     # (S, B, 2H)

    # ---- (3) hierarchical attention (word + sentence projections fused).
    attn = jnp.tanh(jnp.dot(enc2d.astype(jnp.bfloat16), w_attn_ref[...],
                            preferred_element_type=jnp.float32) + b_attn_ref[...])
    attn = attn.reshape(S, B, H2)
    wa = jax.nn.softmax(attn[:, :, :H], axis=2)           # softmax over features
    sa = jax.nn.softmax(attn[:, :, H:], axis=0)           # softmax over sequence
    combined = jnp.sum(wa * sa, axis=0)                   # (B, H), requires H == S

    # context = bmm(combined.unsqueeze(1), encoder_outputs).squeeze(1) -> (B, 2H)
    context = jnp.zeros((B, H2), jnp.float32)
    for t in range(S):                                    # tiny tail, kept unrolled
        context = context + combined[:, t:t + 1] * enc_all[t]

    # ---- (4) decoder LSTM cell: one fused matmul on cat(dec_in, context, h0).
    dec_cat = jnp.concatenate([dec_in_ref[...], context, h0_ref[...]], axis=-1)
    zg = jnp.dot(dec_cat.astype(jnp.bfloat16), w_dec_ref[...],
                 preferred_element_type=jnp.float32) + b_dec_ref[...]   # cols [i,f,o,g]
    sd = jax.nn.sigmoid(zg[:, :H3])
    gd = jnp.tanh(zg[:, H3:])
    c1 = sd[:, H:2 * H] * c0_ref[...] + sd[:, :H] * gd
    h1 = sd[:, 2 * H:H3] * jnp.tanh(c1)                   # (B, H)

    # ---- (5) generator head (lane-dense N = out) + pointer switch (VPU dot).
    cv = jnp.concatenate([h1, context], axis=-1)          # (B, 3H)
    gen = jnp.dot(cv.astype(jnp.bfloat16), w_gen_ref[...],
                  preferred_element_type=jnp.float32) + b_gen_ref[...]  # (B, out)
    gen_log = jax.nn.log_softmax(gen, axis=-1)
    p_switch = jax.nn.sigmoid(
        jnp.sum(cv * w_ptr_ref[...], axis=-1, keepdims=True) + b_ptr_ref[...])  # (B,1)

    # pointer distribution = softmax(word_attns.view(B, S*H)) in batch-major order
    wa_bm = jnp.concatenate([wa[t] for t in range(S)], axis=-1)          # (B, S*H)
    ptr_dist = jax.nn.softmax(wa_bm, axis=-1)

    # NOTE: mixes probabilities (ptr) with log-probabilities (gen) — faithful to ref.
    final_ref[...] = p_switch * ptr_dist + (1.0 - p_switch) * gen_log
    h1_ref[...] = h1
    c1_ref[...] = c1


# ----------------------------------------------------------------------------
# Wrapper: embedding gather + seq-reverse concat (XLA) + single fused pallas_call.
# ----------------------------------------------------------------------------
def summarizer_forward(params, inputs, decoder_input, decoder_hidden):
    # Embeddings gathered time-major (S, B, n_feat*H); dropout = identity (eval).
    x_tm = jnp.concatenate(
        [jnp.take(tbl, ids.T, axis=0) for tbl, ids in zip(params["emb"], inputs)],
        axis=-1)                                          # (S, B, Din) f32
    # [x ; reverse_s(x)] along features so the block-sparse fused projection emits
    # row t = [fwd gates of t | bwd gates of S-1-t]; bf16 MXU operand.
    x_cat = jnp.concatenate([x_tm, x_tm[::-1]], axis=-1).astype(jnp.bfloat16)
    S, B, Din2 = x_cat.shape
    x2d = x_cat.reshape(S * B, Din2)

    h0, c0 = decoder_hidden
    H = h0.shape[1]
    out = params["w_gen"].shape[1]
    if H != S:
        raise ValueError("reference semantics require hidden_size == seq_len")
    if out != S * H:
        raise ValueError("reference semantics require output_size == seq_len*hidden_size")

    vmem = pl.BlockSpec(memory_space=pltpu.MemorySpace.VMEM)
    final, h1, c1 = pl.pallas_call(
        _summarizer_kernel,
        out_shape=(
            jax.ShapeDtypeStruct((B, out), jnp.float32),   # final_distribution
            jax.ShapeDtypeStruct((B, H), jnp.float32),     # decoder hidden h
            jax.ShapeDtypeStruct((B, H), jnp.float32),     # decoder hidden c
        ),
        in_specs=[vmem] * 15,
        out_specs=(vmem, vmem, vmem),
        cost_estimate=pl.CostEstimate(flops=4_500_000, transcendentals=30_000,
                                      bytes_accessed=350_000),
    )(x2d, params["w_in"], params["b_in"], params["whh_blk"],
      decoder_input, h0, c0,
      params["w_attn"], params["b_attn"],
      params["w_dec"], params["b_dec"],
      params["w_gen"], params["b_gen"],
      params["w_ptr"], params["b_ptr"])
    return final, (h1, c1)


# ----------------------------------------------------------------------------
# Deterministic parameter construction (PyTorch __init__ shapes, pre-fused /
# gate-reordered / bf16-cast for the kernel).
# ----------------------------------------------------------------------------
def init_params(key, *, n_feat, vocab, H, out_size):
    ks = iter(jax.random.split(key, 64))
    n = lambda shape: 0.1 * jax.random.normal(next(ks), shape, jnp.float32)
    Din = n_feat * H

    emb = []
    for _ in range(n_feat):                      # nn.Embedding(vocab, H, padding_idx=0)
        t = n((vocab, H))
        emb.append(t.at[0].set(0.0))

    def lstm_dir(in_dim):
        return n((4 * H, in_dim)), n((4 * H, H)), n((4 * H,)), n((4 * H,))

    wih_f, whh_f, bih_f, bhh_f = lstm_dir(Din)
    wih_b, whh_b, bih_b, bhh_b = lstm_dir(Din)

    def g(w):                                    # split PyTorch gate rows i, f, g, o
        return w[0:H], w[H:2 * H], w[2 * H:3 * H], w[3 * H:4 * H]

    # Fused input projection: block-sparse over [x | reverse_s(x)], column order
    # [i_f, i_b, f_f, f_b, o_f, o_b, g_f, g_b] (sigmoid gates contiguous, tanh last).
    i_f, f_f, g_f, o_f = g(wih_f)
    i_b, f_b, g_b, o_b = g(wih_b)
    Z = jnp.zeros((H, Din), jnp.float32)
    w_in = jnp.concatenate([
        jnp.concatenate([i_f, Z], 1), jnp.concatenate([Z, i_b], 1),
        jnp.concatenate([f_f, Z], 1), jnp.concatenate([Z, f_b], 1),
        jnp.concatenate([o_f, Z], 1), jnp.concatenate([Z, o_b], 1),
        jnp.concatenate([g_f, Z], 1), jnp.concatenate([Z, g_b], 1),
    ], 0).T                                      # (2*Din, 8H)

    bf_all = bih_f + bhh_f                       # recurrent biases folded in
    bb_all = bih_b + bhh_b
    bi_f, bf_f, bg_f, bo_f = g(bf_all)
    bi_b, bf_b, bg_b, bo_b = g(bb_all)
    b_in = jnp.concatenate([bi_f, bi_b, bf_f, bf_b,
                            bo_f, bo_b, bg_f, bg_b]).reshape(1, -1)

    # Fused recurrent weight: (2H, 8H), rows [h_fwd | h_bwd], same column order.
    ri_f, rf_f, rg_f, ro_f = g(whh_f)
    ri_b, rf_b, rg_b, ro_b = g(whh_b)
    ZH = jnp.zeros((H, H), jnp.float32)
    whh_blk = jnp.concatenate([
        jnp.concatenate([ri_f, ZH], 1), jnp.concatenate([ZH, ri_b], 1),
        jnp.concatenate([rf_f, ZH], 1), jnp.concatenate([ZH, rf_b], 1),
        jnp.concatenate([ro_f, ZH], 1), jnp.concatenate([ZH, ro_b], 1),
        jnp.concatenate([rg_f, ZH], 1), jnp.concatenate([ZH, rg_b], 1),
    ], 0).T                                      # (2H, 8H)

    ww = n((H, 2 * H)); bw = n((H,))             # word_attention
    ws = n((H, 2 * H)); bs = n((H,))             # sentence_attention

    dec_wih = n((4 * H, H + out_size))           # decoder LSTM, input = cat(dec_in, ctx)
    dec_whh = n((4 * H, H))
    dec_bih = n((4 * H,)); dec_bhh = n((4 * H,))
    di, df, dg, do = g(dec_wih)
    hi, hf2, hg, ho = g(dec_whh)
    w_dec = jnp.concatenate([
        jnp.concatenate([di, hi], 1), jnp.concatenate([df, hf2], 1),
        jnp.concatenate([do, ho], 1), jnp.concatenate([dg, hg], 1),
    ], 0).T                                      # (Dd+3H, 4H), cols [i, f, o, g]
    dbi, dbf, dbg, dbo = g(dec_bih + dec_bhh)
    b_dec = jnp.concatenate([dbi, dbf, dbo, dbg]).reshape(1, -1)

    wgen = n((out_size, 3 * H)); bgen = n((out_size,))
    wptr = n((1, 3 * H)); bptr = n((1,))

    bf16 = lambda a: a.astype(jnp.bfloat16)
    return dict(
        emb=emb,
        w_in=bf16(w_in), b_in=b_in, whh_blk=bf16(whh_blk),
        w_attn=bf16(jnp.concatenate([ww.T, ws.T], axis=1)),
        b_attn=jnp.concatenate([bw, bs]).reshape(1, -1),
        w_dec=bf16(w_dec), b_dec=b_dec,
        w_gen=bf16(wgen.T), b_gen=bgen.reshape(1, -1),
        w_ptr=wptr, b_ptr=bptr.reshape(1, 1),
    )


if __name__ == "__main__":
    B, S, H = 8, 16, 16            # seq_len == hidden_size (required, see notes)
    n_feat = 2
    vocab = 50
    out_size = S * H               # output_size == seq_len * hidden_size (required)
    Dd = out_size - H              # decoder_input feature dim

    key = jax.random.PRNGKey(0)
    k_p, k_i0, k_i1, k_d = jax.random.split(key, 4)
    params = init_params(k_p, n_feat=n_feat, vocab=vocab, H=H, out_size=out_size)

    inputs = [
        jax.random.randint(k_i0, (B, S), 0, vocab, dtype=jnp.int32),
        jax.random.randint(k_i1, (B, S), 0, vocab, dtype=jnp.int32),
    ]
    decoder_input = jax.random.normal(k_d, (B, Dd), jnp.float32)
    decoder_hidden = (jnp.zeros((B, H), jnp.float32),
                      jnp.zeros((B, H), jnp.float32))
    # encoder_hidden=None -> zeros (initHidden), handled inside the fused kernel.

    final_dist, (h1, c1) = jax.jit(summarizer_forward)(
        params, inputs, decoder_input, decoder_hidden)
    jax.block_until_ready((final_dist, h1, c1))
    assert final_dist.shape == (B, out_size)
    assert h1.shape == (B, H) and c1.shape == (B, H)
    print("KERNEL_OK")
</pallas_src>

<mosaic_0001>
module attributes {stable_mosaic.version = 11 : i64} {
  func.func @_summarizer_kernel(%arg0: memref<128x64xbf16, #tpu.memory_space<vmem>>, %arg1: memref<64x128xbf16, #tpu.memory_space<vmem>>, %arg2: memref<1x128xf32, #tpu.memory_space<vmem>>, %arg3: memref<32x128xbf16, #tpu.memory_space<vmem>>, %arg4: memref<8x240xf32, #tpu.memory_space<vmem>>, %arg5: memref<8x16xf32, #tpu.memory_space<vmem>>, %arg6: memref<8x16xf32, #tpu.memory_space<vmem>>, %arg7: memref<32x32xbf16, #tpu.memory_space<vmem>>, %arg8: memref<1x32xf32, #tpu.memory_space<vmem>>, %arg9: memref<288x64xbf16, #tpu.memory_space<vmem>>, %arg10: memref<1x64xf32, #tpu.memory_space<vmem>>, %arg11: memref<48x256xbf16, #tpu.memory_space<vmem>>, %arg12: memref<1x256xf32, #tpu.memory_space<vmem>>, %arg13: memref<1x48xf32, #tpu.memory_space<vmem>>, %arg14: memref<1x1xf32, #tpu.memory_space<vmem>>, %arg15: memref<8x256xf32, #tpu.memory_space<vmem>>, %arg16: memref<8x16xf32, #tpu.memory_space<vmem>>, %arg17: memref<8x16xf32, #tpu.memory_space<vmem>>) attributes {dimension_semantics = [], scalar_prefetch = 0 : i64, scratch_operands = 0 : i64, tpu.core_type = #tpu.core_type<tc>} {
    %c0 = arith.constant 0 : index
    %c0_0 = arith.constant 0 : index
    %0 = vector.load %arg0[%c0, %c0_0] : memref<128x64xbf16, #tpu.memory_space<vmem>>, vector<128x64xbf16>
    %c0_1 = arith.constant 0 : index
    %c0_2 = arith.constant 0 : index
    %1 = vector.load %arg1[%c0_1, %c0_2] : memref<64x128xbf16, #tpu.memory_space<vmem>>, vector<64x128xbf16>
    %cst = arith.constant dense<0.000000e+00> : vector<128x128xf32>
    %2 = tpu.matmul %0, %1, %cst {dimension_numbers = #tpu.dot_dimension_numbers<[1], [0], [0], [1], [0, 0, 1, 1], [], []>} : vector<128x64xbf16>, vector<64x128xbf16>, vector<128x128xf32> -> vector<128x128xf32>
    %c0_3 = arith.constant 0 : index
    %c0_4 = arith.constant 0 : index
    %3 = vector.load %arg2[%c0_3, %c0_4] : memref<1x128xf32, #tpu.memory_space<vmem>>, vector<1x128xf32>
    %4 = vector.broadcast %3 : vector<1x128xf32> to vector<128x128xf32>
    %5 = arith.addf %2, %4 : vector<128x128xf32>
    %6 = vector.shape_cast %5 : vector<128x128xf32> to vector<16x8x128xf32>
    %c0_5 = arith.constant 0 : index
    %c0_6 = arith.constant 0 : index
    %7 = vector.load %arg3[%c0_5, %c0_6] : memref<32x128xbf16, #tpu.memory_space<vmem>>, vector<32x128xbf16>
    %cst_7 = arith.constant 0.000000e+00 : f32
    %8 = vector.broadcast %cst_7 : f32 to vector<8x32xf32>
    %cst_8 = arith.constant 0.000000e+00 : f32
    %9 = vector.broadcast %cst_8 : f32 to vector<8x32xf32>
    %10 = vector.extract_strided_slice %6 {offsets = [0, 0, 0], sizes = [1, 8, 128], strides = [1, 1, 1]} : vector<16x8x128xf32> to vector<1x8x128xf32>
    %11 = vector.shape_cast %10 : vector<1x8x128xf32> to vector<8x128xf32>
    %12 = arith.truncf %8 : vector<8x32xf32> to vector<8x32xbf16>
    %cst_9 = arith.constant dense<0.000000e+00> : vector<8x128xf32>
    %13 = tpu.matmul %12, %7, %cst_9 {dimension_numbers = #tpu.dot_dimension_numbers<[1], [0], [0], [1], [0, 0, 1, 1], [], []>} : vector<8x32xbf16>, vector<32x128xbf16>, vector<8x128xf32> -> vector<8x128xf32>
    %14 = arith.addf %11, %13 : vector<8x128xf32>
    %15 = vector.extract_strided_slice %14 {offsets = [0, 0], sizes = [8, 96], strides = [1, 1]} : vector<8x128xf32> to vector<8x96xf32>
    %16 = arith.negf %15 : vector<8x96xf32>
    %17 = math.exp %16 : vector<8x96xf32>
    %cst_10 = arith.constant 1.000000e+00 : f32
    %18 = vector.broadcast %cst_10 : f32 to vector<8x96xf32>
    %19 = arith.addf %18, %17 : vector<8x96xf32>
    %20 = arith.divf %18, %19 : vector<8x96xf32>
    %21 = vector.extract_strided_slice %14 {offsets = [0, 96], sizes = [8, 32], strides = [1, 1]} : vector<8x128xf32> to vector<8x32xf32>
    %22 = math.tanh %21 : vector<8x32xf32>
    %23 = vector.extract_strided_slice %20 {offsets = [0, 32], sizes = [8, 32], strides = [1, 1]} : vector<8x96xf32> to vector<8x32xf32>
    %24 = arith.mulf %23, %9 : vector<8x32xf32>
    %25 = vector.extract_strided_slice %20 {offsets = [0, 0], sizes = [8, 32], strides = [1, 1]} : vector<8x96xf32> to vector<8x32xf32>
    %26 = arith.mulf %25, %22 : vector<8x32xf32>
    %27 = arith.addf %24, %26 : vector<8x32xf32>
    %28 = vector.extract_strided_slice %20 {offsets = [0, 64], sizes = [8, 32], strides = [1, 1]} : vector<8x96xf32> to vector<8x32xf32>
    %29 = math.tanh %27 : vector<8x32xf32>
    %30 = arith.mulf %28, %29 : vector<8x32xf32>
    %31 = vector.extract_strided_slice %6 {offsets = [1, 0, 0], sizes = [1, 8, 128], strides = [1, 1, 1]} : vector<16x8x128xf32> to vector<1x8x128xf32>
    %32 = vector.shape_cast %31 : vector<1x8x128xf32> to vector<8x128xf32>
    %33 = arith.truncf %30 : vector<8x32xf32> to vector<8x32xbf16>
    %cst_11 = arith.constant dense<0.000000e+00> : vector<8x128xf32>
    %34 = tpu.matmul %33, %7, %cst_11 {dimension_numbers = #tpu.dot_dimension_numbers<[1], [0], [0], [1], [0, 0, 1, 1], [], []>} : vector<8x32xbf16>, vector<32x128xbf16>, vector<8x128xf32> -> vector<8x128xf32>
    %35 = arith.addf %32, %34 : vector<8x128xf32>
    %36 = vector.extract_strided_slice %35 {offsets = [0, 0], sizes = [8, 96], strides = [1, 1]} : vector<8x128xf32> to vector<8x96xf32>
    %37 = arith.negf %36 : vector<8x96xf32>
    %38 = math.exp %37 : vector<8x96xf32>
    %cst_12 = arith.constant 1.000000e+00 : f32
    %39 = vector.broadcast %cst_12 : f32 to vector<8x96xf32>
    %40 = arith.addf %39, %38 : vector<8x96xf32>
    %41 = arith.divf %39, %40 : vector<8x96xf32>
    %42 = vector.extract_strided_slice %35 {offsets = [0, 96], sizes = [8, 32], strides = [1, 1]} : vector<8x128xf32> to vector<8x32xf32>
    %43 = math.tanh %42 : vector<8x32xf32>
    %44 = vector.extract_strided_slice %41 {offsets = [0, 32], sizes = [8, 32], strides = [1, 1]} : vector<8x96xf32> to vector<8x32xf32>
    %45 = arith.mulf %44, %27 : vector<8x32xf32>
    %46 = vector.extract_strided_slice %41 {offsets = [0, 0], sizes = [8, 32], strides = [1, 1]} : vector<8x96xf32> to vector<8x32xf32>
    %47 = arith.mulf %46, %43 : vector<8x32xf32>
    %48 = arith.addf %45, %47 : vector<8x32xf32>
    %49 = vector.extract_strided_slice %41 {offsets = [0, 64], sizes = [8, 32], strides = [1, 1]} : vector<8x96xf32> to vector<8x32xf32>
    %50 = math.tanh %48 : vector<8x32xf32>
    %51 = arith.mulf %49, %50 : vector<8x32xf32>
    %52 = vector.extract_strided_slice %6 {offsets = [2, 0, 0], sizes = [1, 8, 128], strides = [1, 1, 1]} : vector<16x8x128xf32> to vector<1x8x128xf32>
    %53 = vector.shape_cast %52 : vector<1x8x128xf32> to vector<8x128xf32>
    %54 = arith.truncf %51 : vector<8x32xf32> to vector<8x32xbf16>
    %cst_13 = arith.constant dense<0.000000e+00> : vector<8x128xf32>
    %55 = tpu.matmul %54, %7, %cst_13 {dimension_numbers = #tpu.dot_dimension_numbers<[1], [0], [0], [1], [0, 0, 1, 1], [], []>} : vector<8x32xbf16>, vector<32x128xbf16>, vector<8x128xf32> -> vector<8x128xf32>
    %56 = arith.addf %53, %55 : vector<8x128xf32>
    %57 = vector.extract_strided_slice %56 {offsets = [0, 0], sizes = [8, 96], strides = [1, 1]} : vector<8x128xf32> to vector<8x96xf32>
    %58 = arith.negf %57 : vector<8x96xf32>
    %59 = math.exp %58 : vector<8x96xf32>
    %cst_14 = arith.constant 1.000000e+00 : f32
    %60 = vector.broadcast %cst_14 : f32 to vector<8x96xf32>
    %61 = arith.addf %60, %59 : vector<8x96xf32>
    %62 = arith.divf %60, %61 : vector<8x96xf32>
    %63 = vector.extract_strided_slice %56 {offsets = [0, 96], sizes = [8, 32], strides = [1, 1]} : vector<8x128xf32> to vector<8x32xf32>
    %64 = math.tanh %63 : vector<8x32xf32>
    %65 = vector.extract_strided_slice %62 {offsets = [0, 32], sizes = [8, 32], strides = [1, 1]} : vector<8x96xf32> to vector<8x32xf32>
    %66 = arith.mulf %65, %48 : vector<8x32xf32>
    %67 = vector.extract_strided_slice %62 {offsets = [0, 0], sizes = [8, 32], strides = [1, 1]} : vector<8x96xf32> to vector<8x32xf32>
    %68 = arith.mulf %67, %64 : vector<8x32xf32>
    %69 = arith.addf %66, %68 : vector<8x32xf32>
    %70 = vector.extract_strided_slice %62 {offsets = [0, 64], sizes = [8, 32], strides = [1, 1]} : vector<8x96xf32> to vector<8x32xf32>
    %71 = math.tanh %69 : vector<8x32xf32>
    %72 = arith.mulf %70, %71 : vector<8x32xf32>
    %73 = vector.extract_strided_slice %6 {offsets = [3, 0, 0], sizes = [1, 8, 128], strides = [1, 1, 1]} : vector<16x8x128xf32> to vector<1x8x128xf32>
    %74 = vector.shape_cast %73 : vector<1x8x128xf32> to vector<8x128xf32>
    %75 = arith.truncf %72 : vector<8x32xf32> to vector<8x32xbf16>
    %cst_15 = arith.constant dense<0.000000e+00> : vector<8x128xf32>
    %76 = tpu.matmul %75, %7, %cst_15 {dimension_numbers = #tpu.dot_dimension_numbers<[1], [0], [0], [1], [0, 0, 1, 1], [], []>} : vector<8x32xbf16>, vector<32x128xbf16>, vector<8x128xf32> -> vector<8x128xf32>
    %77 = arith.addf %74, %76 : vector<8x128xf32>
    %78 = vector.extract_strided_slice %77 {offsets = [0, 0], sizes = [8, 96], strides = [1, 1]} : vector<8x128xf32> to vector<8x96xf32>
    %79 = arith.negf %78 : vector<8x96xf32>
    %80 = math.exp %79 : vector<8x96xf32>
    %cst_16 = arith.constant 1.000000e+00 : f32
    %81 = vector.broadcast %cst_16 : f32 to vector<8x96xf32>
    %82 = arith.addf %81, %80 : vector<8x96xf32>
    %83 = arith.divf %81, %82 : vector<8x96xf32>
    %84 = vector.extract_strided_slice %77 {offsets = [0, 96], sizes = [8, 32], strides = [1, 1]} : vector<8x128xf32> to vector<8x32xf32>
    %85 = math.tanh %84 : vector<8x32xf32>
    %86 = vector.extract_strided_slice %83 {offsets = [0, 32], sizes = [8, 32], strides = [1, 1]} : vector<8x96xf32> to vector<8x32xf32>
    %87 = arith.mulf %86, %69 : vector<8x32xf32>
    %88 = vector.extract_strided_slice %83 {offsets = [0, 0], sizes = [8, 32], strides = [1, 1]} : vector<8x96xf32> to vector<8x32xf32>
    %89 = arith.mulf %88, %85 : vector<8x32xf32>
    %90 = arith.addf %87, %89 : vector<8x32xf32>
    %91 = vector.extract_strided_slice %83 {offsets = [0, 64], sizes = [8, 32], strides = [1, 1]} : vector<8x96xf32> to vector<8x32xf32>
    %92 = math.tanh %90 : vector<8x32xf32>
    %93 = arith.mulf %91, %92 : vector<8x32xf32>
    %94 = vector.extract_strided_slice %6 {offsets = [4, 0, 0], sizes = [1, 8, 128], strides = [1, 1, 1]} : vector<16x8x128xf32> to vector<1x8x128xf32>
    %95 = vector.shape_cast %94 : vector<1x8x128xf32> to vector<8x128xf32>
    %96 = arith.truncf %93 : vector<8x32xf32> to vector<8x32xbf16>
    %cst_17 = arith.constant dense<0.000000e+00> : vector<8x128xf32>
    %97 = tpu.matmul %96, %7, %cst_17 {dimension_numbers = #tpu.dot_dimension_numbers<[1], [0], [0], [1], [0, 0, 1, 1], [], []>} : vector<8x32xbf16>, vector<32x128xbf16>, vector<8x128xf32> -> vector<8x128xf32>
    %98 = arith.addf %95, %97 : vector<8x128xf32>
    %99 = vector.extract_strided_slice %98 {offsets = [0, 0], sizes = [8, 96], strides = [1, 1]} : vector<8x128xf32> to vector<8x96xf32>
    %100 = arith.negf %99 : vector<8x96xf32>
    %101 = math.exp %100 : vector<8x96xf32>
    %cst_18 = arith.constant 1.000000e+00 : f32
    %102 = vector.broadcast %cst_18 : f32 to vector<8x96xf32>
    %103 = arith.addf %102, %101 : vector<8x96xf32>
    %104 = arith.divf %102, %103 : vector<8x96xf32>
    %105 = vector.extract_strided_slice %98 {offsets = [0, 96], sizes = [8, 32], strides = [1, 1]} : vector<8x128xf32> to vector<8x32xf32>
    %106 = math.tanh %105 : vector<8x32xf32>
    %107 = vector.extract_strided_slice %104 {offsets = [0, 32], sizes = [8, 32], strides = [1, 1]} : vector<8x96xf32> to vector<8x32xf32>
    %108 = arith.mulf %107, %90 : vector<8x32xf32>
    %109 = vector.extract_strided_slice %104 {offsets = [0, 0], sizes = [8, 32], strides = [1, 1]} : vector<8x96xf32> to vector<8x32xf32>
    %110 = arith.mulf %109, %106 : vector<8x32xf32>
    %111 = arith.addf %108, %110 : vector<8x32xf32>
    %112 = vector.extract_strided_slice %104 {offsets = [0, 64], sizes = [8, 32], strides = [1, 1]} : vector<8x96xf32> to vector<8x32xf32>
    %113 = math.tanh %111 : vector<8x32xf32>
    %114 = arith.mulf %112, %113 : vector<8x32xf32>
    %115 = vector.extract_strided_slice %6 {offsets = [5, 0, 0], sizes = [1, 8, 128], strides = [1, 1, 1]} : vector<16x8x128xf32> to vector<1x8x128xf32>
    %116 = vector.shape_cast %115 : vector<1x8x128xf32> to vector<8x128xf32>
    %117 = arith.truncf %114 : vector<8x32xf32> to vector<8x32xbf16>
    %cst_19 = arith.constant dense<0.000000e+00> : vector<8x128xf32>
    %118 = tpu.matmul %117, %7, %cst_19 {dimension_numbers = #tpu.dot_dimension_numbers<[1], [0], [0], [1], [0, 0, 1, 1], [], []>} : vector<8x32xbf16>, vector<32x128xbf16>, vector<8x128xf32> -> vector<8x128xf32>
    %119 = arith.addf %116, %118 : vector<8x128xf32>
    %120 = vector.extract_strided_slice %119 {offsets = [0, 0], sizes = [8, 96], strides = [1, 1]} : vector<8x128xf32> to vector<8x96xf32>
    %121 = arith.negf %120 : vector<8x96xf32>
    %122 = math.exp %121 : vector<8x96xf32>
    %cst_20 = arith.constant 1.000000e+00 : f32
    %123 = vector.broadcast %cst_20 : f32 to vector<8x96xf32>
    %124 = arith.addf %123, %122 : vector<8x96xf32>
    %125 = arith.divf %123, %124 : vector<8x96xf32>
    %126 = vector.extract_strided_slice %119 {offsets = [0, 96], sizes = [8, 32], strides = [1, 1]} : vector<8x128xf32> to vector<8x32xf32>
    %127 = math.tanh %126 : vector<8x32xf32>
    %128 = vector.extract_strided_slice %125 {offsets = [0, 32], sizes = [8, 32], strides = [1, 1]} : vector<8x96xf32> to vector<8x32xf32>
    %129 = arith.mulf %128, %111 : vector<8x32xf32>
    %130 = vector.extract_strided_slice %125 {offsets = [0, 0], sizes = [8, 32], strides = [1, 1]} : vector<8x96xf32> to vector<8x32xf32>
    %131 = arith.mulf %130, %127 : vector<8x32xf32>
    %132 = arith.addf %129, %131 : vector<8x32xf32>
    %133 = vector.extract_strided_slice %125 {offsets = [0, 64], sizes = [8, 32], strides = [1, 1]} : vector<8x96xf32> to vector<8x32xf32>
    %134 = math.tanh %132 : vector<8x32xf32>
    %135 = arith.mulf %133, %134 : vector<8x32xf32>
    %136 = vector.extract_strided_slice %6 {offsets = [6, 0, 0], sizes = [1, 8, 128], strides = [1, 1, 1]} : vector<16x8x128xf32> to vector<1x8x128xf32>
    %137 = vector.shape_cast %136 : vector<1x8x128xf32> to vector<8x128xf32>
    %138 = arith.truncf %135 : vector<8x32xf32> to vector<8x32xbf16>
    %cst_21 = arith.constant dense<0.000000e+00> : vector<8x128xf32>
    %139 = tpu.matmul %138, %7, %cst_21 {dimension_numbers = #tpu.dot_dimension_numbers<[1], [0], [0], [1], [0, 0, 1, 1], [], []>} : vector<8x32xbf16>, vector<32x128xbf16>, vector<8x128xf32> -> vector<8x128xf32>
    %140 = arith.addf %137, %139 : vector<8x128xf32>
    %141 = vector.extract_strided_slice %140 {offsets = [0, 0], sizes = [8, 96], strides = [1, 1]} : vector<8x128xf32> to vector<8x96xf32>
    %142 = arith.negf %141 : vector<8x96xf32>
    %143 = math.exp %142 : vector<8x96xf32>
    %cst_22 = arith.constant 1.000000e+00 : f32
    %144 = vector.broadcast %cst_22 : f32 to vector<8x96xf32>
    %145 = arith.addf %144, %143 : vector<8x96xf32>
    %146 = arith.divf %144, %145 : vector<8x96xf32>
    %147 = vector.extract_strided_slice %140 {offsets = [0, 96], sizes = [8, 32], strides = [1, 1]} : vector<8x128xf32> to vector<8x32xf32>
    %148 = math.tanh %147 : vector<8x32xf32>
    %149 = vector.extract_strided_slice %146 {offsets = [0, 32], sizes = [8, 32], strides = [1, 1]} : vector<8x96xf32> to vector<8x32xf32>
    %150 = arith.mulf %149, %132 : vector<8x32xf32>
    %151 = vector.extract_strided_slice %146 {offsets = [0, 0], sizes = [8, 32], strides = [1, 1]} : vector<8x96xf32> to vector<8x32xf32>
    %152 = arith.mulf %151, %148 : vector<8x32xf32>
    %153 = arith.addf %150, %152 : vector<8x32xf32>
    %154 = vector.extract_strided_slice %146 {offsets = [0, 64], sizes = [8, 32], strides = [1, 1]} : vector<8x96xf32> to vector<8x32xf32>
    %155 = math.tanh %153 : vector<8x32xf32>
    %156 = arith.mulf %154, %155 : vector<8x32xf32>
    %157 = vector.extract_strided_slice %6 {offsets = [7, 0, 0], sizes = [1, 8, 128], strides = [1, 1, 1]} : vector<16x8x128xf32> to vector<1x8x128xf32>
    %158 = vector.shape_cast %157 : vector<1x8x128xf32> to vector<8x128xf32>
    %159 = arith.truncf %156 : vector<8x32xf32> to vector<8x32xbf16>
    %cst_23 = arith.constant dense<0.000000e+00> : vector<8x128xf32>
    %160 = tpu.matmul %159, %7, %cst_23 {dimension_numbers = #tpu.dot_dimension_numbers<[1], [0], [0], [1], [0, 0, 1, 1], [], []>} : vector<8x32xbf16>, vector<32x128xbf16>, vector<8x128xf32> -> vector<8x128xf32>
    %161 = arith.addf %158, %160 : vector<8x128xf32>
    %162 = vector.extract_strided_slice %161 {offsets = [0, 0], sizes = [8, 96], strides = [1, 1]} : vector<8x128xf32> to vector<8x96xf32>
    %163 = arith.negf %162 : vector<8x96xf32>
    %164 = math.exp %163 : vector<8x96xf32>
    %cst_24 = arith.constant 1.000000e+00 : f32
    %165 = vector.broadcast %cst_24 : f32 to vector<8x96xf32>
    %166 = arith.addf %165, %164 : vector<8x96xf32>
    %167 = arith.divf %165, %166 : vector<8x96xf32>
    %168 = vector.extract_strided_slice %161 {offsets = [0, 96], sizes = [8, 32], strides = [1, 1]} : vector<8x128xf32> to vector<8x32xf32>
    %169 = math.tanh %168 : vector<8x32xf32>
    %170 = vector.extract_strided_slice %167 {offsets = [0, 32], sizes = [8, 32], strides = [1, 1]} : vector<8x96xf32> to vector<8x32xf32>
    %171 = arith.mulf %170, %153 : vector<8x32xf32>
    %172 = vector.extract_strided_slice %167 {offsets = [0, 0], sizes = [8, 32], strides = [1, 1]} : vector<8x96xf32> to vector<8x32xf32>
    %173 = arith.mulf %172, %169 : vector<8x32xf32>
    %174 = arith.addf %171, %173 : vector<8x32xf32>
    %175 = vector.extract_strided_slice %167 {offsets = [0, 64], sizes = [8, 32], strides = [1, 1]} : vector<8x96xf32> to vector<8x32xf32>
    %176 = math.tanh %174 : vector<8x32xf32>
    %177 = arith.mulf %175, %176 : vector<8x32xf32>
    %178 = vector.extract_strided_slice %6 {offsets = [8, 0, 0], sizes = [1, 8, 128], strides = [1, 1, 1]} : vector<16x8x128xf32> to vector<1x8x128xf32>
    %179 = vector.shape_cast %178 : vector<1x8x128xf32> to vector<8x128xf32>
    %180 = arith.truncf %177 : vector<8x32xf32> to vector<8x32xbf16>
    %cst_25 = arith.constant dense<0.000000e+00> : vector<8x128xf32>
    %181 = tpu.matmul %180, %7, %cst_25 {dimension_numbers = #tpu.dot_dimension_numbers<[1], [0], [0], [1], [0, 0, 1, 1], [], []>} : vector<8x32xbf16>, vector<32x128xbf16>, vector<8x128xf32> -> vector<8x128xf32>
    %182 = arith.addf %179, %181 : vector<8x128xf32>
    %183 = vector.extract_strided_slice %182 {offsets = [0, 0], sizes = [8, 96], strides = [1, 1]} : vector<8x128xf32> to vector<8x96xf32>
    %184 = arith.negf %183 : vector<8x96xf32>
    %185 = math.exp %184 : vector<8x96xf32>
    %cst_26 = arith.constant 1.000000e+00 : f32
    %186 = vector.broadcast %cst_26 : f32 to vector<8x96xf32>
    %187 = arith.addf %186, %185 : vector<8x96xf32>
    %188 = arith.divf %186, %187 : vector<8x96xf32>
    %189 = vector.extract_strided_slice %182 {offsets = [0, 96], sizes = [8, 32], strides = [1, 1]} : vector<8x128xf32> to vector<8x32xf32>
    %190 = math.tanh %189 : vector<8x32xf32>
    %191 = vector.extract_strided_slice %188 {offsets = [0, 32], sizes = [8, 32], strides = [1, 1]} : vector<8x96xf32> to vector<8x32xf32>
    %192 = arith.mulf %191, %174 : vector<8x32xf32>
    %193 = vector.extract_strided_slice %188 {offsets = [0, 0], sizes = [8, 32], strides = [1, 1]} : vector<8x96xf32> to vector<8x32xf32>
    %194 = arith.mulf %193, %190 : vector<8x32xf32>
    %195 = arith.addf %192, %194 : vector<8x32xf32>
    %196 = vector.extract_strided_slice %188 {offsets = [0, 64], sizes = [8, 32], strides = [1, 1]} : vector<8x96xf32> to vector<8x32xf32>
    %197 = math.tanh %195 : vector<8x32xf32>
    %198 = arith.mulf %196, %197 : vector<8x32xf32>
    %199 = vector.extract_strided_slice %6 {offsets = [9, 0, 0], sizes = [1, 8, 128], strides = [1, 1, 1]} : vector<16x8x128xf32> to vector<1x8x128xf32>
    %200 = vector.shape_cast %199 : vector<1x8x128xf32> to vector<8x128xf32>
    %201 = arith.truncf %198 : vector<8x32xf32> to vector<8x32xbf16>
    %cst_27 = arith.constant dense<0.000000e+00> : vector<8x128xf32>
    %202 = tpu.matmul %201, %7, %cst_27 {dimension_numbers = #tpu.dot_dimension_numbers<[1], [0], [0], [1], [0, 0, 1, 1], [], []>} : vector<8x32xbf16>, vector<32x128xbf16>, vector<8x128xf32> -> vector<8x128xf32>
    %203 = arith.addf %200, %202 : vector<8x128xf32>
    %204 = vector.extract_strided_slice %203 {offsets = [0, 0], sizes = [8, 96], strides = [1, 1]} : vector<8x128xf32> to vector<8x96xf32>
    %205 = arith.negf %204 : vector<8x96xf32>
    %206 = math.exp %205 : vector<8x96xf32>
    %cst_28 = arith.constant 1.000000e+00 : f32
    %207 = vector.broadcast %cst_28 : f32 to vector<8x96xf32>
    %208 = arith.addf %207, %206 : vector<8x96xf32>
    %209 = arith.divf %207, %208 : vector<8x96xf32>
    %210 = vector.extract_strided_slice %203 {offsets = [0, 96], sizes = [8, 32], strides = [1, 1]} : vector<8x128xf32> to vector<8x32xf32>
    %211 = math.tanh %210 : vector<8x32xf32>
    %212 = vector.extract_strided_slice %209 {offsets = [0, 32], sizes = [8, 32], strides = [1, 1]} : vector<8x96xf32> to vector<8x32xf32>
    %213 = arith.mulf %212, %195 : vector<8x32xf32>
    %214 = vector.extract_strided_slice %209 {offsets = [0, 0], sizes = [8, 32], strides = [1, 1]} : vector<8x96xf32> to vector<8x32xf32>
    %215 = arith.mulf %214, %211 : vector<8x32xf32>
    %216 = arith.addf %213, %215 : vector<8x32xf32>
    %217 = vector.extract_strided_slice %209 {offsets = [0, 64], sizes = [8, 32], strides = [1, 1]} : vector<8x96xf32> to vector<8x32xf32>
    %218 = math.tanh %216 : vector<8x32xf32>
    %219 = arith.mulf %217, %218 : vector<8x32xf32>
    %220 = vector.extract_strided_slice %6 {offsets = [10, 0, 0], sizes = [1, 8, 128], strides = [1, 1, 1]} : vector<16x8x128xf32> to vector<1x8x128xf32>
    %221 = vector.shape_cast %220 : vector<1x8x128xf32> to vector<8x128xf32>
    %222 = arith.truncf %219 : vector<8x32xf32> to vector<8x32xbf16>
    %cst_29 = arith.constant dense<0.000000e+00> : vector<8x128xf32>
    %223 = tpu.matmul %222, %7, %cst_29 {dimension_numbers = #tpu.dot_dimension_numbers<[1], [0], [0], [1], [0, 0, 1, 1], [], []>} : vector<8x32xbf16>, vector<32x128xbf16>, vector<8x128xf32> -> vector<8x128xf32>
    %224 = arith.addf %221, %223 : vector<8x128xf32>
    %225 = vector.extract_strided_slice %224 {offsets = [0, 0], sizes = [8, 96], strides = [1, 1]} : vector<8x128xf32> to vector<8x96xf32>
    %226 = arith.negf %225 : vector<8x96xf32>
    %227 = math.exp %226 : vector<8x96xf32>
    %cst_30 = arith.constant 1.000000e+00 : f32
    %228 = vector.broadcast %cst_30 : f32 to vector<8x96xf32>
    %229 = arith.addf %228, %227 : vector<8x96xf32>
    %230 = arith.divf %228, %229 : vector<8x96xf32>
    %231 = vector.extract_strided_slice %224 {offsets = [0, 96], sizes = [8, 32], strides = [1, 1]} : vector<8x128xf32> to vector<8x32xf32>
    %232 = math.tanh %231 : vector<8x32xf32>
    %233 = vector.extract_strided_slice %230 {offsets = [0, 32], sizes = [8, 32], strides = [1, 1]} : vector<8x96xf32> to vector<8x32xf32>
    %234 = arith.mulf %233, %216 : vector<8x32xf32>
    %235 = vector.extract_strided_slice %230 {offsets = [0, 0], sizes = [8, 32], strides = [1, 1]} : vector<8x96xf32> to vector<8x32xf32>
    %236 = arith.mulf %235, %232 : vector<8x32xf32>
    %237 = arith.addf %234, %236 : vector<8x32xf32>
    %238 = vector.extract_strided_slice %230 {offsets = [0, 64], sizes = [8, 32], strides = [1, 1]} : vector<8x96xf32> to vector<8x32xf32>
    %239 = math.tanh %237 : vector<8x32xf32>
    %240 = arith.mulf %238, %239 : vector<8x32xf32>
    %241 = vector.extract_strided_slice %6 {offsets = [11, 0, 0], sizes = [1, 8, 128], strides = [1, 1, 1]} : vector<16x8x128xf32> to vector<1x8x128xf32>
    %242 = vector.shape_cast %241 : vector<1x8x128xf32> to vector<8x128xf32>
    %243 = arith.truncf %240 : vector<8x32xf32> to vector<8x32xbf16>
    %cst_31 = arith.constant dense<0.000000e+00> : vector<8x128xf32>
    %244 = tpu.matmul %243, %7, %cst_31 {dimension_numbers = #tpu.dot_dimension_numbers<[1], [0], [0], [1], [0, 0, 1, 1], [], []>} : vector<8x32xbf16>, vector<32x128xbf16>, vector<8x128xf32> -> vector<8x128xf32>
    %245 = arith.addf %242, %244 : vector<8x128xf32>
    %246 = vector.extract_strided_slice %245 {offsets = [0, 0], sizes = [8, 96], strides = [1, 1]} : vector<8x128xf32> to vector<8x96xf32>
    %247 = arith.negf %246 : vector<8x96xf32>
    %248 = math.exp %247 : vector<8x96xf32>
    %cst_32 = arith.constant 1.000000e+00 : f32
    %249 = vector.broadcast %cst_32 : f32 to vector<8x96xf32>
    %250 = arith.addf %249, %248 : vector<8x96xf32>
    %251 = arith.divf %249, %250 : vector<8x96xf32>
    %252 = vector.extract_strided_slice %245 {offsets = [0, 96], sizes = [8, 32], strides = [1, 1]} : vector<8x128xf32> to vector<8x32xf32>
    %253 = math.tanh %252 : vector<8x32xf32>
    %254 = vector.extract_strided_slice %251 {offsets = [0, 32], sizes = [8, 32], strides = [1, 1]} : vector<8x96xf32> to vector<8x32xf32>
    %255 = arith.mulf %254, %237 : vector<8x32xf32>
    %256 = vector.extract_strided_slice %251 {offsets = [0, 0], sizes = [8, 32], strides = [1, 1]} : vector<8x96xf32> to vector<8x32xf32>
    %257 = arith.mulf %256, %253 : vector<8x32xf32>
    %258 = arith.addf %255, %257 : vector<8x32xf32>
    %259 = vector.extract_strided_slice %251 {offsets = [0, 64], sizes = [8, 32], strides = [1, 1]} : vector<8x96xf32> to vector<8x32xf32>
    %260 = math.tanh %258 : vector<8x32xf32>
    %261 = arith.mulf %259, %260 : vector<8x32xf32>
    %262 = vector.extract_strided_slice %6 {offsets = [12, 0, 0], sizes = [1, 8, 128], strides = [1, 1, 1]} : vector<16x8x128xf32> to vector<1x8x128xf32>
    %263 = vector.shape_cast %262 : vector<1x8x128xf32> to vector<8x128xf32>
    %264 = arith.truncf %261 : vector<8x32xf32> to vector<8x32xbf16>
    %cst_33 = arith.constant dense<0.000000e+00> : vector<8x128xf32>
    %265 = tpu.matmul %264, %7, %cst_33 {dimension_numbers = #tpu.dot_dimension_numbers<[1], [0], [0], [1], [0, 0, 1, 1], [], []>} : vector<8x32xbf16>, vector<32x128xbf16>, vector<8x128xf32> -> vector<8x128xf32>
    %266 = arith.addf %263, %265 : vector<8x128xf32>
    %267 = vector.extract_strided_slice %266 {offsets = [0, 0], sizes = [8, 96], strides = [1, 1]} : vector<8x128xf32> to vector<8x96xf32>
    %268 = arith.negf %267 : vector<8x96xf32>
    %269 = math.exp %268 : vector<8x96xf32>
    %cst_34 = arith.constant 1.000000e+00 : f32
    %270 = vector.broadcast %cst_34 : f32 to vector<8x96xf32>
    %271 = arith.addf %270, %269 : vector<8x96xf32>
    %272 = arith.divf %270, %271 : vector<8x96xf32>
    %273 = vector.extract_strided_slice %266 {offsets = [0, 96], sizes = [8, 32], strides = [1, 1]} : vector<8x128xf32> to vector<8x32xf32>
    %274 = math.tanh %273 : vector<8x32xf32>
    %275 = vector.extract_strided_slice %272 {offsets = [0, 32], sizes = [8, 32], strides = [1, 1]} : vector<8x96xf32> to vector<8x32xf32>
    %276 = arith.mulf %275, %258 : vector<8x32xf32>
    %277 = vector.extract_strided_slice %272 {offsets = [0, 0], sizes = [8, 32], strides = [1, 1]} : vector<8x96xf32> to vector<8x32xf32>
    %278 = arith.mulf %277, %274 : vector<8x32xf32>
    %279 = arith.addf %276, %278 : vector<8x32xf32>
    %280 = vector.extract_strided_slice %272 {offsets = [0, 64], sizes = [8, 32], strides = [1, 1]} : vector<8x96xf32> to vector<8x32xf32>
    %281 = math.tanh %279 : vector<8x32xf32>
    %282 = arith.mulf %280, %281 : vector<8x32xf32>
    %283 = vector.extract_strided_slice %6 {offsets = [13, 0, 0], sizes = [1, 8, 128], strides = [1, 1, 1]} : vector<16x8x128xf32> to vector<1x8x128xf32>
    %284 = vector.shape_cast %283 : vector<1x8x128xf32> to vector<8x128xf32>
    %285 = arith.truncf %282 : vector<8x32xf32> to vector<8x32xbf16>
    %cst_35 = arith.constant dense<0.000000e+00> : vector<8x128xf32>
    %286 = tpu.matmul %285, %7, %cst_35 {dimension_numbers = #tpu.dot_dimension_numbers<[1], [0], [0], [1], [0, 0, 1, 1], [], []>} : vector<8x32xbf16>, vector<32x128xbf16>, vector<8x128xf32> -> vector<8x128xf32>
    %287 = arith.addf %284, %286 : vector<8x128xf32>
    %288 = vector.extract_strided_slice %287 {offsets = [0, 0], sizes = [8, 96], strides = [1, 1]} : vector<8x128xf32> to vector<8x96xf32>
    %289 = arith.negf %288 : vector<8x96xf32>
    %290 = math.exp %289 : vector<8x96xf32>
    %cst_36 = arith.constant 1.000000e+00 : f32
    %291 = vector.broadcast %cst_36 : f32 to vector<8x96xf32>
    %292 = arith.addf %291, %290 : vector<8x96xf32>
    %293 = arith.divf %291, %292 : vector<8x96xf32>
    %294 = vector.extract_strided_slice %287 {offsets = [0, 96], sizes = [8, 32], strides = [1, 1]} : vector<8x128xf32> to vector<8x32xf32>
    %295 = math.tanh %294 : vector<8x32xf32>
    %296 = vector.extract_strided_slice %293 {offsets = [0, 32], sizes = [8, 32], strides = [1, 1]} : vector<8x96xf32> to vector<8x32xf32>
    %297 = arith.mulf %296, %279 : vector<8x32xf32>
    %298 = vector.extract_strided_slice %293 {offsets = [0, 0], sizes = [8, 32], strides = [1, 1]} : vector<8x96xf32> to vector<8x32xf32>
    %299 = arith.mulf %298, %295 : vector<8x32xf32>
    %300 = arith.addf %297, %299 : vector<8x32xf32>
    %301 = vector.extract_strided_slice %293 {offsets = [0, 64], sizes = [8, 32], strides = [1, 1]} : vector<8x96xf32> to vector<8x32xf32>
    %302 = math.tanh %300 : vector<8x32xf32>
    %303 = arith.mulf %301, %302 : vector<8x32xf32>
    %304 = vector.extract_strided_slice %6 {offsets = [14, 0, 0], sizes = [1, 8, 128], strides = [1, 1, 1]} : vector<16x8x128xf32> to vector<1x8x128xf32>
    %305 = vector.shape_cast %304 : vector<1x8x128xf32> to vector<8x128xf32>
    %306 = arith.truncf %303 : vector<8x32xf32> to vector<8x32xbf16>
    %cst_37 = arith.constant dense<0.000000e+00> : vector<8x128xf32>
    %307 = tpu.matmul %306, %7, %cst_37 {dimension_numbers = #tpu.dot_dimension_numbers<[1], [0], [0], [1], [0, 0, 1, 1], [], []>} : vector<8x32xbf16>, vector<32x128xbf16>, vector<8x128xf32> -> vector<8x128xf32>
    %308 = arith.addf %305, %307 : vector<8x128xf32>
    %309 = vector.extract_strided_slice %308 {offsets = [0, 0], sizes = [8, 96], strides = [1, 1]} : vector<8x128xf32> to vector<8x96xf32>
    %310 = arith.negf %309 : vector<8x96xf32>
    %311 = math.exp %310 : vector<8x96xf32>
    %cst_38 = arith.constant 1.000000e+00 : f32
    %312 = vector.broadcast %cst_38 : f32 to vector<8x96xf32>
    %313 = arith.addf %312, %311 : vector<8x96xf32>
    %314 = arith.divf %312, %313 : vector<8x96xf32>
    %315 = vector.extract_strided_slice %308 {offsets = [0, 96], sizes = [8, 32], strides = [1, 1]} : vector<8x128xf32> to vector<8x32xf32>
    %316 = math.tanh %315 : vector<8x32xf32>
    %317 = vector.extract_strided_slice %314 {offsets = [0, 32], sizes = [8, 32], strides = [1, 1]} : vector<8x96xf32> to vector<8x32xf32>
    %318 = arith.mulf %317, %300 : vector<8x32xf32>
    %319 = vector.extract_strided_slice %314 {offsets = [0, 0], sizes = [8, 32], strides = [1, 1]} : vector<8x96xf32> to vector<8x32xf32>
    %320 = arith.mulf %319, %316 : vector<8x32xf32>
    %321 = arith.addf %318, %320 : vector<8x32xf32>
    %322 = vector.extract_strided_slice %314 {offsets = [0, 64], sizes = [8, 32], strides = [1, 1]} : vector<8x96xf32> to vector<8x32xf32>
    %323 = math.tanh %321 : vector<8x32xf32>
    %324 = arith.mulf %322, %323 : vector<8x32xf32>
    %325 = vector.extract_strided_slice %6 {offsets = [15, 0, 0], sizes = [1, 8, 128], strides = [1, 1, 1]} : vector<16x8x128xf32> to vector<1x8x128xf32>
    %326 = vector.shape_cast %325 : vector<1x8x128xf32> to vector<8x128xf32>
    %327 = arith.truncf %324 : vector<8x32xf32> to vector<8x32xbf16>
    %cst_39 = arith.constant dense<0.000000e+00> : vector<8x128xf32>
    %328 = tpu.matmul %327, %7, %cst_39 {dimension_numbers = #tpu.dot_dimension_numbers<[1], [0], [0], [1], [0, 0, 1, 1], [], []>} : vector<8x32xbf16>, vector<32x128xbf16>, vector<8x128xf32> -> vector<8x128xf32>
    %329 = arith.addf %326, %328 : vector<8x128xf32>
    %330 = vector.extract_strided_slice %329 {offsets = [0, 0], sizes = [8, 96], strides = [1, 1]} : vector<8x128xf32> to vector<8x96xf32>
    %331 = arith.negf %330 : vector<8x96xf32>
    %332 = math.exp %331 : vector<8x96xf32>
    %cst_40 = arith.constant 1.000000e+00 : f32
    %333 = vector.broadcast %cst_40 : f32 to vector<8x96xf32>
    %334 = arith.addf %333, %332 : vector<8x96xf32>
    %335 = arith.divf %333, %334 : vector<8x96xf32>
    %336 = vector.extract_strided_slice %329 {offsets = [0, 96], sizes = [8, 32], strides = [1, 1]} : vector<8x128xf32> to vector<8x32xf32>
    %337 = math.tanh %336 : vector<8x32xf32>
    %338 = vector.extract_strided_slice %335 {offsets = [0, 32], sizes = [8, 32], strides = [1, 1]} : vector<8x96xf32> to vector<8x32xf32>
    %339 = arith.mulf %338, %321 : vector<8x32xf32>
    %340 = vector.extract_strided_slice %335 {offsets = [0, 0], sizes = [8, 32], strides = [1, 1]} : vector<8x96xf32> to vector<8x32xf32>
    %341 = arith.mulf %340, %337 : vector<8x32xf32>
    %342 = arith.addf %339, %341 : vector<8x32xf32>
    %343 = vector.extract_strided_slice %335 {offsets = [0, 64], sizes = [8, 32], strides = [1, 1]} : vector<8x96xf32> to vector<8x32xf32>
    %344 = math.tanh %342 : vector<8x32xf32>
    %345 = arith.mulf %343, %344 : vector<8x32xf32>
    %346 = vector.extract_strided_slice %30 {offsets = [0, 0], sizes = [8, 16], strides = [1, 1]} : vector<8x32xf32> to vector<8x16xf32>
    %347 = vector.extract_strided_slice %345 {offsets = [0, 16], sizes = [8, 16], strides = [1, 1]} : vector<8x32xf32> to vector<8x16xf32>
    %348 = tpu.concatenate %346, %347 in 1 : vector<8x16xf32>, vector<8x16xf32> -> vector<8x32xf32>
    %349 = vector.extract_strided_slice %51 {offsets = [0, 0], sizes = [8, 16], strides = [1, 1]} : vector<8x32xf32> to vector<8x16xf32>
    %350 = vector.extract_strided_slice %324 {offsets = [0, 16], sizes = [8, 16], strides = [1, 1]} : vector<8x32xf32> to vector<8x16xf32>
    %351 = tpu.concatenate %349, %350 in 1 : vector<8x16xf32>, vector<8x16xf32> -> vector<8x32xf32>
    %352 = vector.extract_strided_slice %72 {offsets = [0, 0], sizes = [8, 16], strides = [1, 1]} : vector<8x32xf32> to vector<8x16xf32>
    %353 = vector.extract_strided_slice %303 {offsets = [0, 16], sizes = [8, 16], strides = [1, 1]} : vector<8x32xf32> to vector<8x16xf32>
    %354 = tpu.concatenate %352, %353 in 1 : vector<8x16xf32>, vector<8x16xf32> -> vector<8x32xf32>
    %355 = vector.extract_strided_slice %93 {offsets = [0, 0], sizes = [8, 16], strides = [1, 1]} : vector<8x32xf32> to vector<8x16xf32>
    %356 = vector.extract_strided_slice %282 {offsets = [0, 16], sizes = [8, 16], strides = [1, 1]} : vector<8x32xf32> to vector<8x16xf32>
    %357 = tpu.concatenate %355, %356 in 1 : vector<8x16xf32>, vector<8x16xf32> -> vector<8x32xf32>
    %358 = vector.extract_strided_slice %114 {offsets = [0, 0], sizes = [8, 16], strides = [1, 1]} : vector<8x32xf32> to vector<8x16xf32>
    %359 = vector.extract_strided_slice %261 {offsets = [0, 16], sizes = [8, 16], strides = [1, 1]} : vector<8x32xf32> to vector<8x16xf32>
    %360 = tpu.concatenate %358, %359 in 1 : vector<8x16xf32>, vector<8x16xf32> -> vector<8x32xf32>
    %361 = vector.extract_strided_slice %135 {offsets = [0, 0], sizes = [8, 16], strides = [1, 1]} : vector<8x32xf32> to vector<8x16xf32>
    %362 = vector.extract_strided_slice %240 {offsets = [0, 16], sizes = [8, 16], strides = [1, 1]} : vector<8x32xf32> to vector<8x16xf32>
    %363 = tpu.concatenate %361, %362 in 1 : vector<8x16xf32>, vector<8x16xf32> -> vector<8x32xf32>
    %364 = vector.extract_strided_slice %156 {offsets = [0, 0], sizes = [8, 16], strides = [1, 1]} : vector<8x32xf32> to vector<8x16xf32>
    %365 = vector.extract_strided_slice %219 {offsets = [0, 16], sizes = [8, 16], strides = [1, 1]} : vector<8x32xf32> to vector<8x16xf32>
    %366 = tpu.concatenate %364, %365 in 1 : vector<8x16xf32>, vector<8x16xf32> -> vector<8x32xf32>
    %367 = vector.extract_strided_slice %177 {offsets = [0, 0], sizes = [8, 16], strides = [1, 1]} : vector<8x32xf32> to vector<8x16xf32>
    %368 = vector.extract_strided_slice %198 {offsets = [0, 16], sizes = [8, 16], strides = [1, 1]} : vector<8x32xf32> to vector<8x16xf32>
    %369 = tpu.concatenate %367, %368 in 1 : vector<8x16xf32>, vector<8x16xf32> -> vector<8x32xf32>
    %370 = vector.extract_strided_slice %198 {offsets = [0, 0], sizes = [8, 16], strides = [1, 1]} : vector<8x32xf32> to vector<8x16xf32>
    %371 = vector.extract_strided_slice %177 {offsets = [0, 16], sizes = [8, 16], strides = [1, 1]} : vector<8x32xf32> to vector<8x16xf32>
    %372 = tpu.concatenate %370, %371 in 1 : vector<8x16xf32>, vector<8x16xf32> -> vector<8x32xf32>
    %373 = vector.extract_strided_slice %219 {offsets = [0, 0], sizes = [8, 16], strides = [1, 1]} : vector<8x32xf32> to vector<8x16xf32>
    %374 = vector.extract_strided_slice %156 {offsets = [0, 16], sizes = [8, 16], strides = [1, 1]} : vector<8x32xf32> to vector<8x16xf32>
    %375 = tpu.concatenate %373, %374 in 1 : vector<8x16xf32>, vector<8x16xf32> -> vector<8x32xf32>
    %376 = vector.extract_strided_slice %240 {offsets = [0, 0], sizes = [8, 16], strides = [1, 1]} : vector<8x32xf32> to vector<8x16xf32>
    %377 = vector.extract_strided_slice %135 {offsets = [0, 16], sizes = [8, 16], strides = [1, 1]} : vector<8x32xf32> to vector<8x16xf32>
    %378 = tpu.concatenate %376, %377 in 1 : vector<8x16xf32>, vector<8x16xf32> -> vector<8x32xf32>
    %379 = vector.extract_strided_slice %261 {offsets = [0, 0], sizes = [8, 16], strides = [1, 1]} : vector<8x32xf32> to vector<8x16xf32>
    %380 = vector.extract_strided_slice %114 {offsets = [0, 16], sizes = [8, 16], strides = [1, 1]} : vector<8x32xf32> to vector<8x16xf32>
    %381 = tpu.concatenate %379, %380 in 1 : vector<8x16xf32>, vector<8x16xf32> -> vector<8x32xf32>
    %382 = vector.extract_strided_slice %282 {offsets = [0, 0], sizes = [8, 16], strides = [1, 1]} : vector<8x32xf32> to vector<8x16xf32>
    %383 = vector.extract_strided_slice %93 {offsets = [0, 16], sizes = [8, 16], strides = [1, 1]} : vector<8x32xf32> to vector<8x16xf32>
    %384 = tpu.concatenate %382, %383 in 1 : vector<8x16xf32>, vector<8x16xf32> -> vector<8x32xf32>
    %385 = vector.extract_strided_slice %303 {offsets = [0, 0], sizes = [8, 16], strides = [1, 1]} : vector<8x32xf32> to vector<8x16xf32>
    %386 = vector.extract_strided_slice %72 {offsets = [0, 16], sizes = [8, 16], strides = [1, 1]} : vector<8x32xf32> to vector<8x16xf32>
    %387 = tpu.concatenate %385, %386 in 1 : vector<8x16xf32>, vector<8x16xf32> -> vector<8x32xf32>
    %388 = vector.extract_strided_slice %324 {offsets = [0, 0], sizes = [8, 16], strides = [1, 1]} : vector<8x32xf32> to vector<8x16xf32>
    %389 = vector.extract_strided_slice %51 {offsets = [0, 16], sizes = [8, 16], strides = [1, 1]} : vector<8x32xf32> to vector<8x16xf32>
    %390 = tpu.concatenate %388, %389 in 1 : vector<8x16xf32>, vector<8x16xf32> -> vector<8x32xf32>
    %391 = vector.extract_strided_slice %345 {offsets = [0, 0], sizes = [8, 16], strides = [1, 1]} : vector<8x32xf32> to vector<8x16xf32>
    %392 = vector.extract_strided_slice %30 {offsets = [0, 16], sizes = [8, 16], strides = [1, 1]} : vector<8x32xf32> to vector<8x16xf32>
    %393 = tpu.concatenate %391, %392 in 1 : vector<8x16xf32>, vector<8x16xf32> -> vector<8x32xf32>
    %394 = tpu.concatenate %348, %351, %354, %357, %360, %363, %366, %369, %372, %375, %378, %381, %384, %387, %390, %393 in 0 : vector<8x32xf32>, vector<8x32xf32>, vector<8x32xf32>, vector<8x32xf32>, vector<8x32xf32>, vector<8x32xf32>, vector<8x32xf32>, vector<8x32xf32>, vector<8x32xf32>, vector<8x32xf32>, vector<8x32xf32>, vector<8x32xf32>, vector<8x32xf32>, vector<8x32xf32>, vector<8x32xf32>, vector<8x32xf32> -> vector<128x32xf32>
    %395 = vector.shape_cast %394 : vector<128x32xf32> to vector<16x8x32xf32>
    %396 = arith.truncf %394 : vector<128x32xf32> to vector<128x32xbf16>
    %c0_41 = arith.constant 0 : index
    %c0_42 = arith.constant 0 : index
    %397 = vector.load %arg7[%c0_41, %c0_42] : memref<32x32xbf16, #tpu.memory_space<vmem>>, vector<32x32xbf16>
    %cst_43 = arith.constant dense<0.000000e+00> : vector<128x32xf32>
    %398 = tpu.matmul %396, %397, %cst_43 {dimension_numbers = #tpu.dot_dimension_numbers<[1], [0], [0], [1], [0, 0, 1, 1], [], []>} : vector<128x32xbf16>, vector<32x32xbf16>, vector<128x32xf32> -> vector<128x32xf32>
    %c0_44 = arith.constant 0 : index
    %c0_45 = arith.constant 0 : index
    %399 = vector.load %arg8[%c0_44, %c0_45] : memref<1x32xf32, #tpu.memory_space<vmem>>, vector<1x32xf32>
    %400 = vector.broadcast %399 : vector<1x32xf32> to vector<128x32xf32>
    %401 = arith.addf %398, %400 : vector<128x32xf32>
    %402 = math.tanh %401 : vector<128x32xf32>
    %403 = vector.shape_cast %402 : vector<128x32xf32> to vector<16x8x32xf32>
    %404 = vector.extract_strided_slice %403 {offsets = [0, 0, 0], sizes = [16, 8, 16], strides = [1, 1, 1]} : vector<16x8x32xf32> to vector<16x8x16xf32>
    %cst_46 = arith.constant dense<0xFF800000> : vector<16x8xf32>
    %405 = vector.multi_reduction <maximumf>, %404, %cst_46 [2] : vector<16x8x16xf32> to vector<16x8xf32>
    %cst_47 = arith.constant 0xFF800000 : f32
    %406 = vector.broadcast %cst_47 : f32 to vector<16x8xf32>
    %407 = arith.maximumf %406, %405 : vector<16x8xf32>
    %408 = vector.shape_cast %407 : vector<16x8xf32> to vector<16x8x1xf32>
    %409 = vector.broadcast %408 : vector<16x8x1xf32> to vector<16x8x16xf32>
    %410 = arith.subf %404, %409 : vector<16x8x16xf32>
    %411 = math.exp %410 : vector<16x8x16xf32>
    %cst_48 = arith.constant dense<0.000000e+00> : vector<16x8xf32>
    %412 = vector.multi_reduction <add>, %411, %cst_48 [2] : vector<16x8x16xf32> to vector<16x8xf32>
    %413 = vector.shape_cast %412 : vector<16x8xf32> to vector<16x8x1xf32>
    %414 = vector.broadcast %413 : vector<16x8x1xf32> to vector<16x8x16xf32>
    %415 = arith.divf %411, %414 : vector<16x8x16xf32>
    %416 = vector.extract_strided_slice %403 {offsets = [0, 0, 16], sizes = [16, 8, 16], strides = [1, 1, 1]} : vector<16x8x32xf32> to vector<16x8x16xf32>
    %cst_49 = arith.constant dense<0xFF800000> : vector<8x16xf32>
    %417 = vector.multi_reduction <maximumf>, %416, %cst_49 [0] : vector<16x8x16xf32> to vector<8x16xf32>
    %cst_50 = arith.constant 0xFF800000 : f32
    %418 = vector.broadcast %cst_50 : f32 to vector<8x16xf32>
    %419 = arith.maximumf %418, %417 : vector<8x16xf32>
    %420 = vector.shape_cast %419 : vector<8x16xf32> to vector<1x8x16xf32>
    %421 = vector.broadcast %420 : vector<1x8x16xf32> to vector<16x8x16xf32>
    %422 = arith.subf %416, %421 : vector<16x8x16xf32>
    %423 = math.exp %422 : vector<16x8x16xf32>
    %cst_51 = arith.constant dense<0.000000e+00> : vector<8x16xf32>
    %424 = vector.multi_reduction <add>, %423, %cst_51 [0] : vector<16x8x16xf32> to vector<8x16xf32>
    %425 = vector.shape_cast %424 : vector<8x16xf32> to vector<1x8x16xf32>
    %426 = vector.broadcast %425 : vector<1x8x16xf32> to vector<16x8x16xf32>
    %427 = arith.divf %423, %426 : vector<16x8x16xf32>
    %428 = arith.mulf %415, %427 : vector<16x8x16xf32>
    %cst_52 = arith.constant dense<0.000000e+00> : vector<8x16xf32>
    %429 = vector.multi_reduction <add>, %428, %cst_52 [0] : vector<16x8x16xf32> to vector<8x16xf32>
    %cst_53 = arith.constant 0.000000e+00 : f32
    %430 = vector.broadcast %cst_53 : f32 to vector<8x32xf32>
    %431 = vector.extract_strided_slice %429 {offsets = [0, 0], sizes = [8, 1], strides = [1, 1]} : vector<8x16xf32> to vector<8x1xf32>
    %432 = vector.extract_strided_slice %395 {offsets = [0, 0, 0], sizes = [1, 8, 32], strides = [1, 1, 1]} : vector<16x8x32xf32> to vector<1x8x32xf32>
    %433 = vector.shape_cast %432 : vector<1x8x32xf32> to vector<8x32xf32>
    %434 = vector.broadcast %431 : vector<8x1xf32> to vector<8x32xf32>
    %435 = arith.mulf %434, %433 : vector<8x32xf32>
    %436 = arith.addf %430, %435 : vector<8x32xf32>
    %437 = vector.extract_strided_slice %429 {offsets = [0, 1], sizes = [8, 1], strides = [1, 1]} : vector<8x16xf32> to vector<8x1xf32>
    %438 = vector.extract_strided_slice %395 {offsets = [1, 0, 0], sizes = [1, 8, 32], strides = [1, 1, 1]} : vector<16x8x32xf32> to vector<1x8x32xf32>
    %439 = vector.shape_cast %438 : vector<1x8x32xf32> to vector<8x32xf32>
    %440 = vector.broadcast %437 : vector<8x1xf32> to vector<8x32xf32>
    %441 = arith.mulf %440, %439 : vector<8x32xf32>
    %442 = arith.addf %436, %441 : vector<8x32xf32>
    %443 = vector.extract_strided_slice %429 {offsets = [0, 2], sizes = [8, 1], strides = [1, 1]} : vector<8x16xf32> to vector<8x1xf32>
    %444 = vector.extract_strided_slice %395 {offsets = [2, 0, 0], sizes = [1, 8, 32], strides = [1, 1, 1]} : vector<16x8x32xf32> to vector<1x8x32xf32>
    %445 = vector.shape_cast %444 : vector<1x8x32xf32> to vector<8x32xf32>
    %446 = vector.broadcast %443 : vector<8x1xf32> to vector<8x32xf32>
    %447 = arith.mulf %446, %445 : vector<8x32xf32>
    %448 = arith.addf %442, %447 : vector<8x32xf32>
    %449 = vector.extract_strided_slice %429 {offsets = [0, 3], sizes = [8, 1], strides = [1, 1]} : vector<8x16xf32> to vector<8x1xf32>
    %450 = vector.extract_strided_slice %395 {offsets = [3, 0, 0], sizes = [1, 8, 32], strides = [1, 1, 1]} : vector<16x8x32xf32> to vector<1x8x32xf32>
    %451 = vector.shape_cast %450 : vector<1x8x32xf32> to vector<8x32xf32>
    %452 = vector.broadcast %449 : vector<8x1xf32> to vector<8x32xf32>
    %453 = arith.mulf %452, %451 : vector<8x32xf32>
    %454 = arith.addf %448, %453 : vector<8x32xf32>
    %455 = vector.extract_strided_slice %429 {offsets = [0, 4], sizes = [8, 1], strides = [1, 1]} : vector<8x16xf32> to vector<8x1xf32>
    %456 = vector.extract_strided_slice %395 {offsets = [4, 0, 0], sizes = [1, 8, 32], strides = [1, 1, 1]} : vector<16x8x32xf32> to vector<1x8x32xf32>
    %457 = vector.shape_cast %456 : vector<1x8x32xf32> to vector<8x32xf32>
    %458 = vector.broadcast %455 : vector<8x1xf32> to vector<8x32xf32>
    %459 = arith.mulf %458, %457 : vector<8x32xf32>
    %460 = arith.addf %454, %459 : vector<8x32xf32>
    %461 = vector.extract_strided_slice %429 {offsets = [0, 5], sizes = [8, 1], strides = [1, 1]} : vector<8x16xf32> to vector<8x1xf32>
    %462 = vector.extract_strided_slice %395 {offsets = [5, 0, 0], sizes = [1, 8, 32], strides = [1, 1, 1]} : vector<16x8x32xf32> to vector<1x8x32xf32>
    %463 = vector.shape_cast %462 : vector<1x8x32xf32> to vector<8x32xf32>
    %464 = vector.broadcast %461 : vector<8x1xf32> to vector<8x32xf32>
    %465 = arith.mulf %464, %463 : vector<8x32xf32>
    %466 = arith.addf %460, %465 : vector<8x32xf32>
    %467 = vector.extract_strided_slice %429 {offsets = [0, 6], sizes = [8, 1], strides = [1, 1]} : vector<8x16xf32> to vector<8x1xf32>
    %468 = vector.extract_strided_slice %395 {offsets = [6, 0, 0], sizes = [1, 8, 32], strides = [1, 1, 1]} : vector<16x8x32xf32> to vector<1x8x32xf32>
    %469 = vector.shape_cast %468 : vector<1x8x32xf32> to vector<8x32xf32>
    %470 = vector.broadcast %467 : vector<8x1xf32> to vector<8x32xf32>
    %471 = arith.mulf %470, %469 : vector<8x32xf32>
    %472 = arith.addf %466, %471 : vector<8x32xf32>
    %473 = vector.extract_strided_slice %429 {offsets = [0, 7], sizes = [8, 1], strides = [1, 1]} : vector<8x16xf32> to vector<8x1xf32>
    %474 = vector.extract_strided_slice %395 {offsets = [7, 0, 0], sizes = [1, 8, 32], strides = [1, 1, 1]} : vector<16x8x32xf32> to vector<1x8x32xf32>
    %475 = vector.shape_cast %474 : vector<1x8x32xf32> to vector<8x32xf32>
    %476 = vector.broadcast %473 : vector<8x1xf32> to vector<8x32xf32>
    %477 = arith.mulf %476, %475 : vector<8x32xf32>
    %478 = arith.addf %472, %477 : vector<8x32xf32>
    %479 = vector.extract_strided_slice %429 {offsets = [0, 8], sizes = [8, 1], strides = [1, 1]} : vector<8x16xf32> to vector<8x1xf32>
    %480 = vector.extract_strided_slice %395 {offsets = [8, 0, 0], sizes = [1, 8, 32], strides = [1, 1, 1]} : vector<16x8x32xf32> to vector<1x8x32xf32>
    %481 = vector.shape_cast %480 : vector<1x8x32xf32> to vector<8x32xf32>
    %482 = vector.broadcast %479 : vector<8x1xf32> to vector<8x32xf32>
    %483 = arith.mulf %482, %481 : vector<8x32xf32>
    %484 = arith.addf %478, %483 : vector<8x32xf32>
    %485 = vector.extract_strided_slice %429 {offsets = [0, 9], sizes = [8, 1], strides = [1, 1]} : vector<8x16xf32> to vector<8x1xf32>
    %486 = vector.extract_strided_slice %395 {offsets = [9, 0, 0], sizes = [1, 8, 32], strides = [1, 1, 1]} : vector<16x8x32xf32> to vector<1x8x32xf32>
    %487 = vector.shape_cast %486 : vector<1x8x32xf32> to vector<8x32xf32>
    %488 = vector.broadcast %485 : vector<8x1xf32> to vector<8x32xf32>
    %489 = arith.mulf %488, %487 : vector<8x32xf32>
    %490 = arith.addf %484, %489 : vector<8x32xf32>
    %491 = vector.extract_strided_slice %429 {offsets = [0, 10], sizes = [8, 1], strides = [1, 1]} : vector<8x16xf32> to vector<8x1xf32>
    %492 = vector.extract_strided_slice %395 {offsets = [10, 0, 0], sizes = [1, 8, 32], strides = [1, 1, 1]} : vector<16x8x32xf32> to vector<1x8x32xf32>
    %493 = vector.shape_cast %492 : vector<1x8x32xf32> to vector<8x32xf32>
    %494 = vector.broadcast %491 : vector<8x1xf32> to vector<8x32xf32>
    %495 = arith.mulf %494, %493 : vector<8x32xf32>
    %496 = arith.addf %490, %495 : vector<8x32xf32>
    %497 = vector.extract_strided_slice %429 {offsets = [0, 11], sizes = [8, 1], strides = [1, 1]} : vector<8x16xf32> to vector<8x1xf32>
    %498 = vector.extract_strided_slice %395 {offsets = [11, 0, 0], sizes = [1, 8, 32], strides = [1, 1, 1]} : vector<16x8x32xf32> to vector<1x8x32xf32>
    %499 = vector.shape_cast %498 : vector<1x8x32xf32> to vector<8x32xf32>
    %500 = vector.broadcast %497 : vector<8x1xf32> to vector<8x32xf32>
    %501 = arith.mulf %500, %499 : vector<8x32xf32>
    %502 = arith.addf %496, %501 : vector<8x32xf32>
    %503 = vector.extract_strided_slice %429 {offsets = [0, 12], sizes = [8, 1], strides = [1, 1]} : vector<8x16xf32> to vector<8x1xf32>
    %504 = vector.extract_strided_slice %395 {offsets = [12, 0, 0], sizes = [1, 8, 32], strides = [1, 1, 1]} : vector<16x8x32xf32> to vector<1x8x32xf32>
    %505 = vector.shape_cast %504 : vector<1x8x32xf32> to vector<8x32xf32>
    %506 = vector.broadcast %503 : vector<8x1xf32> to vector<8x32xf32>
    %507 = arith.mulf %506, %505 : vector<8x32xf32>
    %508 = arith.addf %502, %507 : vector<8x32xf32>
    %509 = vector.extract_strided_slice %429 {offsets = [0, 13], sizes = [8, 1], strides = [1, 1]} : vector<8x16xf32> to vector<8x1xf32>
    %510 = vector.extract_strided_slice %395 {offsets = [13, 0, 0], sizes = [1, 8, 32], strides = [1, 1, 1]} : vector<16x8x32xf32> to vector<1x8x32xf32>
    %511 = vector.shape_cast %510 : vector<1x8x32xf32> to vector<8x32xf32>
    %512 = vector.broadcast %509 : vector<8x1xf32> to vector<8x32xf32>
    %513 = arith.mulf %512, %511 : vector<8x32xf32>
    %514 = arith.addf %508, %513 : vector<8x32xf32>
    %515 = vector.extract_strided_slice %429 {offsets = [0, 14], sizes = [8, 1], strides = [1, 1]} : vector<8x16xf32> to vector<8x1xf32>
    %516 = vector.extract_strided_slice %395 {offsets = [14, 0, 0], sizes = [1, 8, 32], strides = [1, 1, 1]} : vector<16x8x32xf32> to vector<1x8x32xf32>
    %517 = vector.shape_cast %516 : vector<1x8x32xf32> to vector<8x32xf32>
    %518 = vector.broadcast %515 : vector<8x1xf32> to vector<8x32xf32>
    %519 = arith.mulf %518, %517 : vector<8x32xf32>
    %520 = arith.addf %514, %519 : vector<8x32xf32>
    %521 = vector.extract_strided_slice %429 {offsets = [0, 15], sizes = [8, 1], strides = [1, 1]} : vector<8x16xf32> to vector<8x1xf32>
    %522 = vector.extract_strided_slice %395 {offsets = [15, 0, 0], sizes = [1, 8, 32], strides = [1, 1, 1]} : vector<16x8x32xf32> to vector<1x8x32xf32>
    %523 = vector.shape_cast %522 : vector<1x8x32xf32> to vector<8x32xf32>
    %524 = vector.broadcast %521 : vector<8x1xf32> to vector<8x32xf32>
    %525 = arith.mulf %524, %523 : vector<8x32xf32>
    %526 = arith.addf %520, %525 : vector<8x32xf32>
    %c0_54 = arith.constant 0 : index
    %c0_55 = arith.constant 0 : index
    %527 = vector.load %arg4[%c0_54, %c0_55] : memref<8x240xf32, #tpu.memory_space<vmem>>, vector<8x240xf32>
    %c0_56 = arith.constant 0 : index
    %c0_57 = arith.constant 0 : index
    %528 = vector.load %arg5[%c0_56, %c0_57] : memref<8x16xf32, #tpu.memory_space<vmem>>, vector<8x16xf32>
    %529 = tpu.concatenate %527, %526, %528 in 1 : vector<8x240xf32>, vector<8x32xf32>, vector<8x16xf32> -> vector<8x288xf32>
    %530 = arith.truncf %529 : vector<8x288xf32> to vector<8x288xbf16>
    %c0_58 = arith.constant 0 : index
    %c0_59 = arith.constant 0 : index
    %531 = vector.load %arg9[%c0_58, %c0_59] : memref<288x64xbf16, #tpu.memory_space<vmem>>, vector<288x64xbf16>
    %cst_60 = arith.constant dense<0.000000e+00> : vector<8x64xf32>
    %532 = tpu.matmul %530, %531, %cst_60 {dimension_numbers = #tpu.dot_dimension_numbers<[1], [0], [0], [1], [0, 0, 1, 1], [], []>} : vector<8x288xbf16>, vector<288x64xbf16>, vector<8x64xf32> -> vector<8x64xf32>
    %c0_61 = arith.constant 0 : index
    %c0_62 = arith.constant 0 : index
    %533 = vector.load %arg10[%c0_61, %c0_62] : memref<1x64xf32, #tpu.memory_space<vmem>>, vector<1x64xf32>
    %534 = vector.broadcast %533 : vector<1x64xf32> to vector<8x64xf32>
    %535 = arith.addf %532, %534 : vector<8x64xf32>
    %536 = vector.extract_strided_slice %535 {offsets = [0, 0], sizes = [8, 48], strides = [1, 1]} : vector<8x64xf32> to vector<8x48xf32>
    %537 = arith.negf %536 : vector<8x48xf32>
    %538 = math.exp %537 : vector<8x48xf32>
    %cst_63 = arith.constant 1.000000e+00 : f32
    %539 = vector.broadcast %cst_63 : f32 to vector<8x48xf32>
    %540 = arith.addf %539, %538 : vector<8x48xf32>
    %541 = arith.divf %539, %540 : vector<8x48xf32>
    %542 = vector.extract_strided_slice %535 {offsets = [0, 48], sizes = [8, 16], strides = [1, 1]} : vector<8x64xf32> to vector<8x16xf32>
    %543 = math.tanh %542 : vector<8x16xf32>
    %544 = vector.extract_strided_slice %541 {offsets = [0, 16], sizes = [8, 16], strides = [1, 1]} : vector<8x48xf32> to vector<8x16xf32>
    %c0_64 = arith.constant 0 : index
    %c0_65 = arith.constant 0 : index
    %545 = vector.load %arg6[%c0_64, %c0_65] : memref<8x16xf32, #tpu.memory_space<vmem>>, vector<8x16xf32>
    %546 = arith.mulf %544, %545 : vector<8x16xf32>
    %547 = vector.extract_strided_slice %541 {offsets = [0, 0], sizes = [8, 16], strides = [1, 1]} : vector<8x48xf32> to vector<8x16xf32>
    %548 = arith.mulf %547, %543 : vector<8x16xf32>
    %549 = arith.addf %546, %548 : vector<8x16xf32>
    %550 = vector.extract_strided_slice %541 {offsets = [0, 32], sizes = [8, 16], strides = [1, 1]} : vector<8x48xf32> to vector<8x16xf32>
    %551 = math.tanh %549 : vector<8x16xf32>
    %552 = arith.mulf %550, %551 : vector<8x16xf32>
    %553 = tpu.concatenate %552, %526 in 1 : vector<8x16xf32>, vector<8x32xf32> -> vector<8x48xf32>
    %554 = arith.truncf %553 : vector<8x48xf32> to vector<8x48xbf16>
    %c0_66 = arith.constant 0 : index
    %c0_67 = arith.constant 0 : index
    %555 = vector.load %arg11[%c0_66, %c0_67] : memref<48x256xbf16, #tpu.memory_space<vmem>>, vector<48x256xbf16>
    %cst_68 = arith.constant dense<0.000000e+00> : vector<8x256xf32>
    %556 = tpu.matmul %554, %555, %cst_68 {dimension_numbers = #tpu.dot_dimension_numbers<[1], [0], [0], [1], [0, 0, 1, 1], [], []>} : vector<8x48xbf16>, vector<48x256xbf16>, vector<8x256xf32> -> vector<8x256xf32>
    %c0_69 = arith.constant 0 : index
    %c0_70 = arith.constant 0 : index
    %557 = vector.load %arg12[%c0_69, %c0_70] : memref<1x256xf32, #tpu.memory_space<vmem>>, vector<1x256xf32>
    %558 = vector.broadcast %557 : vector<1x256xf32> to vector<8x256xf32>
    %559 = arith.addf %556, %558 : vector<8x256xf32>
    %cst_71 = arith.constant dense<0xFF800000> : vector<8xf32>
    %560 = vector.multi_reduction <maximumf>, %559, %cst_71 [1] : vector<8x256xf32> to vector<8xf32>
    %cst_72 = arith.constant 0xFF800000 : f32
    %561 = vector.broadcast %cst_72 : f32 to vector<8xf32>
    %562 = arith.maximumf %561, %560 : vector<8xf32>
    %563 = vector.shape_cast %562 : vector<8xf32> to vector<8x1xf32>
    %564 = vector.broadcast %563 : vector<8x1xf32> to vector<8x256xf32>
    %565 = arith.subf %559, %564 : vector<8x256xf32>
    %566 = math.exp %565 : vector<8x256xf32>
    %cst_73 = arith.constant dense<0.000000e+00> : vector<8xf32>
    %567 = vector.multi_reduction <add>, %566, %cst_73 [1] : vector<8x256xf32> to vector<8xf32>
    %568 = vector.shape_cast %567 : vector<8xf32> to vector<8x1xf32>
    %569 = math.log %568 : vector<8x1xf32>
    %570 = vector.broadcast %569 : vector<8x1xf32> to vector<8x256xf32>
    %571 = arith.subf %565, %570 : vector<8x256xf32>
    %c0_74 = arith.constant 0 : index
    %c0_75 = arith.constant 0 : index
    %572 = vector.load %arg13[%c0_74, %c0_75] : memref<1x48xf32, #tpu.memory_space<vmem>>, vector<1x48xf32>
    %573 = vector.broadcast %572 : vector<1x48xf32> to vector<8x48xf32>
    %574 = arith.mulf %553, %573 : vector<8x48xf32>
    %cst_76 = arith.constant dense<0.000000e+00> : vector<8xf32>
    %575 = vector.multi_reduction <add>, %574, %cst_76 [1] : vector<8x48xf32> to vector<8xf32>
    %576 = vector.shape_cast %575 : vector<8xf32> to vector<8x1xf32>
    %c0_77 = arith.constant 0 : index
    %c0_78 = arith.constant 0 : index
    %577 = vector.load %arg14[%c0_77, %c0_78] : memref<1x1xf32, #tpu.memory_space<vmem>>, vector<1x1xf32>
    %578 = vector.broadcast %577 : vector<1x1xf32> to vector<8x1xf32>
    %579 = arith.addf %576, %578 : vector<8x1xf32>
    %580 = arith.negf %579 : vector<8x1xf32>
    %581 = math.exp %580 : vector<8x1xf32>
    %cst_79 = arith.constant 1.000000e+00 : f32
    %582 = vector.broadcast %cst_79 : f32 to vector<8x1xf32>
    %583 = arith.addf %582, %581 : vector<8x1xf32>
    %584 = arith.divf %582, %583 : vector<8x1xf32>
    %585 = vector.extract_strided_slice %415 {offsets = [0, 0, 0], sizes = [1, 8, 16], strides = [1, 1, 1]} : vector<16x8x16xf32> to vector<1x8x16xf32>
    %586 = vector.shape_cast %585 : vector<1x8x16xf32> to vector<8x16xf32>
    %587 = vector.extract_strided_slice %415 {offsets = [1, 0, 0], sizes = [1, 8, 16], strides = [1, 1, 1]} : vector<16x8x16xf32> to vector<1x8x16xf32>
    %588 = vector.shape_cast %587 : vector<1x8x16xf32> to vector<8x16xf32>
    %589 = vector.extract_strided_slice %415 {offsets = [2, 0, 0], sizes = [1, 8, 16], strides = [1, 1, 1]} : vector<16x8x16xf32> to vector<1x8x16xf32>
    %590 = vector.shape_cast %589 : vector<1x8x16xf32> to vector<8x16xf32>
    %591 = vector.extract_strided_slice %415 {offsets = [3, 0, 0], sizes = [1, 8, 16], strides = [1, 1, 1]} : vector<16x8x16xf32> to vector<1x8x16xf32>
    %592 = vector.shape_cast %591 : vector<1x8x16xf32> to vector<8x16xf32>
    %593 = vector.extract_strided_slice %415 {offsets = [4, 0, 0], sizes = [1, 8, 16], strides = [1, 1, 1]} : vector<16x8x16xf32> to vector<1x8x16xf32>
    %594 = vector.shape_cast %593 : vector<1x8x16xf32> to vector<8x16xf32>
    %595 = vector.extract_strided_slice %415 {offsets = [5, 0, 0], sizes = [1, 8, 16], strides = [1, 1, 1]} : vector<16x8x16xf32> to vector<1x8x16xf32>
    %596 = vector.shape_cast %595 : vector<1x8x16xf32> to vector<8x16xf32>
    %597 = vector.extract_strided_slice %415 {offsets = [6, 0, 0], sizes = [1, 8, 16], strides = [1, 1, 1]} : vector<16x8x16xf32> to vector<1x8x16xf32>
    %598 = vector.shape_cast %597 : vector<1x8x16xf32> to vector<8x16xf32>
    %599 = vector.extract_strided_slice %415 {offsets = [7, 0, 0], sizes = [1, 8, 16], strides = [1, 1, 1]} : vector<16x8x16xf32> to vector<1x8x16xf32>
    %600 = vector.shape_cast %599 : vector<1x8x16xf32> to vector<8x16xf32>
    %601 = vector.extract_strided_slice %415 {offsets = [8, 0, 0], sizes = [1, 8, 16], strides = [1, 1, 1]} : vector<16x8x16xf32> to vector<1x8x16xf32>
    %602 = vector.shape_cast %601 : vector<1x8x16xf32> to vector<8x16xf32>
    %603 = vector.extract_strided_slice %415 {offsets = [9, 0, 0], sizes = [1, 8, 16], strides = [1, 1, 1]} : vector<16x8x16xf32> to vector<1x8x16xf32>
    %604 = vector.shape_cast %603 : vector<1x8x16xf32> to vector<8x16xf32>
    %605 = vector.extract_strided_slice %415 {offsets = [10, 0, 0], sizes = [1, 8, 16], strides = [1, 1, 1]} : vector<16x8x16xf32> to vector<1x8x16xf32>
    %606 = vector.shape_cast %605 : vector<1x8x16xf32> to vector<8x16xf32>
    %607 = vector.extract_strided_slice %415 {offsets = [11, 0, 0], sizes = [1, 8, 16], strides = [1, 1, 1]} : vector<16x8x16xf32> to vector<1x8x16xf32>
    %608 = vector.shape_cast %607 : vector<1x8x16xf32> to vector<8x16xf32>
    %609 = vector.extract_strided_slice %415 {offsets = [12, 0, 0], sizes = [1, 8, 16], strides = [1, 1, 1]} : vector<16x8x16xf32> to vector<1x8x16xf32>
    %610 = vector.shape_cast %609 : vector<1x8x16xf32> to vector<8x16xf32>
    %611 = vector.extract_strided_slice %415 {offsets = [13, 0, 0], sizes = [1, 8, 16], strides = [1, 1, 1]} : vector<16x8x16xf32> to vector<1x8x16xf32>
    %612 = vector.shape_cast %611 : vector<1x8x16xf32> to vector<8x16xf32>
    %613 = vector.extract_strided_slice %415 {offsets = [14, 0, 0], sizes = [1, 8, 16], strides = [1, 1, 1]} : vector<16x8x16xf32> to vector<1x8x16xf32>
    %614 = vector.shape_cast %613 : vector<1x8x16xf32> to vector<8x16xf32>
    %615 = vector.extract_strided_slice %415 {offsets = [15, 0, 0], sizes = [1, 8, 16], strides = [1, 1, 1]} : vector<16x8x16xf32> to vector<1x8x16xf32>
    %616 = vector.shape_cast %615 : vector<1x8x16xf32> to vector<8x16xf32>
    %617 = tpu.concatenate %586, %588, %590, %592, %594, %596, %598, %600, %602, %604, %606, %608, %610, %612, %614, %616 in 1 : vector<8x16xf32>, vector<8x16xf32>, vector<8x16xf32>, vector<8x16xf32>, vector<8x16xf32>, vector<8x16xf32>, vector<8x16xf32>, vector<8x16xf32>, vector<8x16xf32>, vector<8x16xf32>, vector<8x16xf32>, vector<8x16xf32>, vector<8x16xf32>, vector<8x16xf32>, vector<8x16xf32>, vector<8x16xf32> -> vector<8x256xf32>
    %cst_80 = arith.constant dense<0xFF800000> : vector<8xf32>
    %618 = vector.multi_reduction <maximumf>, %617, %cst_80 [1] : vector<8x256xf32> to vector<8xf32>
    %cst_81 = arith.constant 0xFF800000 : f32
    %619 = vector.broadcast %cst_81 : f32 to vector<8xf32>
    %620 = arith.maximumf %619, %618 : vector<8xf32>
    %621 = vector.shape_cast %620 : vector<8xf32> to vector<8x1xf32>
    %622 = vector.broadcast %621 : vector<8x1xf32> to vector<8x256xf32>
    %623 = arith.subf %617, %622 : vector<8x256xf32>
    %624 = math.exp %623 : vector<8x256xf32>
    %cst_82 = arith.constant dense<0.000000e+00> : vector<8xf32>
    %625 = vector.multi_reduction <add>, %624, %cst_82 [1] : vector<8x256xf32> to vector<8xf32>
    %626 = vector.shape_cast %625 : vector<8xf32> to vector<8x1xf32>
    %627 = vector.broadcast %626 : vector<8x1xf32> to vector<8x256xf32>
    %628 = arith.divf %624, %627 : vector<8x256xf32>
    %629 = vector.broadcast %584 : vector<8x1xf32> to vector<8x256xf32>
    %630 = arith.mulf %629, %628 : vector<8x256xf32>
    %cst_83 = arith.constant 1.000000e+00 : f32
    %631 = vector.broadcast %cst_83 : f32 to vector<8x1xf32>
    %632 = arith.subf %631, %584 : vector<8x1xf32>
    %633 = vector.broadcast %632 : vector<8x1xf32> to vector<8x256xf32>
    %634 = arith.mulf %633, %571 : vector<8x256xf32>
    %635 = arith.addf %630, %634 : vector<8x256xf32>
    %c0_84 = arith.constant 0 : index
    %c0_85 = arith.constant 0 : index
    %636 = vector.load %arg15[%c0_84, %c0_85] : memref<8x256xf32, #tpu.memory_space<vmem>>, vector<8x256xf32>
    tpu.vector_store %arg15[%c0_84, %c0_85], %635 {strides = array<i32>} : memref<8x256xf32, #tpu.memory_space<vmem>>, vector<8x256xf32>,
    %c0_86 = arith.constant 0 : index
    %c0_87 = arith.constant 0 : index
    %637 = vector.load %arg16[%c0_86, %c0_87] : memref<8x16xf32, #tpu.memory_space<vmem>>, vector<8x16xf32>
    tpu.vector_store %arg16[%c0_86, %c0_87], %552 {strides = array<i32>} : memref<8x16xf32, #tpu.memory_space<vmem>>, vector<8x16xf32>,
    %c0_88 = arith.constant 0 : index
    %c0_89 = arith.constant 0 : index
    %638 = vector.load %arg17[%c0_88, %c0_89] : memref<8x16xf32, #tpu.memory_space<vmem>>, vector<8x16xf32>
    tpu.vector_store %arg17[%c0_88, %c0_89], %549 {strides = array<i32>} : memref<8x16xf32, #tpu.memory_space<vmem>>, vector<8x16xf32>,
    return
  }
}

</mosaic_0001>

<llo_original>
// kernel: summarizer_forward.1
$region0: #{summarizer_forward.1}
  #allocation0 [shape = 'u32[]', space=smem, size = 0x4, offset = 0x4, fixed_abs, tag = 'smem constant byte address 0x4 - core index']
  #allocation1 [shape = 'u32[144,128]{1,0:T(1,128)}', space=vmem, size = 0x12000, scoped, tag = 'internal scratch']
  #allocation2 [shape = 'f32[1,1]{1,0:T(1,128)S(1)}', space=vmem, size = 0x200, scoped, tag = 'scoped memory for summarizer_forward.1']
  %s0 = inlined_call_operand.vmem [shape: bf16[128,64], index: 0, kind: input, shape index: {}]
  %s1 = inlined_call_operand.vmem [shape: bf16[64,128], index: 1, kind: input, shape index: {}]
  %s2 = inlined_call_operand.vmem [shape: f32[1,128], index: 2, kind: input, shape index: {}]
  %s3 = inlined_call_operand.vmem [shape: bf16[32,128], index: 3, kind: input, shape index: {}]
  %s4 = inlined_call_operand.vmem [shape: f32[8,240], index: 4, kind: input, shape index: {}]
  %s5 = inlined_call_operand.vmem [shape: f32[8,16], index: 5, kind: input, shape index: {}]
  %s6 = inlined_call_operand.vmem [shape: f32[8,16], index: 6, kind: input, shape index: {}]
  %s7 = inlined_call_operand.vmem [shape: bf16[32,32], index: 7, kind: input, shape index: {}]
  %s8 = inlined_call_operand.vmem [shape: f32[1,32], index: 8, kind: input, shape index: {}]
  %s9 = inlined_call_operand.vmem [shape: bf16[288,64], index: 9, kind: input, shape index: {}]
  %s10 = inlined_call_operand.vmem [shape: f32[1,64], index: 10, kind: input, shape index: {}]
  %s11 = inlined_call_operand.vmem [shape: bf16[48,256], index: 11, kind: input, shape index: {}]
  %s12 = inlined_call_operand.vmem [shape: f32[1,256], index: 12, kind: input, shape index: {}]
  %s13 = inlined_call_operand.vmem [shape: f32[1,48], index: 13, kind: input, shape index: {}]
  %s14 = inlined_call_operand.<no memory space> [shape: f32[1,1], index: 14, kind: input, shape index: {}]
  %s15 = inlined_call_operand.hbm [shape: f32[8,256], index: 15, kind: output, shape index: {0}]
  %s16 = inlined_call_operand.hbm [shape: f32[8,16], index: 16, kind: output, shape index: {1}]
  %s17 = inlined_call_operand.hbm [shape: f32[8,16], index: 17, kind: output, shape index: {2}]
  %18 = xla_tuple %s15, %s16, %s17
  %s19 = sld [smem:[#allocation0]]
  $region86: #{summarizer_forward.1} parent=0
    _
  %s21 = ssub.s32 1, %s19
  %s22 = scalar_select 0, %s21, %s19
  %v23 = vstv %s14
  %24 = vst [vmem:[#allocation2] sm:$0x1] %v23
  $region1: #{summarizer_forward.1} parent=0
    #allocation3 [shape = 'u8[8192]{0}', space=vmem, size = 0x2000, scoped, tag = 'output window, operand 0, single buffered']
    #allocation4 [shape = 's32[1]{0}', space=sflag, size = 0x4, scoped, tag = 'scoped memory for summarizer_forward.1']
    #allocation5 [shape = 'u8[4096]{0}', space=vmem, size = 0x1000, scoped, tag = 'output window, operand 1, single buffered']
    #allocation6 [shape = 's32[1]{0}', space=sflag, size = 0x4, scoped, tag = 'scoped memory for summarizer_forward.1']
    #allocation7 [shape = 'u8[4096]{0}', space=vmem, size = 0x1000, scoped, tag = 'output window, operand 2, single buffered']
    %25 = vsyncpa [#allocation4], 0
    %26 = vsyncpa [#allocation6], 0
    // Predicated region
    $region2: #{summarizer_forward.1} parent=1 // pred_check
      _
    $region3: #{summarizer_forward.1} parent=1 // pred_check_branch
      %28 = sbr.rel (0) target = $region5
    $region4: #{summarizer_forward.1} parent=1 // pred_region
      _
    $region5: #{summarizer_forward.1} parent=1 // pred_fallthru
      _
    // Predicated region
    $region6: #{summarizer_forward.1} parent=1 // pred_check
      _
    $region7: #{summarizer_forward.1} parent=1 // pred_check_branch
      %30 = sbr.rel (0) target = $region9
    $region8: #{summarizer_forward.1} parent=1 // pred_region
      _
    $region9: #{summarizer_forward.1} parent=1 // pred_fallthru
      _
    // Predicated region
    $region10: #{summarizer_forward.1} parent=1 // pred_check
      _
    $region11: #{summarizer_forward.1} parent=1 // pred_check_branch
      %32 = sbr.rel (0) target = $region13
    $region12: #{summarizer_forward.1} parent=1 // pred_region
      _
    $region13: #{summarizer_forward.1} parent=1 // pred_fallthru
      _
    // Predicated region
    $region14: #{summarizer_forward.1} parent=1 // pred_check
      _
    $region15: #{summarizer_forward.1} parent=1 // pred_check_branch
      %34 = sbr.rel (0) target = $region17
    $region16: #{summarizer_forward.1} parent=1 // pred_region
      _
    $region17: #{summarizer_forward.1} parent=1 // pred_fallthru
      _
    // Predicated region
    $region18: #{summarizer_forward.1} parent=1 // pred_check
      _
    $region19: #{summarizer_forward.1} parent=1 // pred_check_branch
      %36 = sbr.rel (0) target = $region21
    $region20: #{summarizer_forward.1} parent=1 // pred_region
      _
    $region21: #{summarizer_forward.1} parent=1 // pred_fallthru
      _
    // Predicated region
    $region22: #{summarizer_forward.1} parent=1 // pred_check
      _
    $region23: #{summarizer_forward.1} parent=1 // pred_check_branch
      %38 = sbr.rel (0) target = $region25
    $region24: #{summarizer_forward.1} parent=1 // pred_region
      _
    $region25: #{summarizer_forward.1} parent=1 // pred_fallthru
      _
    // Predicated region
    $region26: #{summarizer_forward.1} parent=1 // pred_check
      _
    $region27: #{summarizer_forward.1} parent=1 // pred_check_branch
      %40 = sbr.rel (0) target = $region29
    $region28: #{summarizer_forward.1} parent=1 // pred_region
      _
    $region29: #{summarizer_forward.1} parent=1 // pred_fallthru
      _
    // Predicated region
    $region30: #{summarizer_forward.1} parent=1 // pred_check
      _
    $region31: #{summarizer_forward.1} parent=1 // pred_check_branch
      %42 = sbr.rel (0) target = $region33
    $region32: #{summarizer_forward.1} parent=1 // pred_region
      _
    $region33: #{summarizer_forward.1} parent=1 // pred_fallthru
      _
    // Predicated region
    $region34: #{summarizer_forward.1} parent=1 // pred_check
      _
    $region35: #{summarizer_forward.1} parent=1 // pred_check_branch
      %44 = sbr.rel (0) target = $region37
    $region36: #{summarizer_forward.1} parent=1 // pred_region
      _
    $region37: #{summarizer_forward.1} parent=1 // pred_fallthru
      _
    // Predicated region
    $region38: #{summarizer_forward.1} parent=1 // pred_check
      _
    $region39: #{summarizer_forward.1} parent=1 // pred_check_branch
      %46 = sbr.rel (0) target = $region41
    $region40: #{summarizer_forward.1} parent=1 // pred_region
      _
    $region41: #{summarizer_forward.1} parent=1 // pred_fallthru
      _
    // Predicated region
    $region42: #{summarizer_forward.1} parent=1 // pred_check
      _
    $region43: #{summarizer_forward.1} parent=1 // pred_check_branch
      %48 = sbr.rel (0) target = $region45
    $region44: #{summarizer_forward.1} parent=1 // pred_region
      _
    $region45: #{summarizer_forward.1} parent=1 // pred_fallthru
      _
    // Predicated region
    $region46: #{summarizer_forward.1} parent=1 // pred_check
      _
    $region47: #{summarizer_forward.1} parent=1 // pred_check_branch
      %50 = sbr.rel (0) target = $region49
    $region48: #{summarizer_forward.1} parent=1 // pred_region
      _
    $region49: #{summarizer_forward.1} parent=1 // pred_fallthru
      _
    // Predicated region
    $region50: #{summarizer_forward.1} parent=1 // pred_check
      _
    $region51: #{summarizer_forward.1} parent=1 // pred_check_branch
      %52 = sbr.rel (0) target = $region53
    $region52: #{summarizer_forward.1} parent=1 // pred_region
      _
    $region53: #{summarizer_forward.1} parent=1 // pred_fallthru
      _
    // Predicated region
    $region54: #{summarizer_forward.1} parent=1 // pred_check
      _
    $region55: #{summarizer_forward.1} parent=1 // pred_check_branch
      %54 = sbr.rel (0) target = $region57
    $region56: #{summarizer_forward.1} parent=1 // pred_region
      _
    $region57: #{summarizer_forward.1} parent=1 // pred_fallthru
      _
    // Predicated region
    $region58: #{summarizer_forward.1} parent=1 // pred_check
      _
    $region59: #{summarizer_forward.1} parent=1 // pred_check_branch
      %56 = sbr.rel (0) target = $region61
    $region60: #{summarizer_forward.1} parent=1 // pred_region
      _
    $region61: #{summarizer_forward.1} parent=1 // pred_fallthru
      _
    %v58 = vld [vmem:[%s0] sm:$0xf]
    %v59 = vld [vmem:[%s0 + $0x4] sm:$0xf]
    %v60 = vld [vmem:[%s0 + $0x8] sm:$0xf]
    %v61 = vld [vmem:[%s0 + $0xc] sm:$0xf]
    %v62 = vld [vmem:[%s0 + $0x10] sm:$0xf]
    %v63 = vld [vmem:[%s0 + $0x14] sm:$0xf]
    %v64 = vld [vmem:[%s0 + $0x18] sm:$0xf]
    %v65 = vld [vmem:[%s0 + $0x1c] sm:$0xf]
    %v66 = vld [vmem:[%s0 + $0x20] sm:$0xf]
    %v67 = vld [vmem:[%s0 + $0x24] sm:$0xf]
    %v68 = vld [vmem:[%s0 + $0x28] sm:$0xf]
    %v69 = vld [vmem:[%s0 + $0x2c] sm:$0xf]
    %v70 = vld [vmem:[%s0 + $0x30] sm:$0xf]
    %v71 = vld [vmem:[%s0 + $0x34] sm:$0xf]
    %v72 = vld [vmem:[%s0 + $0x38] sm:$0xf]
    %v73 = vld [vmem:[%s0 + $0x3c] sm:$0xf]
    %v74 = vld [vmem:[%s1] sm:$0xf]
    %v75 = vld [vmem:[%s1 + $0x4] sm:$0xf]
    %v76 = vld [vmem:[%s1 + $0x8] sm:$0xf]
    %v77 = vld [vmem:[%s1 + $0xc] sm:$0xf]
    %v78 = vld [vmem:[%s1 + $0x10] sm:$0xf]
    %v79 = vld [vmem:[%s1 + $0x14] sm:$0xf]
    %v80 = vld [vmem:[%s1 + $0x18] sm:$0xf]
    %v81 = vld [vmem:[%s1 + $0x1c] sm:$0xf]
    %v82 = vld [vmem:[%s2] sm:$0x1]
    %v84 = vlaneseq
    %v85 = vshrl.u32 %v84, 7
    %v86 = vsub.s32 0, %v85
    %v87 = vrot.slane %v82, %v86
    %v105 = vunpack.c.l.b16 %v58
    %v106 = vunpack.c.l.b16 %v59
    %v107 = vunpack.c.l.b16 %v60
    %v108 = vunpack.c.l.b16 %v61
    %v109 = vunpack.c.l.b16 %v62
    %v110 = vunpack.c.l.b16 %v63
    %v111 = vunpack.c.l.b16 %v64
    %v112 = vunpack.c.l.b16 %v65
    %v113 = vunpack.c.l.b16 %v66
    %v114 = vunpack.c.l.b16 %v67
    %v115 = vunpack.c.l.b16 %v68
    %v116 = vunpack.c.l.b16 %v69
    %v117 = vunpack.c.l.b16 %v70
    %v118 = vunpack.c.l.b16 %v71
    %v119 = vunpack.c.l.b16 %v72
    %v120 = vunpack.c.l.b16 %v73
    %v121 = vpack.c.b16 %v106, %v105
    %v122 = vpack.c.b16 %v108, %v107
    %v123 = vpack.c.b16 %v110, %v109
    %v124 = vpack.c.b16 %v112, %v111
    %v125 = vpack.c.b16 %v114, %v113
    %v126 = vpack.c.b16 %v116, %v115
    %v127 = vpack.c.b16 %v118, %v117
    %v128 = vpack.c.b16 %v120, %v119
    %v137 = vunpack.c.l.b16 %v74
    %v138 = vunpack.c.l.b16 %v75
    %v139 = vunpack.c.l.b16 %v76
    %v140 = vunpack.c.l.b16 %v77
    %v141 = vunpack.c.l.b16 %v78
    %v142 = vunpack.c.l.b16 %v79
    %v143 = vunpack.c.l.b16 %v80
    %v144 = vunpack.c.l.b16 %v81
    %v145 = vpack.c.b16 %v138, %v137
    %v146 = vpack.c.b16 %v140, %v139
    %v147 = vpack.c.b16 %v142, %v141
    %v148 = vpack.c.b16 %v144, %v143
    %vm153 = vcmask 523264
    %v155 = vsel %vm153, %v121, 0
    %v158 = vsel %vm153, %v122, 0
    %v161 = vsel %vm153, %v123, 0
    %v164 = vsel %vm153, %v124, 0
    %v167 = vsel %vm153, %v125, 0
    %v170 = vsel %vm153, %v126, 0
    %v173 = vsel %vm153, %v127, 0
    %v176 = vsel %vm153, %v128, 0
    %178 = vmatprep.subr.bf16.mxu0 0
    %179 = vmatpush1.bf16.msra.mxu0 0
    %180 = vmatprep.subr.bf16.mxu0 0
    %181 = vmatpush1.bf16.msra.mxu0 0
    %182 = vmatprep.subr.bf16.mxu0 0
    %183 = vmatpush1.bf16.msra.mxu0 0
    %184 = vmatprep.subr.bf16.mxu0 0
    %185 = vmatpush1.bf16.msra.mxu0 0
    %186 = vmatprep.subr.bf16.mxu0 0
    %187 = vmatpush1.bf16.msra.mxu0 %v148
    %188 = vmatprep.subr.bf16.mxu0 0
    %189 = vmatpush1.bf16.msra.mxu0 %v147
    %190 = vmatprep.subr.bf16.mxu0 0
    %191 = vmatpush1.bf16.msra.mxu0 %v146
    %192 = vmatprep.subr.bf16.mxu0 0
    %193 = vmatpush1.bf16.msra.mxu0 %v145
    %194 = vmatprep.subr.bf16.mxu0 0
    %195 = vmatpush2.bf16.msra.mxu0 0
    %196 = vmatprep.subr.bf16.mxu0 0
    %197 = vmatpush2.bf16.msra.mxu0 0
    %198 = vmatprep.subr.bf16.mxu0 0
    %199 = vmatpush2.bf16.msra.mxu0 0
    %200 = vmatprep.subr.bf16.mxu0 0
    %201 = vmatpush2.bf16.msra.mxu0 0
    %202 = vmatprep.subr.bf16.mxu0 0
    %203 = vmatpush2.bf16.msra.mxu0 0
    %204 = vmatprep.subr.bf16.mxu0 0
    %205 = vmatpush2.bf16.msra.mxu0 0
    %206 = vmatprep.subr.bf16.mxu0 0
    %207 = vmatpush2.bf16.msra.mxu0 0
    %208 = vmatprep.subr.bf16.mxu0 0
    %209 = vmatpush2.bf16.msra.mxu0 0
    %210 = vmatprep.mubr.bf16.mxu0 0
    %211 = vmatmul.mubr.bf16.gmra.mxu0 %v155
    %v212 = vpop.f32.mrf.mxu0
    %v213 = vadd.f32 %v87, %v212
    %v214 = vpop.f32.mrf.mxu0
    %v215 = vpop.f32.mrf.mxu0
    %v216 = vadd.f32 %v87, %v215
    %v217 = vpop.f32.mrf.mxu0
    %218 = vmatprep.mubr.bf16.mxu0 0
    %219 = vmatmul.mubr.bf16.gmra.mxu0 %v158
    %v220 = vpop.f32.mrf.mxu0
    %v221 = vadd.f32 %v87, %v220
    %v222 = vpop.f32.mrf.mxu0
    %v223 = vpop.f32.mrf.mxu0
    %v224 = vadd.f32 %v87, %v223
    %v225 = vpop.f32.mrf.mxu0
    %226 = vmatprep.mubr.bf16.mxu0 0
    %227 = vmatmul.mubr.bf16.gmra.mxu0 %v161
    %v228 = vpop.f32.mrf.mxu0
    %v229 = vadd.f32 %v87, %v228
    %v230 = vpop.f32.mrf.mxu0
    %v231 = vpop.f32.mrf.mxu0
    %v232 = vadd.f32 %v87, %v231
    %v233 = vpop.f32.mrf.mxu0
    %234 = vmatprep.mubr.bf16.mxu0 0
    %235 = vmatmul.mubr.bf16.gmra.mxu0 %v164
    %v236 = vpop.f32.mrf.mxu0
    %v237 = vadd.f32 %v87, %v236
    %v238 = vpop.f32.mrf.mxu0
    %v239 = vpop.f32.mrf.mxu0
    %v240 = vadd.f32 %v87, %v239
    %v241 = vpop.f32.mrf.mxu0
    %242 = vmatprep.mubr.bf16.mxu0 0
    %243 = vmatmul.mubr.bf16.gmra.mxu0 %v167
    %v244 = vpop.f32.mrf.mxu0
    %v245 = vadd.f32 %v87, %v244
    %v246 = vpop.f32.mrf.mxu0
    %v247 = vpop.f32.mrf.mxu0
    %v248 = vadd.f32 %v87, %v247
    %v249 = vpop.f32.mrf.mxu0
    %250 = vmatprep.mubr.bf16.mxu0 0
    %251 = vmatmul.mubr.bf16.gmra.mxu0 %v170
    %v252 = vpop.f32.mrf.mxu0
    %v253 = vadd.f32 %v87, %v252
    %v254 = vpop.f32.mrf.mxu0
    %v255 = vpop.f32.mrf.mxu0
    %v256 = vadd.f32 %v87, %v255
    %v257 = vpop.f32.mrf.mxu0
    %258 = vmatprep.mubr.bf16.mxu0 0
    %259 = vmatmul.mubr.bf16.gmra.mxu0 %v173
    %v260 = vpop.f32.mrf.mxu0
    %v261 = vadd.f32 %v87, %v260
    %v262 = vpop.f32.mrf.mxu0
    %v263 = vpop.f32.mrf.mxu0
    %v264 = vadd.f32 %v87, %v263
    %v265 = vpop.f32.mrf.mxu0
    %266 = vmatprep.mubr.bf16.mxu0 0
    %267 = vmatmul.mubr.bf16.gmra.mxu0 %v176
    %v268 = vpop.f32.mrf.mxu0
    %v269 = vadd.f32 %v87, %v268
    %v270 = vpop.f32.mrf.mxu0
    %v271 = vpop.f32.mrf.mxu0
    %v272 = vadd.f32 %v87, %v271
    %v273 = vpop.f32.mrf.mxu0
    %274 = vdwg.mxu0
    %v275 = vld [vmem:[%s3] sm:$0xf]
    %v276 = vld [vmem:[%s3 + $0x4] sm:$0xf]
    %v277 = vld [vmem:[%s3 + $0x8] sm:$0xf]
    %v278 = vld [vmem:[%s3 + $0xc] sm:$0xf]
    %v283 = vunpack.c.l.b16 %v275
    %v284 = vunpack.c.l.b16 %v276
    %v285 = vunpack.c.l.b16 %v277
    %v286 = vunpack.c.l.b16 %v278
    %v287 = vpack.c.b16 %v284, %v283
    %v288 = vpack.c.b16 %v286, %v285
    %vm291 = vcmask 261120
    %v293 = vsel %vm291, 0, 0
    %295 = vmatprep.subr.bf16.mxu0 0
    %296 = vmatpush1.bf16.msra.mxu0 0
    %297 = vmatprep.subr.bf16.mxu0 0
    %298 = vmatpush1.bf16.msra.mxu0 0
    %299 = vmatprep.subr.bf16.mxu0 0
    %300 = vmatpush1.bf16.msra.mxu0 0
    %301 = vmatprep.subr.bf16.mxu0 0
    %302 = vmatpush1.bf16.msra.mxu0 0
    %303 = vmatprep.subr.bf16.mxu0 0
    %304 = vmatpush1.bf16.msra.mxu0 0
    %305 = vmatprep.subr.bf16.mxu0 0
    %306 = vmatpush1.bf16.msra.mxu0 0
    %307 = vmatprep.subr.bf16.mxu0 0
    %308 = vmatpush1.bf16.msra.mxu0 %v288
    %309 = vmatprep.subr.bf16.mxu0 0
    %310 = vmatpush1.bf16.msra.mxu0 %v287
    %311 = vmatprep.subr.bf16.mxu0 0
    %312 = vmatpush2.bf16.msra.mxu0 0
    %313 = vmatprep.subr.bf16.mxu0 0
    %314 = vmatpush2.bf16.msra.mxu0 0
    %315 = vmatprep.subr.bf16.mxu0 0
    %316 = vmatpush2.bf16.msra.mxu0 0
    %317 = vmatprep.subr.bf16.mxu0 0
    %318 = vmatpush2.bf16.msra.mxu0 0
    %319 = vmatprep.subr.bf16.mxu0 0
    %320 = vmatpush2.bf16.msra.mxu0 0
    %321 = vmatprep.subr.bf16.mxu0 0
    %322 = vmatpush2.bf16.msra.mxu0 0
    %323 = vmatprep.subr.bf16.mxu0 0
    %324 = vmatpush2.bf16.msra.mxu0 0
    %325 = vmatprep.subr.bf16.mxu0 0
    %326 = vmatpush2.bf16.msra.mxu0 0
    %327 = vmatprep.mubr.bf16.mxu0 0
    %328 = vmatmul.mubr.bf16.gmra.mxu0 %v293
    %v329 = vpop.f32.mrf.mxu0
    %v330 = vadd.f32 0.0, %v329
    %v331 = vpop.f32.mrf.mxu0
    %v332 = vpop.f32.mrf.mxu0
    %v333 = vpop.f32.mrf.mxu0
    %334 = vdwg.mxu0
    %v335 = vadd.f32 %v213, %v330
    %v336 = vxor.u32 %v335, 2147483648
    %v337 = vmul.f32 %v336, 1.442695
    %v338 = vpow.pop %v337
    %v339 = vadd.f32 %v338, 1.0
    %v340 = vrcp.pop %v339
    %v341 = vmul.f32 1.0, %v340
    %v342 = vtanh.pop %v335
    %v343 = vmul.f32 %v341, 0.0
    %345 = vrot.lane.b32.xlu0 %v342, 32
    %v346 = vpop.permute.xlu0 %345
    %v348 = vmul.f32 %v341, %v346
    %350 = vrot.lane.b32.xlu0 %v348, 32
    %v351 = vpop.permute.xlu0 %350
    %v353 = vadd.f32 %v343, %v351
    %v354 = vtanh.pop %v353
    %356 = vrot.lane.b32.xlu0 %v354, 32
    %v357 = vpop.permute.xlu0 %356
    %v359 = vmul.f32 %v341, %v357
    %v360 = vpack.c.bf16 %v359, %v359
    %362 = vrot.lane.b32.xlu0 %v360, 64
    %v363 = vpop.permute.xlu0 %362
    %v365 = vsel %vm291, %v363, 0
    %367 = vmatprep.subr.bf16.mxu0 0
    %368 = vmatpush1.bf16.msra.mxu0 0
    %369 = vmatprep.subr.bf16.mxu0 0
    %370 = vmatpush1.bf16.msra.mxu0 0
    %371 = vmatprep.subr.bf16.mxu0 0
    %372 = vmatpush1.bf16.msra.mxu0 0
    %373 = vmatprep.subr.bf16.mxu0 0
    %374 = vmatpush1.bf16.msra.mxu0 0
    %375 = vmatprep.subr.bf16.mxu0 0
    %376 = vmatpush1.bf16.msra.mxu0 0
    %377 = vmatprep.subr.bf16.mxu0 0
    %378 = vmatpush1.bf16.msra.mxu0 0
    %379 = vmatprep.subr.bf16.mxu0 0
    %380 = vmatpush1.bf16.msra.mxu0 %v288
    %381 = vmatprep.subr.bf16.mxu0 0
    %382 = vmatpush1.bf16.msra.mxu0 %v287
    %383 = vmatprep.subr.bf16.mxu0 0
    %384 = vmatpush2.bf16.msra.mxu0 0
    %385 = vmatprep.subr.bf16.mxu0 0
    %386 = vmatpush2.bf16.msra.mxu0 0
    %387 = vmatprep.subr.bf16.mxu0 0
    %388 = vmatpush2.bf16.msra.mxu0 0
    %389 = vmatprep.subr.bf16.mxu0 0
    %390 = vmatpush2.bf16.msra.mxu0 0
    %391 = vmatprep.subr.bf16.mxu0 0
    %392 = vmatpush2.bf16.msra.mxu0 0
    %393 = vmatprep.subr.bf16.mxu0 0
    %394 = vmatpush2.bf16.msra.mxu0 0
    %395 = vmatprep.subr.bf16.mxu0 0
    %396 = vmatpush2.bf16.msra.mxu0 0
    %397 = vmatprep.subr.bf16.mxu0 0
    %398 = vmatpush2.bf16.msra.mxu0 0
    %399 = vmatprep.mubr.bf16.mxu0 0
    %400 = vmatmul.mubr.bf16.gmra.mxu0 %v365
    %v401 = vpop.f32.mrf.mxu0
    %v402 = vadd.f32 0.0, %v401
    %v403 = vpop.f32.mrf.mxu0
    %v404 = vpop.f32.mrf.mxu0
    %v405 = vpop.f32.mrf.mxu0
    %406 = vdwg.mxu0
    %v407 = vadd.f32 %v216, %v402
    %v408 = vxor.u32 %v407, 2147483648
    %v409 = vmul.f32 %v408, 1.442695
    %v410 = vpow.pop %v409
    %v411 = vadd.f32 %v410, 1.0
    %v412 = vrcp.pop %v411
    %v413 = vmul.f32 1.0, %v412
    %v414 = vtanh.pop %v407
    %v415 = vmul.f32 %v413, %v353
    %417 = vrot.lane.b32.xlu0 %v414, 32
    %v418 = vpop.permute.xlu0 %417
    %v420 = vmul.f32 %v413, %v418
    %422 = vrot.lane.b32.xlu0 %v420, 32
    %v423 = vpop.permute.xlu0 %422
    %v425 = vadd.f32 %v415, %v423
    %v426 = vtanh.pop %v425
    %428 = vrot.lane.b32.xlu0 %v426, 32
    %v429 = vpop.permute.xlu0 %428
    %v431 = vmul.f32 %v413, %v429
    %v432 = vpack.c.bf16 %v431, %v431
    %434 = vrot.lane.b32.xlu0 %v432, 64
    %v435 = vpop.permute.xlu0 %434
    %v437 = vsel %vm291, %v435, 0
    %439 = vmatprep.subr.bf16.mxu0 0
    %440 = vmatpush1.bf16.msra.mxu0 0
    %441 = vmatprep.subr.bf16.mxu0 0
    %442 = vmatpush1.bf16.msra.mxu0 0
    %443 = vmatprep.subr.bf16.mxu0 0
    %444 = vmatpush1.bf16.msra.mxu0 0
    %445 = vmatprep.subr.bf16.mxu0 0
    %446 = vmatpush1.bf16.msra.mxu0 0
    %447 = vmatprep.subr.bf16.mxu0 0
    %448 = vmatpush1.bf16.msra.mxu0 0
    %449 = vmatprep.subr.bf16.mxu0 0
    %450 = vmatpush1.bf16.msra.mxu0 0
    %451 = vmatprep.subr.bf16.mxu0 0
    %452 = vmatpush1.bf16.msra.mxu0 %v288
    %453 = vmatprep.subr.bf16.mxu0 0
    %454 = vmatpush1.bf16.msra.mxu0 %v287
    %455 = vmatprep.subr.bf16.mxu0 0
    %456 = vmatpush2.bf16.msra.mxu0 0
    %457 = vmatprep.subr.bf16.mxu0 0
    %458 = vmatpush2.bf16.msra.mxu0 0
    %459 = vmatprep.subr.bf16.mxu0 0
    %460 = vmatpush2.bf16.msra.mxu0 0
    %461 = vmatprep.subr.bf16.mxu0 0
    %462 = vmatpush2.bf16.msra.mxu0 0
    %463 = vmatprep.subr.bf16.mxu0 0
    %464 = vmatpush2.bf16.msra.mxu0 0
    %465 = vmatprep.subr.bf16.mxu0 0
    %466 = vmatpush2.bf16.msra.mxu0 0
    %467 = vmatprep.subr.bf16.mxu0 0
    %468 = vmatpush2.bf16.msra.mxu0 0
    %469 = vmatprep.subr.bf16.mxu0 0
    %470 = vmatpush2.bf16.msra.mxu0 0
    %471 = vmatprep.mubr.bf16.mxu0 0
    %472 = vmatmul.mubr.bf16.gmra.mxu0 %v437
    %v473 = vpop.f32.mrf.mxu0
    %v474 = vadd.f32 0.0, %v473
    %v475 = vpop.f32.mrf.mxu0
    %v476 = vpop.f32.mrf.mxu0
    %v477 = vpop.f32.mrf.mxu0
    %478 = vdwg.mxu0
    %v479 = vadd.f32 %v221, %v474
    %v480 = vxor.u32 %v479, 2147483648
    %v481 = vmul.f32 %v480, 1.442695
    %v482 = vpow.pop %v481
    %v483 = vadd.f32 %v482, 1.0
    %v484 = vrcp.pop %v483
    %v485 = vmul.f32 1.0, %v484
    %v486 = vtanh.pop %v479
    %v487 = vmul.f32 %v485, %v425
    %489 = vrot.lane.b32.xlu0 %v486, 32
    %v490 = vpop.permute.xlu0 %489
    %v492 = vmul.f32 %v485, %v490
    %494 = vrot.lane.b32.xlu0 %v492, 32
    %v495 = vpop.permute.xlu0 %494
    %v497 = vadd.f32 %v487, %v495
    %v498 = vtanh.pop %v497
    %500 = vrot.lane.b32.xlu0 %v498, 32
    %v501 = vpop.permute.xlu0 %500
    %v503 = vmul.f32 %v485, %v501
    %v504 = vpack.c.bf16 %v503, %v503
    %506 = vrot.lane.b32.xlu0 %v504, 64
    %v507 = vpop.permute.xlu0 %506
    %v509 = vsel %vm291, %v507, 0
    %511 = vmatprep.subr.bf16.mxu0 0
    %512 = vmatpush1.bf16.msra.mxu0 0
    %513 = vmatprep.subr.bf16.mxu0 0
    %514 = vmatpush1.bf16.msra.mxu0 0
    %515 = vmatprep.subr.bf16.mxu0 0
    %516 = vmatpush1.bf16.msra.mxu0 0
    %517 = vmatprep.subr.bf16.mxu0 0
    %518 = vmatpush1.bf16.msra.mxu0 0
    %519 = vmatprep.subr.bf16.mxu0 0
    %520 = vmatpush1.bf16.msra.mxu0 0
    %521 = vmatprep.subr.bf16.mxu0 0
    %522 = vmatpush1.bf16.msra.mxu0 0
    %523 = vmatprep.subr.bf16.mxu0 0
    %524 = vmatpush1.bf16.msra.mxu0 %v288
    %525 = vmatprep.subr.bf16.mxu0 0
    %526 = vmatpush1.bf16.msra.mxu0 %v287
    %527 = vmatprep.subr.bf16.mxu0 0
    %528 = vmatpush2.bf16.msra.mxu0 0
    %529 = vmatprep.subr.bf16.mxu0 0
    %530 = vmatpush2.bf16.msra.mxu0 0
    %531 = vmatprep.subr.bf16.mxu0 0
    %532 = vmatpush2.bf16.msra.mxu0 0
    %533 = vmatprep.subr.bf16.mxu0 0
    %534 = vmatpush2.bf16.msra.mxu0 0
    %535 = vmatprep.subr.bf16.mxu0 0
    %536 = vmatpush2.bf16.msra.mxu0 0
    %537 = vmatprep.subr.bf16.mxu0 0
    %538 = vmatpush2.bf16.msra.mxu0 0
    %539 = vmatprep.subr.bf16.mxu0 0
    %540 = vmatpush2.bf16.msra.mxu0 0
    %541 = vmatprep.subr.bf16.mxu0 0
    %542 = vmatpush2.bf16.msra.mxu0 0
    %543 = vmatprep.mubr.bf16.mxu0 0
    %544 = vmatmul.mubr.bf16.gmra.mxu0 %v509
    %v545 = vpop.f32.mrf.mxu0
    %v546 = vadd.f32 0.0, %v545
    %v547 = vpop.f32.mrf.mxu0
    %v548 = vpop.f32.mrf.mxu0
    %v549 = vpop.f32.mrf.mxu0
    %550 = vdwg.mxu0
    %v551 = vadd.f32 %v224, %v546
    %v552 = vxor.u32 %v551, 2147483648
    %v553 = vmul.f32 %v552, 1.442695
    %v554 = vpow.pop %v553
    %v555 = vadd.f32 %v554, 1.0
    %v556 = vrcp.pop %v555
    %v557 = vmul.f32 1.0, %v556
    %v558 = vtanh.pop %v551
    %v559 = vmul.f32 %v557, %v497
    %561 = vrot.lane.b32.xlu0 %v558, 32
    %v562 = vpop.permute.xlu0 %561
    %v564 = vmul.f32 %v557, %v562
    %566 = vrot.lane.b32.xlu0 %v564, 32
    %v567 = vpop.permute.xlu0 %566
    %v569 = vadd.f32 %v559, %v567
    %v570 = vtanh.pop %v569
    %572 = vrot.lane.b32.xlu0 %v570, 32
    %v573 = vpop.permute.xlu0 %572
    %v575 = vmul.f32 %v557, %v573
    %v576 = vpack.c.bf16 %v575, %v575
    %578 = vrot.lane.b32.xlu0 %v576, 64
    %v579 = vpop.permute.xlu0 %578
    %v581 = vsel %vm291, %v579, 0
    %583 = vmatprep.subr.bf16.mxu0 0
    %584 = vmatpush1.bf16.msra.mxu0 0
    %585 = vmatprep.subr.bf16.mxu0 0
    %586 = vmatpush1.bf16.msra.mxu0 0
    %587 = vmatprep.subr.bf16.mxu0 0
    %588 = vmatpush1.bf16.msra.mxu0 0
    %589 = vmatprep.subr.bf16.mxu0 0
    %590 = vmatpush1.bf16.msra.mxu0 0
    %591 = vmatprep.subr.bf16.mxu0 0
    %592 = vmatpush1.bf16.msra.mxu0 0
    %593 = vmatprep.subr.bf16.mxu0 0
    %594 = vmatpush1.bf16.msra.mxu0 0
    %595 = vmatprep.subr.bf16.mxu0 0
    %596 = vmatpush1.bf16.msra.mxu0 %v288
    %597 = vmatprep.subr.bf16.mxu0 0
    %598 = vmatpush1.bf16.msra.mxu0 %v287
    %599 = vmatprep.subr.bf16.mxu0 0
    %600 = vmatpush2.bf16.msra.mxu0 0
    %601 = vmatprep.subr.bf16.mxu0 0
    %602 = vmatpush2.bf16.msra.mxu0 0
    %603 = vmatprep.subr.bf16.mxu0 0
    %604 = vmatpush2.bf16.msra.mxu0 0
    %605 = vmatprep.subr.bf16.mxu0 0
    %606 = vmatpush2.bf16.msra.mxu0 0
    %607 = vmatprep.subr.bf16.mxu0 0
    %608 = vmatpush2.bf16.msra.mxu0 0
    %609 = vmatprep.subr.bf16.mxu0 0
    %610 = vmatpush2.bf16.msra.mxu0 0
    %611 = vmatprep.subr.bf16.mxu0 0
    %612 = vmatpush2.bf16.msra.mxu0 0
    %613 = vmatprep.subr.bf16.mxu0 0
    %614 = vmatpush2.bf16.msra.mxu0 0
    %615 = vmatprep.mubr.bf16.mxu0 0
    %616 = vmatmul.mubr.bf16.gmra.mxu0 %v581
    %v617 = vpop.f32.mrf.mxu0
    %v618 = vadd.f32 0.0, %v617
    %v619 = vpop.f32.mrf.mxu0
    %v620 = vpop.f32.mrf.mxu0
    %v621 = vpop.f32.mrf.mxu0
    %622 = vdwg.mxu0
    %v623 = vadd.f32 %v229, %v618
    %v624 = vxor.u32 %v623, 2147483648
    %v625 = vmul.f32 %v624, 1.442695
    %v626 = vpow.pop %v625
    %v627 = vadd.f32 %v626, 1.0
    %v628 = vrcp.pop %v627
    %v629 = vmul.f32 1.0, %v628
    %v630 = vtanh.pop %v623
    %v631 = vmul.f32 %v629, %v569
    %633 = vrot.lane.b32.xlu0 %v630, 32
    %v634 = vpop.permute.xlu0 %633
    %v636 = vmul.f32 %v629, %v634
    %638 = vrot.lane.b32.xlu0 %v636, 32
    %v639 = vpop.permute.xlu0 %638
    %v641 = vadd.f32 %v631, %v639
    %v642 = vtanh.pop %v641
    %644 = vrot.lane.b32.xlu0 %v642, 32
    %v645 = vpop.permute.xlu0 %644
    %v647 = vmul.f32 %v629, %v645
    %v648 = vpack.c.bf16 %v647, %v647
    %650 = vrot.lane.b32.xlu0 %v648, 64
    %v651 = vpop.permute.xlu0 %650
    %v653 = vsel %vm291, %v651, 0
    %655 = vmatprep.subr.bf16.mxu0 0
    %656 = vmatpush1.bf16.msra.mxu0 0
    %657 = vmatprep.subr.bf16.mxu0 0
    %658 = vmatpush1.bf16.msra.mxu0 0
    %659 = vmatprep.subr.bf16.mxu0 0
    %660 = vmatpush1.bf16.msra.mxu0 0
    %661 = vmatprep.subr.bf16.mxu0 0
    %662 = vmatpush1.bf16.msra.mxu0 0
    %663 = vmatprep.subr.bf16.mxu0 0
    %664 = vmatpush1.bf16.msra.mxu0 0
    %665 = vmatprep.subr.bf16.mxu0 0
    %666 = vmatpush1.bf16.msra.mxu0 0
    %667 = vmatprep.subr.bf16.mxu0 0
    %668 = vmatpush1.bf16.msra.mxu0 %v288
    %669 = vmatprep.subr.bf16.mxu0 0
    %670 = vmatpush1.bf16.msra.mxu0 %v287
    %671 = vmatprep.subr.bf16.mxu0 0
    %672 = vmatpush2.bf16.msra.mxu0 0
    %673 = vmatprep.subr.bf16.mxu0 0
    %674 = vmatpush2.bf16.msra.mxu0 0
    %675 = vmatprep.subr.bf16.mxu0 0
    %676 = vmatpush2.bf16.msra.mxu0 0
    %677 = vmatprep.subr.bf16.mxu0 0
    %678 = vmatpush2.bf16.msra.mxu0 0
    %679 = vmatprep.subr.bf16.mxu0 0
    %680 = vmatpush2.bf16.msra.mxu0 0
    %681 = vmatprep.subr.bf16.mxu0 0
    %682 = vmatpush2.bf16.msra.mxu0 0
    %683 = vmatprep.subr.bf16.mxu0 0
    %684 = vmatpush2.bf16.msra.mxu0 0
    %685 = vmatprep.subr.bf16.mxu0 0
    %686 = vmatpush2.bf16.msra.mxu0 0
    %687 = vmatprep.mubr.bf16.mxu0 0
    %688 = vmatmul.mubr.bf16.gmra.mxu0 %v653
    %v689 = vpop.f32.mrf.mxu0
    %v690 = vadd.f32 0.0, %v689
    %v691 = vpop.f32.mrf.mxu0
    %v692 = vpop.f32.mrf.mxu0
    %v693 = vpop.f32.mrf.mxu0
    %694 = vdwg.mxu0
    %v695 = vadd.f32 %v232, %v690
    %v696 = vxor.u32 %v695, 2147483648
    %v697 = vmul.f32 %v696, 1.442695
    %v698 = vpow.pop %v697
    %v699 = vadd.f32 %v698, 1.0
    %v700 = vrcp.pop %v699
    %v701 = vmul.f32 1.0, %v700
    %v702 = vtanh.pop %v695
    %v703 = vmul.f32 %v701, %v641
    %705 = vrot.lane.b32.xlu0 %v702, 32
    %v706 = vpop.permute.xlu0 %705
    %v708 = vmul.f32 %v701, %v706
    %710 = vrot.lane.b32.xlu0 %v708, 32
    %v711 = vpop.permute.xlu0 %710
    %v713 = vadd.f32 %v703, %v711
    %v714 = vtanh.pop %v713
    %716 = vrot.lane.b32.xlu0 %v714, 32
    %v717 = vpop.permute.xlu0 %716
    %v719 = vmul.f32 %v701, %v717
    %v720 = vpack.c.bf16 %v719, %v719
    %722 = vrot.lane.b32.xlu0 %v720, 64
    %v723 = vpop.permute.xlu0 %722
    %v725 = vsel %vm291, %v723, 0
    %727 = vmatprep.subr.bf16.mxu0 0
    %728 = vmatpush1.bf16.msra.mxu0 0
    %729 = vmatprep.subr.bf16.mxu0 0
    %730 = vmatpush1.bf16.msra.mxu0 0
    %731 = vmatprep.subr.bf16.mxu0 0
    %732 = vmatpush1.bf16.msra.mxu0 0
    %733 = vmatprep.subr.bf16.mxu0 0
    %734 = vmatpush1.bf16.msra.mxu0 0
    %735 = vmatprep.subr.bf16.mxu0 0
    %736 = vmatpush1.bf16.msra.mxu0 0
    %737 = vmatprep.subr.bf16.mxu0 0
    %738 = vmatpush1.bf16.msra.mxu0 0
    %739 = vmatprep.subr.bf16.mxu0 0
    %740 = vmatpush1.bf16.msra.mxu0 %v288
    %741 = vmatprep.subr.bf16.mxu0 0
    %742 = vmatpush1.bf16.msra.mxu0 %v287
    %743 = vmatprep.subr.bf16.mxu0 0
    %744 = vmatpush2.bf16.msra.mxu0 0
    %745 = vmatprep.subr.bf16.mxu0 0
    %746 = vmatpush2.bf16.msra.mxu0 0
    %747 = vmatprep.subr.bf16.mxu0 0
    %748 = vmatpush2.bf16.msra.mxu0 0
    %749 = vmatprep.subr.bf16.mxu0 0
    %750 = vmatpush2.bf16.msra.mxu0 0
    %751 = vmatprep.subr.bf16.mxu0 0
    %752 = vmatpush2.bf16.msra.mxu0 0
    %753 = vmatprep.subr.bf16.mxu0 0
    %754 = vmatpush2.bf16.msra.mxu0 0
    %755 = vmatprep.subr.bf16.mxu0 0
    %756 = vmatpush2.bf16.msra.mxu0 0
    %757 = vmatprep.subr.bf16.mxu0 0
    %758 = vmatpush2.bf16.msra.mxu0 0
    %759 = vmatprep.mubr.bf16.mxu0 0
    %760 = vmatmul.mubr.bf16.gmra.mxu0 %v725
    %v761 = vpop.f32.mrf.mxu0
    %v762 = vadd.f32 0.0, %v761
    %v763 = vpop.f32.mrf.mxu0
    %v764 = vpop.f32.mrf.mxu0
    %v765 = vpop.f32.mrf.mxu0
    %766 = vdwg.mxu0
    %v767 = vadd.f32 %v237, %v762
    %v768 = vxor.u32 %v767, 2147483648
    %v769 = vmul.f32 %v768, 1.442695
    %v770 = vpow.pop %v769
    %v771 = vadd.f32 %v770, 1.0
    %v772 = vrcp.pop %v771
    %v773 = vmul.f32 1.0, %v772
    %v774 = vtanh.pop %v767
    %v775 = vmul.f32 %v773, %v713
    %777 = vrot.lane.b32.xlu0 %v774, 32
    %v778 = vpop.permute.xlu0 %777
    %v780 = vmul.f32 %v773, %v778
    %782 = vrot.lane.b32.xlu0 %v780, 32
    %v783 = vpop.permute.xlu0 %782
    %v785 = vadd.f32 %v775, %v783
    %v786 = vtanh.pop %v785
    %788 = vrot.lane.b32.xlu0 %v786, 32
    %v789 = vpop.permute.xlu0 %788
    %v791 = vmul.f32 %v773, %v789
    %v792 = vpack.c.bf16 %v791, %v791
    %794 = vrot.lane.b32.xlu0 %v792, 64
    %v795 = vpop.permute.xlu0 %794
    %v797 = vsel %vm291, %v795, 0
    %799 = vmatprep.subr.bf16.mxu0 0
    %800 = vmatpush1.bf16.msra.mxu0 0
    %801 = vmatprep.subr.bf16.mxu0 0
    %802 = vmatpush1.bf16.msra.mxu0 0
    %803 = vmatprep.subr.bf16.mxu0 0
    %804 = vmatpush1.bf16.msra.mxu0 0
    %805 = vmatprep.subr.bf16.mxu0 0
    %806 = vmatpush1.bf16.msra.mxu0 0
    %807 = vmatprep.subr.bf16.mxu0 0
    %808 = vmatpush1.bf16.msra.mxu0 0
    %809 = vmatprep.subr.bf16.mxu0 0
    %810 = vmatpush1.bf16.msra.mxu0 0
    %811 = vmatprep.subr.bf16.mxu0 0
    %812 = vmatpush1.bf16.msra.mxu0 %v288
    %813 = vmatprep.subr.bf16.mxu0 0
    %814 = vmatpush1.bf16.msra.mxu0 %v287
    %815 = vmatprep.subr.bf16.mxu0 0
    %816 = vmatpush2.bf16.msra.mxu0 0
    %817 = vmatprep.subr.bf16.mxu0 0
    %818 = vmatpush2.bf16.msra.mxu0 0
    %819 = vmatprep.subr.bf16.mxu0 0
    %820 = vmatpush2.bf16.msra.mxu0 0
    %821 = vmatprep.subr.bf16.mxu0 0
    %822 = vmatpush2.bf16.msra.mxu0 0
    %823 = vmatprep.subr.bf16.mxu0 0
    %824 = vmatpush2.bf16.msra.mxu0 0
    %825 = vmatprep.subr.bf16.mxu0 0
    %826 = vmatpush2.bf16.msra.mxu0 0
    %827 = vmatprep.subr.bf16.mxu0 0
    %828 = vmatpush2.bf16.msra.mxu0 0
    %829 = vmatprep.subr.bf16.mxu0 0
    %830 = vmatpush2.bf16.msra.mxu0 0
    %831 = vmatprep.mubr.bf16.mxu0 0
    %832 = vmatmul.mubr.bf16.gmra.mxu0 %v797
    %v833 = vpop.f32.mrf.mxu0
    %v834 = vadd.f32 0.0, %v833
    %v835 = vpop.f32.mrf.mxu0
    %v836 = vpop.f32.mrf.mxu0
    %v837 = vpop.f32.mrf.mxu0
    %838 = vdwg.mxu0
    %v839 = vadd.f32 %v240, %v834
    %v840 = vxor.u32 %v839, 2147483648
    %v841 = vmul.f32 %v840, 1.442695
    %v842 = vpow.pop %v841
    %v843 = vadd.f32 %v842, 1.0
    %v844 = vrcp.pop %v843
    %v845 = vmul.f32 1.0, %v844
    %v846 = vtanh.pop %v839
    %v847 = vmul.f32 %v845, %v785
    %849 = vrot.lane.b32.xlu0 %v846, 32
    %v850 = vpop.permute.xlu0 %849
    %v852 = vmul.f32 %v845, %v850
    %854 = vrot.lane.b32.xlu0 %v852, 32
    %v855 = vpop.permute.xlu0 %854
    %v857 = vadd.f32 %v847, %v855
    %v858 = vtanh.pop %v857
    %860 = vrot.lane.b32.xlu0 %v858, 32
    %v861 = vpop.permute.xlu0 %860
    %v863 = vmul.f32 %v845, %v861
    %v864 = vpack.c.bf16 %v863, %v863
    %866 = vrot.lane.b32.xlu0 %v864, 64
    %v867 = vpop.permute.xlu0 %866
    %v869 = vsel %vm291, %v867, 0
    %871 = vmatprep.subr.bf16.mxu0 0
    %872 = vmatpush1.bf16.msra.mxu0 0
    %873 = vmatprep.subr.bf16.mxu0 0
    %874 = vmatpush1.bf16.msra.mxu0 0
    %875 = vmatprep.subr.bf16.mxu0 0
    %876 = vmatpush1.bf16.msra.mxu0 0
    %877 = vmatprep.subr.bf16.mxu0 0
    %878 = vmatpush1.bf16.msra.mxu0 0
    %879 = vmatprep.subr.bf16.mxu0 0
    %880 = vmatpush1.bf16.msra.mxu0 0
    %881 = vmatprep.subr.bf16.mxu0 0
    %882 = vmatpush1.bf16.msra.mxu0 0
    %883 = vmatprep.subr.bf16.mxu0 0
    %884 = vmatpush1.bf16.msra.mxu0 %v288
    %885 = vmatprep.subr.bf16.mxu0 0
    %886 = vmatpush1.bf16.msra.mxu0 %v287
    %887 = vmatprep.subr.bf16.mxu0 0
    %888 = vmatpush2.bf16.msra.mxu0 0
    %889 = vmatprep.subr.bf16.mxu0 0
    %890 = vmatpush2.bf16.msra.mxu0 0
    %891 = vmatprep.subr.bf16.mxu0 0
    %892 = vmatpush2.bf16.msra.mxu0 0
    %893 = vmatprep.subr.bf16.mxu0 0
    %894 = vmatpush2.bf16.msra.mxu0 0
    %895 = vmatprep.subr.bf16.mxu0 0
    %896 = vmatpush2.bf16.msra.mxu0 0
    %897 = vmatprep.subr.bf16.mxu0 0
    %898 = vmatpush2.bf16.msra.mxu0 0
    %899 = vmatprep.subr.bf16.mxu0 0
    %900 = vmatpush2.bf16.msra.mxu0 0
    %901 = vmatprep.subr.bf16.mxu0 0
    %902 = vmatpush2.bf16.msra.mxu0 0
    %903 = vmatprep.mubr.bf16.mxu0 0
    %904 = vmatmul.mubr.bf16.gmra.mxu0 %v869
    %v905 = vpop.f32.mrf.mxu0
    %v906 = vadd.f32 0.0, %v905
    %v907 = vpop.f32.mrf.mxu0
    %v908 = vpop.f32.mrf.mxu0
    %v909 = vpop.f32.mrf.mxu0
    %910 = vdwg.mxu0
    %v911 = vadd.f32 %v245, %v906
    %v912 = vxor.u32 %v911, 2147483648
    %v913 = vmul.f32 %v912, 1.442695
    %v914 = vpow.pop %v913
    %v915 = vadd.f32 %v914, 1.0
    %v916 = vrcp.pop %v915
    %v917 = vmul.f32 1.0, %v916
    %v918 = vtanh.pop %v911
    %v919 = vmul.f32 %v917, %v857
    %921 = vrot.lane.b32.xlu0 %v918, 32
    %v922 = vpop.permute.xlu0 %921
    %v924 = vmul.f32 %v917, %v922
    %926 = vrot.lane.b32.xlu0 %v924, 32
    %v927 = vpop.permute.xlu0 %926
    %v929 = vadd.f32 %v919, %v927
    %v930 = vtanh.pop %v929
    %932 = vrot.lane.b32.xlu0 %v930, 32
    %v933 = vpop.permute.xlu0 %932
    %v935 = vmul.f32 %v917, %v933
    %v936 = vpack.c.bf16 %v935, %v935
    %938 = vrot.lane.b32.xlu0 %v936, 64
    %v939 = vpop.permute.xlu0 %938
    %v941 = vsel %vm291, %v939, 0
    %943 = vmatprep.subr.bf16.mxu0 0
    %944 = vmatpush1.bf16.msra.mxu0 0
    %945 = vmatprep.subr.bf16.mxu0 0
    %946 = vmatpush1.bf16.msra.mxu0 0
    %947 = vmatprep.subr.bf16.mxu0 0
    %948 = vmatpush1.bf16.msra.mxu0 0
    %949 = vmatprep.subr.bf16.mxu0 0
    %950 = vmatpush1.bf16.msra.mxu0 0
    %951 = vmatprep.subr.bf16.mxu0 0
    %952 = vmatpush1.bf16.msra.mxu0 0
    %953 = vmatprep.subr.bf16.mxu0 0
    %954 = vmatpush1.bf16.msra.mxu0 0
    %955 = vmatprep.subr.bf16.mxu0 0
    %956 = vmatpush1.bf16.msra.mxu0 %v288
    %957 = vmatprep.subr.bf16.mxu0 0
    %958 = vmatpush1.bf16.msra.mxu0 %v287
    %959 = vmatprep.subr.bf16.mxu0 0
    %960 = vmatpush2.bf16.msra.mxu0 0
    %961 = vmatprep.subr.bf16.mxu0 0
    %962 = vmatpush2.bf16.msra.mxu0 0
    %963 = vmatprep.subr.bf16.mxu0 0
    %964 = vmatpush2.bf16.msra.mxu0 0
    %965 = vmatprep.subr.bf16.mxu0 0
    %966 = vmatpush2.bf16.msra.mxu0 0
    %967 = vmatprep.subr.bf16.mxu0 0
    %968 = vmatpush2.bf16.msra.mxu0 0
    %969 = vmatprep.subr.bf16.mxu0 0
    %970 = vmatpush2.bf16.msra.mxu0 0
    %971 = vmatprep.subr.bf16.mxu0 0
    %972 = vmatpush2.bf16.msra.mxu0 0
    %973 = vmatprep.subr.bf16.mxu0 0
    %974 = vmatpush2.bf16.msra.mxu0 0
    %975 = vmatprep.mubr.bf16.mxu0 0
    %976 = vmatmul.mubr.bf16.gmra.mxu0 %v941
    %v977 = vpop.f32.mrf.mxu0
    %v978 = vadd.f32 0.0, %v977
    %v979 = vpop.f32.mrf.mxu0
    %v980 = vpop.f32.mrf.mxu0
    %v981 = vpop.f32.mrf.mxu0
    %982 = vdwg.mxu0
    %v983 = vadd.f32 %v248, %v978
    %v984 = vxor.u32 %v983, 2147483648
    %v985 = vmul.f32 %v984, 1.442695
    %v986 = vpow.pop %v985
    %v987 = vadd.f32 %v986, 1.0
    %v988 = vrcp.pop %v987
    %v989 = vmul.f32 1.0, %v988
    %v990 = vtanh.pop %v983
    %v991 = vmul.f32 %v989, %v929
    %993 = vrot.lane.b32.xlu0 %v990, 32
    %v994 = vpop.permute.xlu0 %993
    %v996 = vmul.f32 %v989, %v994
    %998 = vrot.lane.b32.xlu0 %v996, 32
    %v999 = vpop.permute.xlu0 %998
    %v1001 = vadd.f32 %v991, %v999
    %v1002 = vtanh.pop %v1001
    %1004 = vrot.lane.b32.xlu0 %v1002, 32
    %v1005 = vpop.permute.xlu0 %1004
    %v1007 = vmul.f32 %v989, %v1005
    %v1008 = vpack.c.bf16 %v1007, %v1007
    %1010 = vrot.lane.b32.xlu0 %v1008, 64
    %v1011 = vpop.permute.xlu0 %1010
    %v1013 = vsel %vm291, %v1011, 0
    %1015 = vmatprep.subr.bf16.mxu0 0
    %1016 = vmatpush1.bf16.msra.mxu0 0
    %1017 = vmatprep.subr.bf16.mxu0 0
    %1018 = vmatpush1.bf16.msra.mxu0 0
    %1019 = vmatprep.subr.bf16.mxu0 0
    %1020 = vmatpush1.bf16.msra.mxu0 0
    %1021 = vmatprep.subr.bf16.mxu0 0
    %1022 = vmatpush1.bf16.msra.mxu0 0
    %1023 = vmatprep.subr.bf16.mxu0 0
    %1024 = vmatpush1.bf16.msra.mxu0 0
    %1025 = vmatprep.subr.bf16.mxu0 0
    %1026 = vmatpush1.bf16.msra.mxu0 0
    %1027 = vmatprep.subr.bf16.mxu0 0
    %1028 = vmatpush1.bf16.msra.mxu0 %v288
    %1029 = vmatprep.subr.bf16.mxu0 0
    %1030 = vmatpush1.bf16.msra.mxu0 %v287
    %1031 = vmatprep.subr.bf16.mxu0 0
    %1032 = vmatpush2.bf16.msra.mxu0 0
    %1033 = vmatprep.subr.bf16.mxu0 0
    %1034 = vmatpush2.bf16.msra.mxu0 0
    %1035 = vmatprep.subr.bf16.mxu0 0
    %1036 = vmatpush2.bf16.msra.mxu0 0
    %1037 = vmatprep.subr.bf16.mxu0 0
    %1038 = vmatpush2.bf16.msra.mxu0 0
    %1039 = vmatprep.subr.bf16.mxu0 0
    %1040 = vmatpush2.bf16.msra.mxu0 0
    %1041 = vmatprep.subr.bf16.mxu0 0
    %1042 = vmatpush2.bf16.msra.mxu0 0
    %1043 = vmatprep.subr.bf16.mxu0 0
    %1044 = vmatpush2.bf16.msra.mxu0 0
    %1045 = vmatprep.subr.bf16.mxu0 0
    %1046 = vmatpush2.bf16.msra.mxu0 0
    %1047 = vmatprep.mubr.bf16.mxu0 0
    %1048 = vmatmul.mubr.bf16.gmra.mxu0 %v1013
    %v1049 = vpop.f32.mrf.mxu0
    %v1050 = vadd.f32 0.0, %v1049
    %v1051 = vpop.f32.mrf.mxu0
    %v1052 = vpop.f32.mrf.mxu0
    %v1053 = vpop.f32.mrf.mxu0
    %1054 = vdwg.mxu0
    %v1055 = vadd.f32 %v253, %v1050
    %v1056 = vxor.u32 %v1055, 2147483648
    %v1057 = vmul.f32 %v1056, 1.442695
    %v1058 = vpow.pop %v1057
    %v1059 = vadd.f32 %v1058, 1.0
    %v1060 = vrcp.pop %v1059
    %v1061 = vmul.f32 1.0, %v1060
    %v1062 = vtanh.pop %v1055
    %v1063 = vmul.f32 %v1061, %v1001
    %1065 = vrot.lane.b32.xlu0 %v1062, 32
    %v1066 = vpop.permute.xlu0 %1065
    %v1068 = vmul.f32 %v1061, %v1066
    %1070 = vrot.lane.b32.xlu0 %v1068, 32
    %v1071 = vpop.permute.xlu0 %1070
    %v1073 = vadd.f32 %v1063, %v1071
    %v1074 = vtanh.pop %v1073
    %1076 = vrot.lane.b32.xlu0 %v1074, 32
    %v1077 = vpop.permute.xlu0 %1076
    %v1079 = vmul.f32 %v1061, %v1077
    %v1080 = vpack.c.bf16 %v1079, %v1079
    %1082 = vrot.lane.b32.xlu0 %v1080, 64
    %v1083 = vpop.permute.xlu0 %1082
    %v1085 = vsel %vm291, %v1083, 0
    %1087 = vmatprep.subr.bf16.mxu0 0
    %1088 = vmatpush1.bf16.msra.mxu0 0
    %1089 = vmatprep.subr.bf16.mxu0 0
    %1090 = vmatpush1.bf16.msra.mxu0 0
    %1091 = vmatprep.subr.bf16.mxu0 0
    %1092 = vmatpush1.bf16.msra.mxu0 0
    %1093 = vmatprep.subr.bf16.mxu0 0
    %1094 = vmatpush1.bf16.msra.mxu0 0
    %1095 = vmatprep.subr.bf16.mxu0 0
    %1096 = vmatpush1.bf16.msra.mxu0 0
    %1097 = vmatprep.subr.bf16.mxu0 0
    %1098 = vmatpush1.bf16.msra.mxu0 0
    %1099 = vmatprep.subr.bf16.mxu0 0
    %1100 = vmatpush1.bf16.msra.mxu0 %v288
    %1101 = vmatprep.subr.bf16.mxu0 0
    %1102 = vmatpush1.bf16.msra.mxu0 %v287
    %1103 = vmatprep.subr.bf16.mxu0 0
    %1104 = vmatpush2.bf16.msra.mxu0 0
    %1105 = vmatprep.subr.bf16.mxu0 0
    %1106 = vmatpush2.bf16.msra.mxu0 0
    %1107 = vmatprep.subr.bf16.mxu0 0
    %1108 = vmatpush2.bf16.msra.mxu0 0
    %1109 = vmatprep.subr.bf16.mxu0 0
    %1110 = vmatpush2.bf16.msra.mxu0 0
    %1111 = vmatprep.subr.bf16.mxu0 0
    %1112 = vmatpush2.bf16.msra.mxu0 0
    %1113 = vmatprep.subr.bf16.mxu0 0
    %1114 = vmatpush2.bf16.msra.mxu0 0
    %1115 = vmatprep.subr.bf16.mxu0 0
    %1116 = vmatpush2.bf16.msra.mxu0 0
    %1117 = vmatprep.subr.bf16.mxu0 0
    %1118 = vmatpush2.bf16.msra.mxu0 0
    %1119 = vmatprep.mubr.bf16.mxu0 0
    %1120 = vmatmul.mubr.bf16.gmra.mxu0 %v1085
    %v1121 = vpop.f32.mrf.mxu0
    %v1122 = vadd.f32 0.0, %v1121
    %v1123 = vpop.f32.mrf.mxu0
    %v1124 = vpop.f32.mrf.mxu0
    %v1125 = vpop.f32.mrf.mxu0
    %1126 = vdwg.mxu0
    %v1127 = vadd.f32 %v256, %v1122
    %v1128 = vxor.u32 %v1127, 2147483648
    %v1129 = vmul.f32 %v1128, 1.442695
    %v1130 = vpow.pop %v1129
    %v1131 = vadd.f32 %v1130, 1.0
    %v1132 = vrcp.pop %v1131
    %v1133 = vmul.f32 1.0, %v1132
    %v1134 = vtanh.pop %v1127
    %v1135 = vmul.f32 %v1133, %v1073
    %1137 = vrot.lane.b32.xlu0 %v1134, 32
    %v1138 = vpop.permute.xlu0 %1137
    %v1140 = vmul.f32 %v1133, %v1138
    %1142 = vrot.lane.b32.xlu0 %v1140, 32
    %v1143 = vpop.permute.xlu0 %1142
    %v1145 = vadd.f32 %v1135, %v1143
    %v1146 = vtanh.pop %v1145
    %1148 = vrot.lane.b32.xlu0 %v1146, 32
    %v1149 = vpop.permute.xlu0 %1148
    %v1151 = vmul.f32 %v1133, %v1149
    %v1152 = vpack.c.bf16 %v1151, %v1151
    %1154 = vrot.lane.b32.xlu0 %v1152, 64
    %v1155 = vpop.permute.xlu0 %1154
    %v1157 = vsel %vm291, %v1155, 0
    %1159 = vmatprep.subr.bf16.mxu0 0
    %1160 = vmatpush1.bf16.msra.mxu0 0
    %1161 = vmatprep.subr.bf16.mxu0 0
    %1162 = vmatpush1.bf16.msra.mxu0 0
    %1163 = vmatprep.subr.bf16.mxu0 0
    %1164 = vmatpush1.bf16.msra.mxu0 0
    %1165 = vmatprep.subr.bf16.mxu0 0
    %1166 = vmatpush1.bf16.msra.mxu0 0
    %1167 = vmatprep.subr.bf16.mxu0 0
    %1168 = vmatpush1.bf16.msra.mxu0 0
    %1169 = vmatprep.subr.bf16.mxu0 0
    %1170 = vmatpush1.bf16.msra.mxu0 0
    %1171 = vmatprep.subr.bf16.mxu0 0
    %1172 = vmatpush1.bf16.msra.mxu0 %v288
    %1173 = vmatprep.subr.bf16.mxu0 0
    %1174 = vmatpush1.bf16.msra.mxu0 %v287
    %1175 = vmatprep.subr.bf16.mxu0 0
    %1176 = vmatpush2.bf16.msra.mxu0 0
    %1177 = vmatprep.subr.bf16.mxu0 0
    %1178 = vmatpush2.bf16.msra.mxu0 0
    %1179 = vmatprep.subr.bf16.mxu0 0
    %1180 = vmatpush2.bf16.msra.mxu0 0
    %1181 = vmatprep.subr.bf16.mxu0 0
    %1182 = vmatpush2.bf16.msra.mxu0 0
    %1183 = vmatprep.subr.bf16.mxu0 0
    %1184 = vmatpush2.bf16.msra.mxu0 0
    %1185 = vmatprep.subr.bf16.mxu0 0
    %1186 = vmatpush2.bf16.msra.mxu0 0
    %1187 = vmatprep.subr.bf16.mxu0 0
    %1188 = vmatpush2.bf16.msra.mxu0 0
    %1189 = vmatprep.subr.bf16.mxu0 0
    %1190 = vmatpush2.bf16.msra.mxu0 0
    %1191 = vmatprep.mubr.bf16.mxu0 0
    %1192 = vmatmul.mubr.bf16.gmra.mxu0 %v1157
    %v1193 = vpop.f32.mrf.mxu0
    %v1194 = vadd.f32 0.0, %v1193
    %v1195 = vpop.f32.mrf.mxu0
    %v1196 = vpop.f32.mrf.mxu0
    %v1197 = vpop.f32.mrf.mxu0
    %1198 = vdwg.mxu0
    %v1199 = vadd.f32 %v261, %v1194
    %v1200 = vxor.u32 %v1199, 2147483648
    %v1201 = vmul.f32 %v1200, 1.442695
    %v1202 = vpow.pop %v1201
    %v1203 = vadd.f32 %v1202, 1.0
    %v1204 = vrcp.pop %v1203
    %v1205 = vmul.f32 1.0, %v1204
    %v1206 = vtanh.pop %v1199
    %v1207 = vmul.f32 %v1205, %v1145
    %1209 = vrot.lane.b32.xlu0 %v1206, 32
    %v1210 = vpop.permute.xlu0 %1209
    %v1212 = vmul.f32 %v1205, %v1210
    %1214 = vrot.lane.b32.xlu0 %v1212, 32
    %v1215 = vpop.permute.xlu0 %1214
    %v1217 = vadd.f32 %v1207, %v1215
    %v1218 = vtanh.pop %v1217
    %1220 = vrot.lane.b32.xlu0 %v1218, 32
    %v1221 = vpop.permute.xlu0 %1220
    %v1223 = vmul.f32 %v1205, %v1221
    %v1224 = vpack.c.bf16 %v1223, %v1223
    %1226 = vrot.lane.b32.xlu0 %v1224, 64
    %v1227 = vpop.permute.xlu0 %1226
    %v1229 = vsel %vm291, %v1227, 0
    %1231 = vmatprep.subr.bf16.mxu0 0
    %1232 = vmatpush1.bf16.msra.mxu0 0
    %1233 = vmatprep.subr.bf16.mxu0 0
    %1234 = vmatpush1.bf16.msra.mxu0 0
    %1235 = vmatprep.subr.bf16.mxu0 0
    %1236 = vmatpush1.bf16.msra.mxu0 0
    %1237 = vmatprep.subr.bf16.mxu0 0
    %1238 = vmatpush1.bf16.msra.mxu0 0
    %1239 = vmatprep.subr.bf16.mxu0 0
    %1240 = vmatpush1.bf16.msra.mxu0 0
    %1241 = vmatprep.subr.bf16.mxu0 0
    %1242 = vmatpush1.bf16.msra.mxu0 0
    %1243 = vmatprep.subr.bf16.mxu0 0
    %1244 = vmatpush1.bf16.msra.mxu0 %v288
    %1245 = vmatprep.subr.bf16.mxu0 0
    %1246 = vmatpush1.bf16.msra.mxu0 %v287
    %1247 = vmatprep.subr.bf16.mxu0 0
    %1248 = vmatpush2.bf16.msra.mxu0 0
    %1249 = vmatprep.subr.bf16.mxu0 0
    %1250 = vmatpush2.bf16.msra.mxu0 0
    %1251 = vmatprep.subr.bf16.mxu0 0
    %1252 = vmatpush2.bf16.msra.mxu0 0
    %1253 = vmatprep.subr.bf16.mxu0 0
    %1254 = vmatpush2.bf16.msra.mxu0 0
    %1255 = vmatprep.subr.bf16.mxu0 0
    %1256 = vmatpush2.bf16.msra.mxu0 0
    %1257 = vmatprep.subr.bf16.mxu0 0
    %1258 = vmatpush2.bf16.msra.mxu0 0
    %1259 = vmatprep.subr.bf16.mxu0 0
    %1260 = vmatpush2.bf16.msra.mxu0 0
    %1261 = vmatprep.subr.bf16.mxu0 0
    %1262 = vmatpush2.bf16.msra.mxu0 0
    %1263 = vmatprep.mubr.bf16.mxu0 0
    %1264 = vmatmul.mubr.bf16.gmra.mxu0 %v1229
    %v1265 = vpop.f32.mrf.mxu0
    %v1266 = vadd.f32 0.0, %v1265
    %v1267 = vpop.f32.mrf.mxu0
    %v1268 = vpop.f32.mrf.mxu0
    %v1269 = vpop.f32.mrf.mxu0
    %1270 = vdwg.mxu0
    %v1271 = vadd.f32 %v264, %v1266
    %v1272 = vxor.u32 %v1271, 2147483648
    %v1273 = vmul.f32 %v1272, 1.442695
    %v1274 = vpow.pop %v1273
    %v1275 = vadd.f32 %v1274, 1.0
    %v1276 = vrcp.pop %v1275
    %v1277 = vmul.f32 1.0, %v1276
    %v1278 = vtanh.pop %v1271
    %v1279 = vmul.f32 %v1277, %v1217
    %1281 = vrot.lane.b32.xlu0 %v1278, 32
    %v1282 = vpop.permute.xlu0 %1281
    %v1284 = vmul.f32 %v1277, %v1282
    %1286 = vrot.lane.b32.xlu0 %v1284, 32
    %v1287 = vpop.permute.xlu0 %1286
    %v1289 = vadd.f32 %v1279, %v1287
    %v1290 = vtanh.pop %v1289
    %1292 = vrot.lane.b32.xlu0 %v1290, 32
    %v1293 = vpop.permute.xlu0 %1292
    %v1295 = vmul.f32 %v1277, %v1293
    %v1296 = vpack.c.bf16 %v1295, %v1295
    %1298 = vrot.lane.b32.xlu0 %v1296, 64
    %v1299 = vpop.permute.xlu0 %1298
    %v1301 = vsel %vm291, %v1299, 0
    %1303 = vmatprep.subr.bf16.mxu0 0
    %1304 = vmatpush1.bf16.msra.mxu0 0
    %1305 = vmatprep.subr.bf16.mxu0 0
    %1306 = vmatpush1.bf16.msra.mxu0 0
    %1307 = vmatprep.subr.bf16.mxu0 0
    %1308 = vmatpush1.bf16.msra.mxu0 0
    %1309 = vmatprep.subr.bf16.mxu0 0
    %1310 = vmatpush1.bf16.msra.mxu0 0
    %1311 = vmatprep.subr.bf16.mxu0 0
    %1312 = vmatpush1.bf16.msra.mxu0 0
    %1313 = vmatprep.subr.bf16.mxu0 0
    %1314 = vmatpush1.bf16.msra.mxu0 0
    %1315 = vmatprep.subr.bf16.mxu0 0
    %1316 = vmatpush1.bf16.msra.mxu0 %v288
    %1317 = vmatprep.subr.bf16.mxu0 0
    %1318 = vmatpush1.bf16.msra.mxu0 %v287
    %1319 = vmatprep.subr.bf16.mxu0 0
    %1320 = vmatpush2.bf16.msra.mxu0 0
    %1321 = vmatprep.subr.bf16.mxu0 0
    %1322 = vmatpush2.bf16.msra.mxu0 0
    %1323 = vmatprep.subr.bf16.mxu0 0
    %1324 = vmatpush2.bf16.msra.mxu0 0
    %1325 = vmatprep.subr.bf16.mxu0 0
    %1326 = vmatpush2.bf16.msra.mxu0 0
    %1327 = vmatprep.subr.bf16.mxu0 0
    %1328 = vmatpush2.bf16.msra.mxu0 0
    %1329 = vmatprep.subr.bf16.mxu0 0
    %1330 = vmatpush2.bf16.msra.mxu0 0
    %1331 = vmatprep.subr.bf16.mxu0 0
    %1332 = vmatpush2.bf16.msra.mxu0 0
    %1333 = vmatprep.subr.bf16.mxu0 0
    %1334 = vmatpush2.bf16.msra.mxu0 0
    %1335 = vmatprep.mubr.bf16.mxu0 0
    %1336 = vmatmul.mubr.bf16.gmra.mxu0 %v1301
    %v1337 = vpop.f32.mrf.mxu0
    %v1338 = vadd.f32 0.0, %v1337
    %v1339 = vpop.f32.mrf.mxu0
    %v1340 = vpop.f32.mrf.mxu0
    %v1341 = vpop.f32.mrf.mxu0
    %1342 = vdwg.mxu0
    %v1343 = vadd.f32 %v269, %v1338
    %v1344 = vxor.u32 %v1343, 2147483648
    %v1345 = vmul.f32 %v1344, 1.442695
    %v1346 = vpow.pop %v1345
    %v1347 = vadd.f32 %v1346, 1.0
    %v1348 = vrcp.pop %v1347
    %v1349 = vmul.f32 1.0, %v1348
    %v1350 = vtanh.pop %v1343
    %v1351 = vmul.f32 %v1349, %v1289
    %1353 = vrot.lane.b32.xlu0 %v1350, 32
    %v1354 = vpop.permute.xlu0 %1353
    %v1356 = vmul.f32 %v1349, %v1354
    %1358 = vrot.lane.b32.xlu0 %v1356, 32
    %v1359 = vpop.permute.xlu0 %1358
    %v1361 = vadd.f32 %v1351, %v1359
    %v1362 = vtanh.pop %v1361
    %1364 = vrot.lane.b32.xlu0 %v1362, 32
    %v1365 = vpop.permute.xlu0 %1364
    %v1367 = vmul.f32 %v1349, %v1365
    %v1368 = vpack.c.bf16 %v1367, %v1367
    %1370 = vrot.lane.b32.xlu0 %v1368, 64
    %v1371 = vpop.permute.xlu0 %1370
    %v1373 = vsel %vm291, %v1371, 0
    %1375 = vmatprep.subr.bf16.mxu0 0
    %1376 = vmatpush1.bf16.msra.mxu0 0
    %1377 = vmatprep.subr.bf16.mxu0 0
    %1378 = vmatpush1.bf16.msra.mxu0 0
    %1379 = vmatprep.subr.bf16.mxu0 0
    %1380 = vmatpush1.bf16.msra.mxu0 0
    %1381 = vmatprep.subr.bf16.mxu0 0
    %1382 = vmatpush1.bf16.msra.mxu0 0
    %1383 = vmatprep.subr.bf16.mxu0 0
    %1384 = vmatpush1.bf16.msra.mxu0 0
    %1385 = vmatprep.subr.bf16.mxu0 0
    %1386 = vmatpush1.bf16.msra.mxu0 0
    %1387 = vmatprep.subr.bf16.mxu0 0
    %1388 = vmatpush1.bf16.msra.mxu0 %v288
    %1389 = vmatprep.subr.bf16.mxu0 0
    %1390 = vmatpush1.bf16.msra.mxu0 %v287
    %1391 = vmatprep.subr.bf16.mxu0 0
    %1392 = vmatpush2.bf16.msra.mxu0 0
    %1393 = vmatprep.subr.bf16.mxu0 0
    %1394 = vmatpush2.bf16.msra.mxu0 0
    %1395 = vmatprep.subr.bf16.mxu0 0
    %1396 = vmatpush2.bf16.msra.mxu0 0
    %1397 = vmatprep.subr.bf16.mxu0 0
    %1398 = vmatpush2.bf16.msra.mxu0 0
    %1399 = vmatprep.subr.bf16.mxu0 0
    %1400 = vmatpush2.bf16.msra.mxu0 0
    %1401 = vmatprep.subr.bf16.mxu0 0
    %1402 = vmatpush2.bf16.msra.mxu0 0
    %1403 = vmatprep.subr.bf16.mxu0 0
    %1404 = vmatpush2.bf16.msra.mxu0 0
    %1405 = vmatprep.subr.bf16.mxu0 0
    %1406 = vmatpush2.bf16.msra.mxu0 0
    %1407 = vmatprep.mubr.bf16.mxu0 0
    %1408 = vmatmul.mubr.bf16.gmra.mxu0 %v1373
    %v1409 = vpop.f32.mrf.mxu0
    %v1410 = vadd.f32 0.0, %v1409
    %v1411 = vpop.f32.mrf.mxu0
    %v1412 = vpop.f32.mrf.mxu0
    %v1413 = vpop.f32.mrf.mxu0
    %1414 = vdwg.mxu0
    %v1415 = vadd.f32 %v272, %v1410
    %v1416 = vxor.u32 %v1415, 2147483648
    %v1417 = vmul.f32 %v1416, 1.442695
    %v1418 = vpow.pop %v1417
    %v1419 = vadd.f32 %v1418, 1.0
    %v1420 = vrcp.pop %v1419
    %v1421 = vmul.f32 1.0, %v1420
    %v1422 = vtanh.pop %v1415
    %v1423 = vmul.f32 %v1421, %v1361
    %1425 = vrot.lane.b32.xlu0 %v1422, 32
    %v1426 = vpop.permute.xlu0 %1425
    %v1428 = vmul.f32 %v1421, %v1426
    %1430 = vrot.lane.b32.xlu0 %v1428, 32
    %v1431 = vpop.permute.xlu0 %1430
    %v1433 = vadd.f32 %v1423, %v1431
    %v1434 = vtanh.pop %v1433
    %1436 = vrot.lane.b32.xlu0 %v1434, 32
    %v1437 = vpop.permute.xlu0 %1436
    %v1439 = vmul.f32 %v1421, %v1437
    %1441 = vrot.lane.b32.xlu0 %v359, 64
    %v1442 = vpop.permute.xlu0 %1441
    %1445 = vrot.lane.b32.xlu0 %v1439, 64
    %v1446 = vpop.permute.xlu0 %1445
    %vm1448 = vcmask 130048
    %v1449 = vsel %vm1448, %v1442, %v1446
    %1451 = vrot.lane.b32.xlu0 %v431, 64
    %v1452 = vpop.permute.xlu0 %1451
    %1455 = vrot.lane.b32.xlu0 %v1367, 64
    %v1456 = vpop.permute.xlu0 %1455
    %v1458 = vsel %vm1448, %v1452, %v1456
    %1460 = vrot.lane.b32.xlu0 %v503, 64
    %v1461 = vpop.permute.xlu0 %1460
    %1464 = vrot.lane.b32.xlu0 %v1295, 64
    %v1465 = vpop.permute.xlu0 %1464
    %v1467 = vsel %vm1448, %v1461, %v1465
    %1469 = vrot.lane.b32.xlu0 %v575, 64
    %v1470 = vpop.permute.xlu0 %1469
    %1473 = vrot.lane.b32.xlu0 %v1223, 64
    %v1474 = vpop.permute.xlu0 %1473
    %v1476 = vsel %vm1448, %v1470, %v1474
    %1478 = vrot.lane.b32.xlu0 %v647, 64
    %v1479 = vpop.permute.xlu0 %1478
    %1482 = vrot.lane.b32.xlu0 %v1151, 64
    %v1483 = vpop.permute.xlu0 %1482
    %v1485 = vsel %vm1448, %v1479, %v1483
    %1487 = vrot.lane.b32.xlu0 %v719, 64
    %v1488 = vpop.permute.xlu0 %1487
    %1491 = vrot.lane.b32.xlu0 %v1079, 64
    %v1492 = vpop.permute.xlu0 %1491
    %v1494 = vsel %vm1448, %v1488, %v1492
    %1496 = vrot.lane.b32.xlu0 %v791, 64
    %v1497 = vpop.permute.xlu0 %1496
    %1500 = vrot.lane.b32.xlu0 %v1007, 64
    %v1501 = vpop.permute.xlu0 %1500
    %v1503 = vsel %vm1448, %v1497, %v1501
    %1505 = vrot.lane.b32.xlu0 %v863, 64
    %v1506 = vpop.permute.xlu0 %1505
    %1509 = vrot.lane.b32.xlu0 %v935, 64
    %v1510 = vpop.permute.xlu0 %1509
    %v1512 = vsel %vm1448, %v1506, %v1510
    %v1513 = vsel %vm1448, %v1510, %v1506
    %v1514 = vsel %vm1448, %v1501, %v1497
    %v1515 = vsel %vm1448, %v1492, %v1488
    %v1516 = vsel %vm1448, %v1483, %v1479
    %v1517 = vsel %vm1448, %v1474, %v1470
    %v1518 = vsel %vm1448, %v1465, %v1461
    %v1519 = vsel %vm1448, %v1456, %v1452
    %v1520 = vsel %vm1448, %v1446, %v1442
    %v1521 = vpack.c.bf16 %v1458, %v1449
    %v1522 = vpack.c.bf16 %v1476, %v1467
    %v1523 = vpack.c.bf16 %v1494, %v1485
    %v1524 = vpack.c.bf16 %v1512, %v1503
    %v1525 = vpack.c.bf16 %v1514, %v1513
    %v1526 = vpack.c.bf16 %v1516, %v1515
    %v1527 = vpack.c.bf16 %v1518, %v1517
    %v1528 = vpack.c.bf16 %v1520, %v1519
    %v1529 = vld [vmem:[%s7] sm:$0xf]
    %v1530 = vld [vmem:[%s7 + $0x4] sm:$0xf]
    %v1531 = vld [vmem:[%s7 + $0x8] sm:$0xf]
    %v1532 = vld [vmem:[%s7 + $0xc] sm:$0xf]
    %v1533 = vld [vmem:[%s8] sm:$0x1]
    %v1535 = vlaneseq
    %v1536 = vshrl.u32 %v1535, 7
    %v1537 = vsub.s32 0, %v1536
    %v1538 = vrot.slane %v1533, %v1537
    %v1544 = vunpack.c.l.b16 %v1529
    %v1545 = vunpack.c.l.b16 %v1530
    %v1546 = vunpack.c.l.b16 %v1531
    %v1547 = vunpack.c.l.b16 %v1532
    %v1548 = vpack.c.b16 %v1545, %v1544
    %v1549 = vpack.c.b16 %v1547, %v1546
    %v1553 = vsel %vm291, %v1521, 0
    %v1556 = vsel %vm291, %v1522, 0
    %v1559 = vsel %vm291, %v1523, 0
    %v1562 = vsel %vm291, %v1524, 0
    %v1565 = vsel %vm291, %v1525, 0
    %v1568 = vsel %vm291, %v1526, 0
    %v1571 = vsel %vm291, %v1527, 0
    %v1574 = vsel %vm291, %v1528, 0
    %1576 = vmatprep.subr.bf16.mxu0 0
    %1577 = vmatpush1.bf16.msra.mxu0 0
    %1578 = vmatprep.subr.bf16.mxu0 0
    %1579 = vmatpush1.bf16.msra.mxu0 0
    %1580 = vmatprep.subr.bf16.mxu0 0
    %1581 = vmatpush1.bf16.msra.mxu0 0
    %1582 = vmatprep.subr.bf16.mxu0 0
    %1583 = vmatpush1.bf16.msra.mxu0 0
    %1584 = vmatprep.subr.bf16.mxu0 0
    %1585 = vmatpush1.bf16.msra.mxu0 0
    %1586 = vmatprep.subr.bf16.mxu0 0
    %1587 = vmatpush1.bf16.msra.mxu0 0
    %1588 = vmatprep.subr.bf16.mxu0 0
    %1589 = vmatpush1.bf16.msra.mxu0 %v1549
    %1590 = vmatprep.subr.bf16.mxu0 0
    %1591 = vmatpush1.bf16.msra.mxu0 %v1548
    %1592 = vmatprep.subr.bf16.mxu0 0
    %1593 = vmatpush2.bf16.msra.mxu0 0
    %1594 = vmatprep.subr.bf16.mxu0 0
    %1595 = vmatpush2.bf16.msra.mxu0 0
    %1596 = vmatprep.subr.bf16.mxu0 0
    %1597 = vmatpush2.bf16.msra.mxu0 0
    %1598 = vmatprep.subr.bf16.mxu0 0
    %1599 = vmatpush2.bf16.msra.mxu0 0
    %1600 = vmatprep.subr.bf16.mxu0 0
    %1601 = vmatpush2.bf16.msra.mxu0 0
    %1602 = vmatprep.subr.bf16.mxu0 0
    %1603 = vmatpush2.bf16.msra.mxu0 0
    %1604 = vmatprep.subr.bf16.mxu0 0
    %1605 = vmatpush2.bf16.msra.mxu0 0
    %1606 = vmatprep.subr.bf16.mxu0 0
    %1607 = vmatpush2.bf16.msra.mxu0 0
    %1608 = vmatprep.mubr.bf16.mxu0 0
    %1609 = vmatmul.mubr.bf16.gmra.mxu0 %v1553
    %v1610 = vpop.f32.mrf.mxu0
    %v1611 = vadd.f32 %v1538, %v1610
    %v1612 = vpop.f32.mrf.mxu0
    %v1613 = vpop.f32.mrf.mxu0
    %v1614 = vadd.f32 %v1538, %v1613
    %v1615 = vpop.f32.mrf.mxu0
    %1616 = vmatprep.mubr.bf16.mxu0 0
    %1617 = vmatmul.mubr.bf16.gmra.mxu0 %v1556
    %v1618 = vpop.f32.mrf.mxu0
    %v1619 = vadd.f32 %v1538, %v1618
    %v1620 = vpop.f32.mrf.mxu0
    %v1621 = vpop.f32.mrf.mxu0
    %v1622 = vadd.f32 %v1538, %v1621
    %v1623 = vpop.f32.mrf.mxu0
    %1624 = vmatprep.mubr.bf16.mxu0 0
    %1625 = vmatmul.mubr.bf16.gmra.mxu0 %v1559
    %v1626 = vpop.f32.mrf.mxu0
    %v1627 = vadd.f32 %v1538, %v1626
    %v1628 = vpop.f32.mrf.mxu0
    %v1629 = vpop.f32.mrf.mxu0
    %v1630 = vadd.f32 %v1538, %v1629
    %v1631 = vpop.f32.mrf.mxu0
    %1632 = vmatprep.mubr.bf16.mxu0 0
    %1633 = vmatmul.mubr.bf16.gmra.mxu0 %v1562
    %v1634 = vpop.f32.mrf.mxu0
    %v1635 = vadd.f32 %v1538, %v1634
    %v1636 = vpop.f32.mrf.mxu0
    %v1637 = vpop.f32.mrf.mxu0
    %v1638 = vadd.f32 %v1538, %v1637
    %v1639 = vpop.f32.mrf.mxu0
    %1640 = vmatprep.mubr.bf16.mxu0 0
    %1641 = vmatmul.mubr.bf16.gmra.mxu0 %v1565
    %v1642 = vpop.f32.mrf.mxu0
    %v1643 = vadd.f32 %v1538, %v1642
    %v1644 = vpop.f32.mrf.mxu0
    %v1645 = vpop.f32.mrf.mxu0
    %v1646 = vadd.f32 %v1538, %v1645
    %v1647 = vpop.f32.mrf.mxu0
    %1648 = vmatprep.mubr.bf16.mxu0 0
    %1649 = vmatmul.mubr.bf16.gmra.mxu0 %v1568
    %v1650 = vpop.f32.mrf.mxu0
    %v1651 = vadd.f32 %v1538, %v1650
    %v1652 = vpop.f32.mrf.mxu0
    %v1653 = vpop.f32.mrf.mxu0
    %v1654 = vadd.f32 %v1538, %v1653
    %v1655 = vpop.f32.mrf.mxu0
    %1656 = vmatprep.mubr.bf16.mxu0 0
    %1657 = vmatmul.mubr.bf16.gmra.mxu0 %v1571
    %v1658 = vpop.f32.mrf.mxu0
    %v1659 = vadd.f32 %v1538, %v1658
    %v1660 = vpop.f32.mrf.mxu0
    %v1661 = vpop.f32.mrf.mxu0
    %v1662 = vadd.f32 %v1538, %v1661
    %v1663 = vpop.f32.mrf.mxu0
    %1664 = vmatprep.mubr.bf16.mxu0 0
    %1665 = vmatmul.mubr.bf16.gmra.mxu0 %v1574
    %v1666 = vpop.f32.mrf.mxu0
    %v1667 = vadd.f32 %v1538, %v1666
    %v1668 = vpop.f32.mrf.mxu0
    %v1669 = vpop.f32.mrf.mxu0
    %v1670 = vadd.f32 %v1538, %v1669
    %v1671 = vpop.f32.mrf.mxu0
    %1672 = vdwg.mxu0
    %v1673 = vtanh.pop %v1611
    %v1674 = vtanh.pop %v1614
    %v1675 = vtanh.pop %v1619
    %v1676 = vtanh.pop %v1622
    %v1677 = vtanh.pop %v1627
    %v1678 = vtanh.pop %v1630
    %v1679 = vtanh.pop %v1635
    %v1680 = vtanh.pop %v1638
    %v1681 = vtanh.pop %v1643
    %v1682 = vtanh.pop %v1646
    %v1683 = vtanh.pop %v1651
    %v1684 = vtanh.pop %v1654
    %v1685 = vtanh.pop %v1659
    %v1686 = vtanh.pop %v1662
    %v1687 = vtanh.pop %v1667
    %v1688 = vtanh.pop %v1670
    %v1689 = vsel %vm1448, %v1673, -inf
    %1690 = vmax.xlane.f32.xlu0 %v1689
    %v1691 = vpop.xlane.xlu0 %1690
    %v1692 = vsel %vm1448, %v1674, -inf
    %1693 = vmax.xlane.f32.xlu0 %v1692
    %v1694 = vpop.xlane.xlu0 %1693
    %v1695 = vsel %vm1448, %v1675, -inf
    %1696 = vmax.xlane.f32.xlu0 %v1695
    %v1697 = vpop.xlane.xlu0 %1696
    %v1698 = vsel %vm1448, %v1676, -inf
    %1699 = vmax.xlane.f32.xlu0 %v1698
    %v1700 = vpop.xlane.xlu0 %1699
    %v1701 = vsel %vm1448, %v1677, -inf
    %1702 = vmax.xlane.f32.xlu0 %v1701
    %v1703 = vpop.xlane.xlu0 %1702
    %v1704 = vsel %vm1448, %v1678, -inf
    %1705 = vmax.xlane.f32.xlu0 %v1704
    %v1706 = vpop.xlane.xlu0 %1705
    %v1707 = vsel %vm1448, %v1679, -inf
    %1708 = vmax.xlane.f32.xlu0 %v1707
    %v1709 = vpop.xlane.xlu0 %1708
    %v1710 = vsel %vm1448, %v1680, -inf
    %1711 = vmax.xlane.f32.xlu0 %v1710
    %v1712 = vpop.xlane.xlu0 %1711
    %v1713 = vsel %vm1448, %v1681, -inf
    %1714 = vmax.xlane.f32.xlu0 %v1713
    %v1715 = vpop.xlane.xlu0 %1714
    %v1716 = vsel %vm1448, %v1682, -inf
    %1717 = vmax.xlane.f32.xlu0 %v1716
    %v1718 = vpop.xlane.xlu0 %1717
    %v1719 = vsel %vm1448, %v1683, -inf
    %1720 = vmax.xlane.f32.xlu0 %v1719
    %v1721 = vpop.xlane.xlu0 %1720
    %v1722 = vsel %vm1448, %v1684, -inf
    %1723 = vmax.xlane.f32.xlu0 %v1722
    %v1724 = vpop.xlane.xlu0 %1723
    %v1725 = vsel %vm1448, %v1685, -inf
    %1726 = vmax.xlane.f32.xlu0 %v1725
    %v1727 = vpop.xlane.xlu0 %1726
    %v1728 = vsel %vm1448, %v1686, -inf
    %1729 = vmax.xlane.f32.xlu0 %v1728
    %v1730 = vpop.xlane.xlu0 %1729
    %v1731 = vsel %vm1448, %v1687, -inf
    %1732 = vmax.xlane.f32.xlu0 %v1731
    %v1733 = vpop.xlane.xlu0 %1732
    %v1734 = vsel %vm1448, %v1688, -inf
    %1735 = vmax.xlane.f32.xlu0 %v1734
    %v1736 = vpop.xlane.xlu0 %1735
    %v1737 = vsub.f32 %v1673, %v1691
    %v1738 = vsub.f32 %v1674, %v1694
    %v1739 = vsub.f32 %v1675, %v1697
    %v1740 = vsub.f32 %v1676, %v1700
    %v1741 = vsub.f32 %v1677, %v1703
    %v1742 = vsub.f32 %v1678, %v1706
    %v1743 = vsub.f32 %v1679, %v1709
    %v1744 = vsub.f32 %v1680, %v1712
    %v1745 = vsub.f32 %v1681, %v1715
    %v1746 = vsub.f32 %v1682, %v1718
    %v1747 = vsub.f32 %v1683, %v1721
    %v1748 = vsub.f32 %v1684, %v1724
    %v1749 = vsub.f32 %v1685, %v1727
    %v1750 = vsub.f32 %v1686, %v1730
    %v1751 = vsub.f32 %v1687, %v1733
    %v1752 = vsub.f32 %v1688, %v1736
    %v1753 = vmul.f32 %v1737, 1.442695
    %v1754 = vpow.pop %v1753
    %v1755 = vmul.f32 %v1738, 1.442695
    %v1756 = vpow.pop %v1755
    %v1757 = vmul.f32 %v1739, 1.442695
    %v1758 = vpow.pop %v1757
    %v1759 = vmul.f32 %v1740, 1.442695
    %v1760 = vpow.pop %v1759
    %v1761 = vmul.f32 %v1741, 1.442695
    %v1762 = vpow.pop %v1761
    %v1763 = vmul.f32 %v1742, 1.442695
    %v1764 = vpow.pop %v1763
    %v1765 = vmul.f32 %v1743, 1.442695
    %v1766 = vpow.pop %v1765
    %v1767 = vmul.f32 %v1744, 1.442695
    %v1768 = vpow.pop %v1767
    %v1769 = vmul.f32 %v1745, 1.442695
    %v1770 = vpow.pop %v1769
    %v1771 = vmul.f32 %v1746, 1.442695
    %v1772 = vpow.pop %v1771
    %v1773 = vmul.f32 %v1747, 1.442695
    %v1774 = vpow.pop %v1773
    %v1775 = vmul.f32 %v1748, 1.442695
    %v1776 = vpow.pop %v1775
    %v1777 = vmul.f32 %v1749, 1.442695
    %v1778 = vpow.pop %v1777
    %v1779 = vmul.f32 %v1750, 1.442695
    %v1780 = vpow.pop %v1779
    %v1781 = vmul.f32 %v1751, 1.442695
    %v1782 = vpow.pop %v1781
    %v1783 = vmul.f32 %v1752, 1.442695
    %v1784 = vpow.pop %v1783
    %v1785 = vsel %vm1448, %v1754, 0.0
    %1786 = vadd.xlane.f32.xlu0 %v1785
    %v1787 = vpop.xlane.xlu0 %1786
    %v1788 = vsel %vm1448, %v1756, 0.0
    %1789 = vadd.xlane.f32.xlu0 %v1788
    %v1790 = vpop.xlane.xlu0 %1789
    %v1791 = vsel %vm1448, %v1758, 0.0
    %1792 = vadd.xlane.f32.xlu0 %v1791
    %v1793 = vpop.xlane.xlu0 %1792
    %v1794 = vsel %vm1448, %v1760, 0.0
    %1795 = vadd.xlane.f32.xlu0 %v1794
    %v1796 = vpop.xlane.xlu0 %1795
    %v1797 = vsel %vm1448, %v1762, 0.0
    %1798 = vadd.xlane.f32.xlu0 %v1797
    %v1799 = vpop.xlane.xlu0 %1798
    %v1800 = vsel %vm1448, %v1764, 0.0
    %1801 = vadd.xlane.f32.xlu0 %v1800
    %v1802 = vpop.xlane.xlu0 %1801
    %v1803 = vsel %vm1448, %v1766, 0.0
    %1804 = vadd.xlane.f32.xlu0 %v1803
    %v1805 = vpop.xlane.xlu0 %1804
    %v1806 = vsel %vm1448, %v1768, 0.0
    %1807 = vadd.xlane.f32.xlu0 %v1806
    %v1808 = vpop.xlane.xlu0 %1807
    %v1809 = vsel %vm1448, %v1770, 0.0
    %1810 = vadd.xlane.f32.xlu0 %v1809
    %v1811 = vpop.xlane.xlu0 %1810
    %v1812 = vsel %vm1448, %v1772, 0.0
    %1813 = vadd.xlane.f32.xlu0 %v1812
    %v1814 = vpop.xlane.xlu0 %1813
    %v1815 = vsel %vm1448, %v1774, 0.0
    %1816 = vadd.xlane.f32.xlu0 %v1815
    %v1817 = vpop.xlane.xlu0 %1816
    %v1818 = vsel %vm1448, %v1776, 0.0
    %1819 = vadd.xlane.f32.xlu0 %v1818
    %v1820 = vpop.xlane.xlu0 %1819
    %v1821 = vsel %vm1448, %v1778, 0.0
    %1822 = vadd.xlane.f32.xlu0 %v1821
    %v1823 = vpop.xlane.xlu0 %1822
    %v1824 = vsel %vm1448, %v1780, 0.0
    %1825 = vadd.xlane.f32.xlu0 %v1824
    %v1826 = vpop.xlane.xlu0 %1825
    %v1827 = vsel %vm1448, %v1782, 0.0
    %1828 = vadd.xlane.f32.xlu0 %v1827
    %v1829 = vpop.xlane.xlu0 %1828
    %v1830 = vsel %vm1448, %v1784, 0.0
    %1831 = vadd.xlane.f32.xlu0 %v1830
    %v1832 = vpop.xlane.xlu0 %1831
    %v1833 = vrcp.pop %v1787
    %v1834 = vmul.f32 %v1754, %v1833
    %v1835 = vrcp.pop %v1790
    %v1836 = vmul.f32 %v1756, %v1835
    %v1837 = vrcp.pop %v1793
    %v1838 = vmul.f32 %v1758, %v1837
    %v1839 = vrcp.pop %v1796
    %v1840 = vmul.f32 %v1760, %v1839
    %v1841 = vrcp.pop %v1799
    %v1842 = vmul.f32 %v1762, %v1841
    %v1843 = vrcp.pop %v1802
    %v1844 = vmul.f32 %v1764, %v1843
    %v1845 = vrcp.pop %v1805
    %v1846 = vmul.f32 %v1766, %v1845
    %v1847 = vrcp.pop %v1808
    %v1848 = vmul.f32 %v1768, %v1847
    %v1849 = vrcp.pop %v1811
    %v1850 = vmul.f32 %v1770, %v1849
    %v1851 = vrcp.pop %v1814
    %v1852 = vmul.f32 %v1772, %v1851
    %v1853 = vrcp.pop %v1817
    %v1854 = vmul.f32 %v1774, %v1853
    %v1855 = vrcp.pop %v1820
    %v1856 = vmul.f32 %v1776, %v1855
    %v1857 = vrcp.pop %v1823
    %v1858 = vmul.f32 %v1778, %v1857
    %v1859 = vrcp.pop %v1826
    %v1860 = vmul.f32 %v1780, %v1859
    %v1861 = vrcp.pop %v1829
    %v1862 = vmul.f32 %v1782, %v1861
    %v1863 = vrcp.pop %v1832
    %v1864 = vmul.f32 %v1784, %v1863
    %vm1865 = vcmask 261248
    %v1866 = vsel %vm1865, %v1673, -inf
    %v1867 = vsel %vm1865, %v1674, -inf
    %v1868 = vsel %vm1865, %v1675, -inf
    %v1869 = vsel %vm1865, %v1676, -inf
    %v1870 = vsel %vm1865, %v1677, -inf
    %v1871 = vmax.f32 %v1866, %v1870
    %v1872 = vsel %vm1865, %v1678, -inf
    %v1873 = vmax.f32 %v1867, %v1872
    %v1874 = vsel %vm1865, %v1679, -inf
    %v1875 = vmax.f32 %v1868, %v1874
    %v1876 = vsel %vm1865, %v1680, -inf
    %v1877 = vmax.f32 %v1869, %v1876
    %v1878 = vsel %vm1865, %v1681, -inf
    %v1879 = vmax.f32 %v1871, %v1878
    %v1880 = vsel %vm1865, %v1682, -inf
    %v1881 = vmax.f32 %v1873, %v1880
    %v1882 = vsel %vm1865, %v1683, -inf
    %v1883 = vmax.f32 %v1875, %v1882
    %v1884 = vsel %vm1865, %v1684, -inf
    %v1885 = vmax.f32 %v1877, %v1884
    %v1886 = vsel %vm1865, %v1685, -inf
    %v1887 = vmax.f32 %v1879, %v1886
    %v1888 = vsel %vm1865, %v1686, -inf
    %v1889 = vmax.f32 %v1881, %v1888
    %v1890 = vsel %vm1865, %v1687, -inf
    %v1891 = vmax.f32 %v1883, %v1890
    %v1892 = vsel %vm1865, %v1688, -inf
    %v1893 = vmax.f32 %v1885, %v1892
    %v1894 = vmax.f32 %v1887, %v1889
    %v1895 = vmax.f32 %v1891, %v1893
    %v1896 = vmax.f32 %v1894, %v1895
    %v1897 = vsub.f32 %v1673, %v1896
    %v1898 = vsub.f32 %v1674, %v1896
    %v1899 = vsub.f32 %v1675, %v1896
    %v1900 = vsub.f32 %v1676, %v1896
    %v1901 = vsub.f32 %v1677, %v1896
    %v1902 = vsub.f32 %v1678, %v1896
    %v1903 = vsub.f32 %v1679, %v1896
    %v1904 = vsub.f32 %v1680, %v1896
    %v1905 = vsub.f32 %v1681, %v1896
    %v1906 = vsub.f32 %v1682, %v1896
    %v1907 = vsub.f32 %v1683, %v1896
    %v1908 = vsub.f32 %v1684, %v1896
    %v1909 = vsub.f32 %v1685, %v1896
    %v1910 = vsub.f32 %v1686, %v1896
    %v1911 = vsub.f32 %v1687, %v1896
    %v1912 = vsub.f32 %v1688, %v1896
    %v1913 = vmul.f32 %v1897, 1.442695
    %v1914 = vpow.pop %v1913
    %v1915 = vmul.f32 %v1898, 1.442695
    %v1916 = vpow.pop %v1915
    %v1917 = vmul.f32 %v1899, 1.442695
    %v1918 = vpow.pop %v1917
    %v1919 = vmul.f32 %v1900, 1.442695
    %v1920 = vpow.pop %v1919
    %v1921 = vmul.f32 %v1901, 1.442695
    %v1922 = vpow.pop %v1921
    %v1923 = vmul.f32 %v1902, 1.442695
    %v1924 = vpow.pop %v1923
    %v1925 = vmul.f32 %v1903, 1.442695
    %v1926 = vpow.pop %v1925
    %v1927 = vmul.f32 %v1904, 1.442695
    %v1928 = vpow.pop %v1927
    %v1929 = vmul.f32 %v1905, 1.442695
    %v1930 = vpow.pop %v1929
    %v1931 = vmul.f32 %v1906, 1.442695
    %v1932 = vpow.pop %v1931
    %v1933 = vmul.f32 %v1907, 1.442695
    %v1934 = vpow.pop %v1933
    %v1935 = vmul.f32 %v1908, 1.442695
    %v1936 = vpow.pop %v1935
    %v1937 = vmul.f32 %v1909, 1.442695
    %v1938 = vpow.pop %v1937
    %v1939 = vmul.f32 %v1910, 1.442695
    %v1940 = vpow.pop %v1939
    %v1941 = vmul.f32 %v1911, 1.442695
    %v1942 = vpow.pop %v1941
    %v1943 = vmul.f32 %v1912, 1.442695
    %v1944 = vpow.pop %v1943
    %v1945 = vsel %vm1865, %v1914, 0.0
    %v1946 = vsel %vm1865, %v1916, 0.0
    %v1947 = vadd.f32 %v1945, %v1946
    %v1948 = vsel %vm1865, %v1918, 0.0
    %v1949 = vadd.f32 %v1947, %v1948
    %v1950 = vsel %vm1865, %v1920, 0.0
    %v1951 = vadd.f32 %v1949, %v1950
    %v1952 = vsel %vm1865, %v1922, 0.0
    %v1953 = vadd.f32 %v1951, %v1952
    %v1954 = vsel %vm1865, %v1924, 0.0
    %v1955 = vadd.f32 %v1953, %v1954
    %v1956 = vsel %vm1865, %v1926, 0.0
    %v1957 = vadd.f32 %v1955, %v1956
    %v1958 = vsel %vm1865, %v1928, 0.0
    %v1959 = vadd.f32 %v1957, %v1958
    %v1960 = vsel %vm1865, %v1930, 0.0
    %v1961 = vadd.f32 %v1959, %v1960
    %v1962 = vsel %vm1865, %v1932, 0.0
    %v1963 = vadd.f32 %v1961, %v1962
    %v1964 = vsel %vm1865, %v1934, 0.0
    %v1965 = vadd.f32 %v1963, %v1964
    %v1966 = vsel %vm1865, %v1936, 0.0
    %v1967 = vadd.f32 %v1965, %v1966
    %v1968 = vsel %vm1865, %v1938, 0.0
    %v1969 = vadd.f32 %v1967, %v1968
    %v1970 = vsel %vm1865, %v1940, 0.0
    %v1971 = vadd.f32 %v1969, %v1970
    %v1972 = vsel %vm1865, %v1942, 0.0
    %v1973 = vadd.f32 %v1971, %v1972
    %v1974 = vsel %vm1865, %v1944, 0.0
    %v1975 = vadd.f32 %v1973, %v1974
    %v1976 = vrcp.pop %v1975
    %v1977 = vmul.f32 %v1914, %v1976
    %v1978 = vmul.f32 %v1916, %v1976
    %v1979 = vmul.f32 %v1918, %v1976
    %v1980 = vmul.f32 %v1920, %v1976
    %v1981 = vmul.f32 %v1922, %v1976
    %v1982 = vmul.f32 %v1924, %v1976
    %v1983 = vmul.f32 %v1926, %v1976
    %v1984 = vmul.f32 %v1928, %v1976
    %v1985 = vmul.f32 %v1930, %v1976
    %v1986 = vmul.f32 %v1932, %v1976
    %v1987 = vmul.f32 %v1934, %v1976
    %v1988 = vmul.f32 %v1936, %v1976
    %v1989 = vmul.f32 %v1938, %v1976
    %v1990 = vmul.f32 %v1940, %v1976
    %v1991 = vmul.f32 %v1942, %v1976
    %v1992 = vmul.f32 %v1944, %v1976
    %2009 = vrot.lane.b32.xlu0 %v1977, 112
    %v2010 = vpop.permute.xlu0 %2009
    %2011 = vrot.lane.b32.xlu0 %v1978, 112
    %v2012 = vpop.permute.xlu0 %2011
    %2013 = vrot.lane.b32.xlu0 %v1979, 112
    %v2014 = vpop.permute.xlu0 %2013
    %2015 = vrot.lane.b32.xlu0 %v1980, 112
    %v2016 = vpop.permute.xlu0 %2015
    %2017 = vrot.lane.b32.xlu0 %v1981, 112
    %v2018 = vpop.permute.xlu0 %2017
    %2019 = vrot.lane.b32.xlu0 %v1982, 112
    %v2020 = vpop.permute.xlu0 %2019
    %2021 = vrot.lane.b32.xlu0 %v1983, 112
    %v2022 = vpop.permute.xlu0 %2021
    %2023 = vrot.lane.b32.xlu0 %v1984, 112
    %v2024 = vpop.permute.xlu0 %2023
    %2025 = vrot.lane.b32.xlu0 %v1985, 112
    %v2026 = vpop.permute.xlu0 %2025
    %2027 = vrot.lane.b32.xlu0 %v1986, 112
    %v2028 = vpop.permute.xlu0 %2027
    %2029 = vrot.lane.b32.xlu0 %v1987, 112
    %v2030 = vpop.permute.xlu0 %2029
    %2031 = vrot.lane.b32.xlu0 %v1988, 112
    %v2032 = vpop.permute.xlu0 %2031
    %2033 = vrot.lane.b32.xlu0 %v1989, 112
    %v2034 = vpop.permute.xlu0 %2033
    %2035 = vrot.lane.b32.xlu0 %v1990, 112
    %v2036 = vpop.permute.xlu0 %2035
    %2037 = vrot.lane.b32.xlu0 %v1991, 112
    %v2038 = vpop.permute.xlu0 %2037
    %2039 = vrot.lane.b32.xlu0 %v1992, 112
    %v2040 = vpop.permute.xlu0 %2039
    %v2057 = vmul.f32 %v1834, %v2010
    %v2058 = vmul.f32 %v1836, %v2012
    %v2059 = vmul.f32 %v1838, %v2014
    %v2060 = vmul.f32 %v1840, %v2016
    %v2061 = vmul.f32 %v1842, %v2018
    %v2062 = vmul.f32 %v1844, %v2020
    %v2063 = vmul.f32 %v1846, %v2022
    %v2064 = vmul.f32 %v1848, %v2024
    %v2065 = vmul.f32 %v1850, %v2026
    %v2066 = vmul.f32 %v1852, %v2028
    %v2067 = vmul.f32 %v1854, %v2030
    %v2068 = vmul.f32 %v1856, %v2032
    %v2069 = vmul.f32 %v1858, %v2034
    %v2070 = vmul.f32 %v1860, %v2036
    %v2071 = vmul.f32 %v1862, %v2038
    %v2072 = vmul.f32 %v1864, %v2040
    %v2073 = vsel %vm1448, %v2057, 0.0
    %v2074 = vsel %vm1448, %v2058, 0.0
    %v2075 = vadd.f32 %v2073, %v2074
    %v2076 = vsel %vm1448, %v2059, 0.0
    %v2077 = vadd.f32 %v2075, %v2076
    %v2078 = vsel %vm1448, %v2060, 0.0
    %v2079 = vadd.f32 %v2077, %v2078
    %v2080 = vsel %vm1448, %v2061, 0.0
    %v2081 = vadd.f32 %v2079, %v2080
    %v2082 = vsel %vm1448, %v2062, 0.0
    %v2083 = vadd.f32 %v2081, %v2082
    %v2084 = vsel %vm1448, %v2063, 0.0
    %v2085 = vadd.f32 %v2083, %v2084
    %v2086 = vsel %vm1448, %v2064, 0.0
    %v2087 = vadd.f32 %v2085, %v2086
    %v2088 = vsel %vm1448, %v2065, 0.0
    %v2089 = vadd.f32 %v2087, %v2088
    %v2090 = vsel %vm1448, %v2066, 0.0
    %v2091 = vadd.f32 %v2089, %v2090
    %v2092 = vsel %vm1448, %v2067, 0.0
    %v2093 = vadd.f32 %v2091, %v2092
    %v2094 = vsel %vm1448, %v2068, 0.0
    %v2095 = vadd.f32 %v2093, %v2094
    %v2096 = vsel %vm1448, %v2069, 0.0
    %v2097 = vadd.f32 %v2095, %v2096
    %v2098 = vsel %vm1448, %v2070, 0.0
    %v2099 = vadd.f32 %v2097, %v2098
    %v2100 = vsel %vm1448, %v2071, 0.0
    %v2101 = vadd.f32 %v2099, %v2100
    %v2102 = vsel %vm1448, %v2072, 0.0
    %v2103 = vadd.f32 %v2101, %v2102
    %2105 = vset.pattern.permute.xlu0 0
    %2106 = vperm.xlu0 %2105, %v2103
    %v2107 = vpop.permute.xlu0 %2106
    %v2109 = vmul.f32 %v2107, %v1449
    %v2110 = vadd.f32 %v2109, 0.0
    %2111 = vset.pattern.permute.xlu0 1
    %2112 = vperm.xlu0 %2111, %v2103
    %v2113 = vpop.permute.xlu0 %2112
    %v2115 = vmul.f32 %v2113, %v1458
    %v2116 = vadd.f32 %v2110, %v2115
    %2117 = vset.pattern.permute.xlu0 2
    %2118 = vperm.xlu0 %2117, %v2103
    %v2119 = vpop.permute.xlu0 %2118
    %v2121 = vmul.f32 %v2119, %v1467
    %v2122 = vadd.f32 %v2116, %v2121
    %2123 = vset.pattern.permute.xlu0 3
    %2124 = vperm.xlu0 %2123, %v2103
    %v2125 = vpop.permute.xlu0 %2124
    %v2127 = vmul.f32 %v2125, %v1476
    %v2128 = vadd.f32 %v2122, %v2127
    %2129 = vset.pattern.permute.xlu0 4
    %2130 = vperm.xlu0 %2129, %v2103
    %v2131 = vpop.permute.xlu0 %2130
    %v2133 = vmul.f32 %v2131, %v1485
    %v2134 = vadd.f32 %v2128, %v2133
    %2135 = vset.pattern.permute.xlu0 5
    %2136 = vperm.xlu0 %2135, %v2103
    %v2137 = vpop.permute.xlu0 %2136
    %v2139 = vmul.f32 %v2137, %v1494
    %v2140 = vadd.f32 %v2134, %v2139
    %2141 = vset.pattern.permute.xlu0 6
    %2142 = vperm.xlu0 %2141, %v2103
    %v2143 = vpop.permute.xlu0 %2142
    %v2145 = vmul.f32 %v2143, %v1503
    %v2146 = vadd.f32 %v2140, %v2145
    %2147 = vset.pattern.permute.xlu0 7
    %2148 = vperm.xlu0 %2147, %v2103
    %v2149 = vpop.permute.xlu0 %2148
    %v2151 = vmul.f32 %v2149, %v1512
    %v2152 = vadd.f32 %v2146, %v2151
    %2153 = vset.pattern.permute.xlu0 8
    %2154 = vperm.xlu0 %2153, %v2103
    %v2155 = vpop.permute.xlu0 %2154
    %v2157 = vmul.f32 %v2155, %v1513
    %v2158 = vadd.f32 %v2152, %v2157
    %2159 = vset.pattern.permute.xlu0 9
    %2160 = vperm.xlu0 %2159, %v2103
    %v2161 = vpop.permute.xlu0 %2160
    %v2163 = vmul.f32 %v2161, %v1514
    %v2164 = vadd.f32 %v2158, %v2163
    %2165 = vset.pattern.permute.xlu0 10
    %2166 = vperm.xlu0 %2165, %v2103
    %v2167 = vpop.permute.xlu0 %2166
    %v2169 = vmul.f32 %v2167, %v1515
    %v2170 = vadd.f32 %v2164, %v2169
    %2171 = vset.pattern.permute.xlu0 11
    %2172 = vperm.xlu0 %2171, %v2103
    %v2173 = vpop.permute.xlu0 %2172
    %v2175 = vmul.f32 %v2173, %v1516
    %v2176 = vadd.f32 %v2170, %v2175
    %2177 = vset.pattern.permute.xlu0 12
    %2178 = vperm.xlu0 %2177, %v2103
    %v2179 = vpop.permute.xlu0 %2178
    %v2181 = vmul.f32 %v2179, %v1517
    %v2182 = vadd.f32 %v2176, %v2181
    %2183 = vset.pattern.permute.xlu0 13
    %2184 = vperm.xlu0 %2183, %v2103
    %v2185 = vpop.permute.xlu0 %2184
    %v2187 = vmul.f32 %v2185, %v1518
    %v2188 = vadd.f32 %v2182, %v2187
    %2189 = vset.pattern.permute.xlu0 14
    %2190 = vperm.xlu0 %2189, %v2103
    %v2191 = vpop.permute.xlu0 %2190
    %v2193 = vmul.f32 %v2191, %v1519
    %v2194 = vadd.f32 %v2188, %v2193
    %2195 = vset.pattern.permute.xlu0 15
    %2196 = vperm.xlu0 %2195, %v2103
    %v2197 = vpop.permute.xlu0 %2196
    %v2199 = vmul.f32 %v2197, %v1520
    %v2200 = vadd.f32 %v2194, %v2199
    %v2201 = vld [vmem:[%s4] sm:$0xff]
    %v2202 = vld [vmem:[%s4 + $0x8] sm:$0xff]
    %v2203 = vld [vmem:[%s5] sm:$0xff]
    %2205 = vrot.lane.b32.xlu0 %v2200, 112
    %v2206 = vpop.permute.xlu0 %2205
    %2209 = vrot.lane.b32.xlu0 %v2203, 16
    %v2210 = vpop.permute.xlu0 %2209
    %vm2212 = vcmask 916480
    %v2213 = vsel %vm2212, %v2202, %v2206
    %v2214 = vsel %vm1448, %v2206, %v2210
    %v2215 = vpack.c.bf16 %v2201, %v2201
    %v2216 = vpack.c.bf16 %v2213, %v2213
    %v2217 = vpack.c.bf16 %v2214, %v2214
    %v2218 = vld [vmem:[%s9] sm:$0xf]
    %v2219 = vld [vmem:[%s9 + $0x4] sm:$0xf]
    %v2220 = vld [vmem:[%s9 + $0x8] sm:$0xf]
    %v2221 = vld [vmem:[%s9 + $0xc] sm:$0xf]
    %v2222 = vld [vmem:[%s9 + $0x10] sm:$0xf]
    %v2223 = vld [vmem:[%s9 + $0x14] sm:$0xf]
    %v2224 = vld [vmem:[%s9 + $0x18] sm:$0xf]
    %v2225 = vld [vmem:[%s9 + $0x1c] sm:$0xf]
    %v2226 = vld [vmem:[%s9 + $0x20] sm:$0xf]
    %v2227 = vld [vmem:[%s9 + $0x24] sm:$0xf]
    %v2228 = vld [vmem:[%s9 + $0x28] sm:$0xf]
    %v2229 = vld [vmem:[%s9 + $0x2c] sm:$0xf]
    %v2230 = vld [vmem:[%s9 + $0x30] sm:$0xf]
    %v2231 = vld [vmem:[%s9 + $0x34] sm:$0xf]
    %v2232 = vld [vmem:[%s9 + $0x38] sm:$0xf]
    %v2233 = vld [vmem:[%s9 + $0x3c] sm:$0xf]
    %v2234 = vld [vmem:[%s9 + $0x40] sm:$0xf]
    %v2235 = vld [vmem:[%s9 + $0x44] sm:$0xf]
    %v2236 = vld [vmem:[%s9 + $0x48] sm:$0xf]
    %v2237 = vld [vmem:[%s9 + $0x4c] sm:$0xf]
    %v2238 = vld [vmem:[%s9 + $0x50] sm:$0xf]
    %v2239 = vld [vmem:[%s9 + $0x54] sm:$0xf]
    %v2240 = vld [vmem:[%s9 + $0x58] sm:$0xf]
    %v2241 = vld [vmem:[%s9 + $0x5c] sm:$0xf]
    %v2242 = vld [vmem:[%s9 + $0x60] sm:$0xf]
    %v2243 = vld [vmem:[%s9 + $0x64] sm:$0xf]
    %v2244 = vld [vmem:[%s9 + $0x68] sm:$0xf]
    %v2245 = vld [vmem:[%s9 + $0x6c] sm:$0xf]
    %v2246 = vld [vmem:[%s9 + $0x70] sm:$0xf]
    %v2247 = vld [vmem:[%s9 + $0x74] sm:$0xf]
    %v2248 = vld [vmem:[%s9 + $0x78] sm:$0xf]
    %v2249 = vld [vmem:[%s9 + $0x7c] sm:$0xf]
    %v2250 = vld [vmem:[%s9 + $0x80] sm:$0xf]
    %v2251 = vld [vmem:[%s9 + $0x84] sm:$0xf]
    %v2252 = vld [vmem:[%s9 + $0x88] sm:$0xf]
    %v2253 = vld [vmem:[%s9 + $0x8c] sm:$0xf]
    %v2254 = vld [vmem:[%s10] sm:$0x1]
    %v2256 = vlaneseq
    %v2257 = vshrl.u32 %v2256, 7
    %v2258 = vsub.s32 0, %v2257
    %v2259 = vrot.slane %v2254, %v2258
    %v2297 = vunpack.c.l.b16 %v2218
    %v2298 = vunpack.c.l.b16 %v2219
    %v2299 = vunpack.c.l.b16 %v2220
    %v2300 = vunpack.c.l.b16 %v2221
    %v2301 = vunpack.c.l.b16 %v2222
    %v2302 = vunpack.c.l.b16 %v2223
    %v2303 = vunpack.c.l.b16 %v2224
    %v2304 = vunpack.c.l.b16 %v2225
    %v2305 = vunpack.c.l.b16 %v2226
    %v2306 = vunpack.c.l.b16 %v2227
    %v2307 = vunpack.c.l.b16 %v2228
    %v2308 = vunpack.c.l.b16 %v2229
    %v2309 = vunpack.c.l.b16 %v2230
    %v2310 = vunpack.c.l.b16 %v2231
    %v2311 = vunpack.c.l.b16 %v2232
    %v2312 = vunpack.c.l.b16 %v2233
    %v2313 = vunpack.c.l.b16 %v2234
    %v2314 = vunpack.c.l.b16 %v2235
    %v2315 = vunpack.c.l.b16 %v2236
    %v2316 = vunpack.c.l.b16 %v2237
    %v2317 = vunpack.c.l.b16 %v2238
    %v2318 = vunpack.c.l.b16 %v2239
    %v2319 = vunpack.c.l.b16 %v2240
    %v2320 = vunpack.c.l.b16 %v2241
    %v2321 = vunpack.c.l.b16 %v2242
    %v2322 = vunpack.c.l.b16 %v2243
    %v2323 = vunpack.c.l.b16 %v2244
    %v2324 = vunpack.c.l.b16 %v2245
    %v2325 = vunpack.c.l.b16 %v2246
    %v2326 = vunpack.c.l.b16 %v2247
    %v2327 = vunpack.c.l.b16 %v2248
    %v2328 = vunpack.c.l.b16 %v2249
    %v2329 = vunpack.c.l.b16 %v2250
    %v2330 = vunpack.c.l.b16 %v2251
    %v2331 = vunpack.c.l.b16 %v2252
    %v2332 = vunpack.c.l.b16 %v2253
    %v2333 = vpack.c.b16 %v2298, %v2297
    %v2334 = vpack.c.b16 %v2300, %v2299
    %v2335 = vpack.c.b16 %v2302, %v2301
    %v2336 = vpack.c.b16 %v2304, %v2303
    %v2337 = vpack.c.b16 %v2306, %v2305
    %v2338 = vpack.c.b16 %v2308, %v2307
    %v2339 = vpack.c.b16 %v2310, %v2309
    %v2340 = vpack.c.b16 %v2312, %v2311
    %v2341 = vpack.c.b16 %v2314, %v2313
    %v2342 = vpack.c.b16 %v2316, %v2315
    %v2343 = vpack.c.b16 %v2318, %v2317
    %v2344 = vpack.c.b16 %v2320, %v2319
    %v2345 = vpack.c.b16 %v2322, %v2321
    %v2346 = vpack.c.b16 %v2324, %v2323
    %v2347 = vpack.c.b16 %v2326, %v2325
    %v2348 = vpack.c.b16 %v2328, %v2327
    %v2349 = vpack.c.b16 %v2330, %v2329
    %v2350 = vpack.c.b16 %v2332, %v2331
    %v2370 = vsel %vm291, %v2217, 0
    %2372 = vmatprep.subr.bf16.mxu0 0
    %2373 = vmatpush1.bf16.msra.mxu0 %v2340
    %2374 = vmatprep.subr.bf16.mxu0 0
    %2375 = vmatpush1.bf16.msra.mxu0 %v2339
    %2376 = vmatprep.subr.bf16.mxu0 0
    %2377 = vmatpush1.bf16.msra.mxu0 %v2338
    %2378 = vmatprep.subr.bf16.mxu0 0
    %2379 = vmatpush1.bf16.msra.mxu0 %v2337
    %2380 = vmatprep.subr.bf16.mxu0 0
    %2381 = vmatpush1.bf16.msra.mxu0 %v2336
    %2382 = vmatprep.subr.bf16.mxu0 0
    %2383 = vmatpush1.bf16.msra.mxu0 %v2335
    %2384 = vmatprep.subr.bf16.mxu0 0
    %2385 = vmatpush1.bf16.msra.mxu0 %v2334
    %2386 = vmatprep.subr.bf16.mxu0 0
    %2387 = vmatpush1.bf16.msra.mxu0 %v2333
    %2388 = vmatprep.subr.bf16.mxu0 0
    %2389 = vmatpush2.bf16.msra.mxu0 %v2348
    %2390 = vmatprep.subr.bf16.mxu0 0
    %2391 = vmatpush2.bf16.msra.mxu0 %v2347
    %2392 = vmatprep.subr.bf16.mxu0 0
    %2393 = vmatpush2.bf16.msra.mxu0 %v2346
    %2394 = vmatprep.subr.bf16.mxu0 0
    %2395 = vmatpush2.bf16.msra.mxu0 %v2345
    %2396 = vmatprep.subr.bf16.mxu0 0
    %2397 = vmatpush2.bf16.msra.mxu0 %v2344
    %2398 = vmatprep.subr.bf16.mxu0 0
    %2399 = vmatpush2.bf16.msra.mxu0 %v2343
    %2400 = vmatprep.subr.bf16.mxu0 0
    %2401 = vmatpush2.bf16.msra.mxu0 %v2342
    %2402 = vmatprep.subr.bf16.mxu0 0
    %2403 = vmatpush2.bf16.msra.mxu0 %v2341
    %2404 = vmatprep.mubr.bf16.mxu0 %v2216
    %2405 = vmatmul.mubr.bf16.gmra.mxu0 %v2215
    %v2406 = vpop.f32.mrf.mxu0
    %v2407 = vadd.f32 %v2259, %v2406
    %v2408 = vpop.f32.mrf.mxu0
    %v2409 = vpop.f32.mrf.mxu0
    %v2410 = vpop.f32.mrf.mxu0
    %2411 = vdwg.mxu0
    %2412 = vmatprep.subr.bf16.mxu0 0
    %2413 = vmatpush1.bf16.msra.mxu0 0
    %2414 = vmatprep.subr.bf16.mxu0 0
    %2415 = vmatpush1.bf16.msra.mxu0 0
    %2416 = vmatprep.subr.bf16.mxu0 0
    %2417 = vmatpush1.bf16.msra.mxu0 0
    %2418 = vmatprep.subr.bf16.mxu0 0
    %2419 = vmatpush1.bf16.msra.mxu0 0
    %2420 = vmatprep.subr.bf16.mxu0 0
    %2421 = vmatpush1.bf16.msra.mxu0 0
    %2422 = vmatprep.subr.bf16.mxu0 0
    %2423 = vmatpush1.bf16.msra.mxu0 0
    %2424 = vmatprep.subr.bf16.mxu0 0
    %2425 = vmatpush1.bf16.msra.mxu0 %v2350
    %2426 = vmatprep.subr.bf16.mxu0 0
    %2427 = vmatpush1.bf16.msra.mxu0 %v2349
    %2428 = vmatprep.subr.bf16.mxu0 0
    %2429 = vmatpush2.bf16.msra.mxu0 0
    %2430 = vmatprep.subr.bf16.mxu0 0
    %2431 = vmatpush2.bf16.msra.mxu0 0
    %2432 = vmatprep.subr.bf16.mxu0 0
    %2433 = vmatpush2.bf16.msra.mxu0 0
    %2434 = vmatprep.subr.bf16.mxu0 0
    %2435 = vmatpush2.bf16.msra.mxu0 0
    %2436 = vmatprep.subr.bf16.mxu0 0
    %2437 = vmatpush2.bf16.msra.mxu0 0
    %2438 = vmatprep.subr.bf16.mxu0 0
    %2439 = vmatpush2.bf16.msra.mxu0 0
    %2440 = vmatprep.subr.bf16.mxu0 0
    %2441 = vmatpush2.bf16.msra.mxu0 0
    %2442 = vmatprep.subr.bf16.mxu0 0
    %2443 = vmatpush2.bf16.msra.mxu0 0
    %2444 = vmatprep.mubr.bf16.mxu0 0
    %2445 = vmatmul.mubr.bf16.gmra.mxu0 %v2370
    %v2446 = vpop.f32.mrf.mxu0
    %v2447 = vadd.f32 %v2407, %v2446
    %v2448 = vpop.f32.mrf.mxu0
    %v2449 = vpop.f32.mrf.mxu0
    %v2450 = vpop.f32.mrf.mxu0
    %2451 = vdwg.mxu0
    %v2452 = vxor.u32 %v2447, 2147483648
    %v2453 = vmul.f32 %v2452, 1.442695
    %v2454 = vpow.pop %v2453
    %v2455 = vadd.f32 %v2454, 1.0
    %v2456 = vrcp.pop %v2455
    %v2457 = vmul.f32 1.0, %v2456
    %v2458 = vtanh.pop %v2447
    %v2459 = vld [vmem:[%s6] sm:$0xff]
    %2461 = vrot.lane.b32.xlu0 %v2459, 16
    %v2462 = vpop.permute.xlu0 %2461
    %v2464 = vmul.f32 %v2457, %v2462
    %2466 = vrot.lane.b32.xlu0 %v2458, 80
    %v2467 = vpop.permute.xlu0 %2466
    %v2469 = vmul.f32 %v2457, %v2467
    %2471 = vrot.lane.b32.xlu0 %v2469, 16
    %v2472 = vpop.permute.xlu0 %2471
    %v2474 = vadd.f32 %v2464, %v2472
    %v2475 = vtanh.pop %v2474
    %2477 = vrot.lane.b32.xlu0 %v2475, 16
    %v2478 = vpop.permute.xlu0 %2477
    %v2480 = vmul.f32 %v2457, %v2478
    %2482 = vrot.lane.b32.xlu0 %v2480, 96
    %v2483 = vpop.permute.xlu0 %2482
    %2485 = vrot.lane.b32.xlu0 %v2200, 16
    %v2486 = vpop.permute.xlu0 %2485
    %v2488 = vsel %vm1448, %v2483, %v2486
    %v2489 = vpack.c.bf16 %v2488, %v2488
    %v2490 = vld [vmem:[%s11] sm:$0xff]
    %v2491 = vld [vmem:[%s11 + $0x8] sm:$0xff]
    %v2492 = vld [vmem:[%s11 + $0x10] sm:$0xff]
    %v2493 = vld [vmem:[%s11 + $0x18] sm:$0xff]
    %v2494 = vld [vmem:[%s11 + $0x20] sm:$0xff]
    %v2495 = vld [vmem:[%s11 + $0x28] sm:$0xff]
    %v2496 = vld [vmem:[%s12] sm:$0x3]
    %v2498 = vlaneseq
    %v2499 = vshrl.u32 %v2498, 7
    %v2500 = vsub.s32 0, %v2499
    %v2501 = vrot.slane %v2496, %v2500
    %v2502 = vlaneseq
    %v2503 = vshrl.u32 %v2502, 7
    %v2504 = vsub.s32 1, %v2503
    %v2505 = vrot.slane %v2496, %v2504
    %v2514 = vunpack.c.l.b16 %v2490
    %v2515 = vunpack.c.h.b16 %v2490
    %v2516 = vunpack.c.l.b16 %v2491
    %v2517 = vunpack.c.h.b16 %v2491
    %v2518 = vunpack.c.l.b16 %v2492
    %v2519 = vunpack.c.h.b16 %v2492
    %v2520 = vunpack.c.l.b16 %v2493
    %v2521 = vunpack.c.h.b16 %v2493
    %v2522 = vunpack.c.l.b16 %v2494
    %v2523 = vunpack.c.h.b16 %v2494
    %v2524 = vunpack.c.l.b16 %v2495
    %v2525 = vunpack.c.h.b16 %v2495
    %v2526 = vpack.c.b16 %v2516, %v2514
    %v2527 = vpack.c.b16 %v2517, %v2515
    %v2528 = vpack.c.b16 %v2520, %v2518
    %v2529 = vpack.c.b16 %v2521, %v2519
    %v2530 = vpack.c.b16 %v2524, %v2522
    %v2531 = vpack.c.b16 %v2525, %v2523
    %vm2538 = vcmask 392192
    %v2540 = vsel %vm2538, %v2489, 0
    %2542 = vmatprep.subr.bf16.mxu0 0
    %2543 = vmatpush1.bf16.msra.mxu0 0
    %2544 = vmatprep.subr.bf16.mxu0 0
    %2545 = vmatpush1.bf16.msra.mxu0 0
    %2546 = vmatprep.subr.bf16.mxu0 0
    %2547 = vmatpush1.bf16.msra.mxu0 0
    %2548 = vmatprep.subr.bf16.mxu0 0
    %2549 = vmatpush1.bf16.msra.mxu0 0
    %2550 = vmatprep.subr.bf16.mxu0 0
    %2551 = vmatpush1.bf16.msra.mxu0 0
    %2552 = vmatprep.subr.bf16.mxu0 %v2531
    %2553 = vmatpush1.bf16.msra.mxu0 %v2530
    %2554 = vmatprep.subr.bf16.mxu0 %v2529
    %2555 = vmatpush1.bf16.msra.mxu0 %v2528
    %2556 = vmatprep.subr.bf16.mxu0 %v2527
    %2557 = vmatpush1.bf16.msra.mxu0 %v2526
    %2558 = vmatprep.subr.bf16.mxu0 0
    %2559 = vmatpush2.bf16.msra.mxu0 0
    %2560 = vmatprep.subr.bf16.mxu0 0
    %2561 = vmatpush2.bf16.msra.mxu0 0
    %2562 = vmatprep.subr.bf16.mxu0 0
    %2563 = vmatpush2.bf16.msra.mxu0 0
    %2564 = vmatprep.subr.bf16.mxu0 0
    %2565 = vmatpush2.bf16.msra.mxu0 0
    %2566 = vmatprep.subr.bf16.mxu0 0
    %2567 = vmatpush2.bf16.msra.mxu0 0
    %2568 = vmatprep.subr.bf16.mxu0 0
    %2569 = vmatpush2.bf16.msra.mxu0 0
    %2570 = vmatprep.subr.bf16.mxu0 0
    %2571 = vmatpush2.bf16.msra.mxu0 0
    %2572 = vmatprep.subr.bf16.mxu0 0
    %2573 = vmatpush2.bf16.msra.mxu0 0
    %2574 = vmatprep.mubr.bf16.mxu0 0
    %2575 = vmatmul.mubr.bf16.gmra.mxu0 %v2540
    %v2576 = vpop.f32.mrf.mxu0
    %v2577 = vadd.f32 %v2501, %v2576
    %v2578 = vpop.f32.mrf.mxu0
    %v2579 = vadd.f32 %v2505, %v2578
    %v2580 = vpop.f32.mrf.mxu0
    %v2581 = vpop.f32.mrf.mxu0
    %2582 = vdwg.mxu0
    %v2583 = vmax.f32 %v2577, %v2579
    %2584 = vmax.xlane.f32.xlu0 %v2583
    %v2585 = vpop.xlane.xlu0 %2584
    %v2586 = vsub.f32 %v2577, %v2585
    %v2587 = vsub.f32 %v2579, %v2585
    %v2588 = vmul.f32 %v2586, 1.442695
    %v2589 = vpow.pop %v2588
    %v2590 = vmul.f32 %v2587, 1.442695
    %v2591 = vpow.pop %v2590
    %v2592 = vadd.f32 %v2589, %v2591
    %2593 = vadd.xlane.f32.xlu0 %v2592
    %v2594 = vpop.xlane.xlu0 %2593
    %v2595 = vlog2.pop %v2594
    %v2596 = vmul.f32 %v2595, 0.6931472
    %v2597 = vsub.f32 %v2586, %v2596
    %v2598 = vsub.f32 %v2587, %v2596
    %v2599 = vld [vmem:[%s13] sm:$0x1]
    %v2601 = vlaneseq
    %v2602 = vshrl.u32 %v2601, 7
    %v2603 = vsub.s32 0, %v2602
    %v2604 = vrot.slane %v2599, %v2603
    %v2606 = vmul.f32 %v2488, %v2604
    %v2607 = vsel %vm2538, %v2606, 0.0
    %2608 = vadd.xlane.f32.xlu0 %v2607
    %v2609 = vpop.xlane.xlu0 %2608
    %v2610 = vld [vmem:[#allocation2] sm:$0x1]
    %v2612 = vlaneseq
    %v2613 = vshrl.u32 %v2612, 7
    %v2614 = vsub.s32 0, %v2613
    %v2615 = vrot.slane %v2610, %v2614
    %v2617 = vadd.f32 %v2609, %v2615
    %v2618 = vxor.u32 %v2617, 2147483648
    %v2619 = vmul.f32 %v2618, 1.442695
    %v2620 = vpow.pop %v2619
    %v2621 = vadd.f32 %v2620, 1.0
    %v2622 = vrcp.pop %v2621
    %v2623 = vmul.f32 1.0, %v2622
    %2625 = vrot.lane.b32.xlu0 %v1836, 16
    %v2626 = vpop.permute.xlu0 %2625
    %2629 = vrot.lane.b32.xlu0 %v1838, 32
    %v2630 = vpop.permute.xlu0 %2629
    %2633 = vrot.lane.b32.xlu0 %v1840, 48
    %v2634 = vpop.permute.xlu0 %2633
    %2637 = vrot.lane.b32.xlu0 %v1842, 64
    %v2638 = vpop.permute.xlu0 %2637
    %2641 = vrot.lane.b32.xlu0 %v1844, 80
    %v2642 = vpop.permute.xlu0 %2641
    %2645 = vrot.lane.b32.xlu0 %v1846, 96
    %v2646 = vpop.permute.xlu0 %2645
    %2649 = vrot.lane.b32.xlu0 %v1848, 112
    %v2650 = vpop.permute.xlu0 %2649
    %2653 = vrot.lane.b32.xlu0 %v1852, 16
    %v2654 = vpop.permute.xlu0 %2653
    %2657 = vrot.lane.b32.xlu0 %v1854, 32
    %v2658 = vpop.permute.xlu0 %2657
    %2661 = vrot.lane.b32.xlu0 %v1856, 48
    %v2662 = vpop.permute.xlu0 %2661
    %2665 = vrot.lane.b32.xlu0 %v1858, 64
    %v2666 = vpop.permute.xlu0 %2665
    %2669 = vrot.lane.b32.xlu0 %v1860, 80
    %v2670 = vpop.permute.xlu0 %2669
    %2673 = vrot.lane.b32.xlu0 %v1862, 96
    %v2674 = vpop.permute.xlu0 %2673
    %2677 = vrot.lane.b32.xlu0 %v1864, 112
    %v2678 = vpop.permute.xlu0 %2677
    %v2680 = vsel %vm1448, %v1834, %v2626
    %v2681 = vsel %vm291, %v2680, %v2630
    %v2682 = vsel %vm2538, %v2681, %v2634
    %v2683 = vsel %vm153, %v2682, %v2638
    %vm2684 = vcmask 654336
    %v2685 = vsel %vm2684, %v2683, %v2642
    %vm2686 = vcmask 785408
    %v2687 = vsel %vm2686, %v2685, %v2646
    %v2688 = vsel %vm2212, %v2687, %v2650
    %v2689 = vsel %vm1448, %v1850, %v2654
    %v2690 = vsel %vm291, %v2689, %v2658
    %v2691 = vsel %vm2538, %v2690, %v2662
    %v2692 = vsel %vm153, %v2691, %v2666
    %v2693 = vsel %vm2684, %v2692, %v2670
    %v2694 = vsel %vm2686, %v2693, %v2674
    %v2695 = vsel %vm2212, %v2694, %v2678
    %v2696 = vmax.f32 %v2688, %v2695
    %2697 = vmax.xlane.f32.xlu0 %v2696
    %v2698 = vpop.xlane.xlu0 %2697
    %v2699 = vsub.f32 %v2688, %v2698
    %v2700 = vsub.f32 %v2695, %v2698
    %v2701 = vmul.f32 %v2699, 1.442695
    %v2702 = vpow.pop %v2701
    %v2703 = vmul.f32 %v2700, 1.442695
    %v2704 = vpow.pop %v2703
    %v2705 = vadd.f32 %v2702, %v2704
    %2706 = vadd.xlane.f32.xlu0 %v2705
    %v2707 = vpop.xlane.xlu0 %2706
    %v2708 = vrcp.pop %v2707
    %v2709 = vmul.f32 %v2702, %v2708
    %v2710 = vmul.f32 %v2704, %v2708
    %2712 = vset.pattern.permute.xlu0 0
    %2713 = vperm.xlu0 %2712, %v2623
    %v2714 = vpop.permute.xlu0 %2713
    %v2716 = vmul.f32 %v2714, %v2709
    %v2717 = vmul.f32 %v2714, %v2710
    %v2718 = vsub.f32 1.0, %v2623
    %2720 = vset.pattern.permute.xlu0 0
    %2721 = vperm.xlu0 %2720, %v2718
    %v2722 = vpop.permute.xlu0 %2721
    %v2724 = vmul.f32 %v2722, %v2597
    %v2725 = vmul.f32 %v2722, %v2598
    %v2726 = vadd.f32 %v2716, %v2724
    %v2727 = vadd.f32 %v2717, %v2725
    %2728 = vst [vmem:[#allocation3] sm:$0xff] %v2726
    %2729 = vst [vmem:[#allocation3 + $0x8] sm:$0xff] %v2727
    %2730 = vst.msk [vmem:[#allocation5] sm:$0xff] %vm1448, %v2483
    %2732 = vrot.lane.b32.xlu0 %v2474, 112
    %v2733 = vpop.permute.xlu0 %2732
    %2735 = vst.msk [vmem:[#allocation7] sm:$0xff] %vm1448, %v2733
    // Predicated region
    $region62: #{summarizer_forward.1} parent=1 // pred_check
      _
    $region63: #{summarizer_forward.1} parent=1 // pred_check_branch
      %2737 = sbr.rel (0) target = $region65
    $region64: #{summarizer_forward.1} parent=1 // pred_region
      %s2739 = ssub.s32 256, 256
      %2740 = vsyncadd [#allocation4], %s2739
      %s2742 = sshll.u32 [#allocation3], 4
      %s2743 = int_to_ptr.vmem [resolvable:$true] %s2742
      %2745 = dma.vmem_to_hbm [thread:$0]  %s2743, 256, %s15, [#allocation4]
    $region65: #{summarizer_forward.1} parent=1 // pred_fallthru
      _
    // Predicated region
    $region66: #{summarizer_forward.1} parent=1 // pred_check
      _
    $region67: #{summarizer_forward.1} parent=1 // pred_check_branch
      %2747 = sbr.rel (0) target = $region69
    $region68: #{summarizer_forward.1} parent=1 // pred_region
      %s2749 = ssub.s32 128, 128
      %2750 = vsyncadd [#allocation6], %s2749
      %s2752 = sshll.u32 [#allocation5], 4
      %s2753 = int_to_ptr.vmem [resolvable:$true] %s2752
      %2755 = dma.vmem_to_hbm [thread:$0]  %s2753, 128, %s16, [#allocation6]
    $region69: #{summarizer_forward.1} parent=1 // pred_fallthru
      _
    // Predicated region
    $region70: #{summarizer_forward.1} parent=1 // pred_check
      _
    $region71: #{summarizer_forward.1} parent=1 // pred_check_branch
      %2757 = sbr.rel (0) target = $region73
    $region72: #{summarizer_forward.1} parent=1 // pred_region
      %s2759 = ssub.s32 128, 128
      %2760 = vsyncadd [#allocation6], %s2759
      %s2762 = sshll.u32 [#allocation7], 4
      %s2763 = int_to_ptr.vmem [resolvable:$true] %s2762
      %2765 = dma.vmem_to_hbm [thread:$0]  %s2763, 128, %s17, [#allocation6]
    $region73: #{summarizer_forward.1} parent=1 // pred_fallthru
      _
    // Predicated region
    $region74: #{summarizer_forward.1} parent=1 // pred_check
      _
    $region75: #{summarizer_forward.1} parent=1 // pred_check_branch
      %2767 = sbr.rel (0) target = $region77
    $region76: #{summarizer_forward.1} parent=1 // pred_region
      %2768 = dma.done [#allocation4], 256
    $region77: #{summarizer_forward.1} parent=1 // pred_fallthru
      _
    // Predicated region
    $region78: #{summarizer_forward.1} parent=1 // pred_check
      _
    $region79: #{summarizer_forward.1} parent=1 // pred_check_branch
      %2770 = sbr.rel (0) target = $region81
    $region80: #{summarizer_forward.1} parent=1 // pred_region
      %2771 = dma.done [#allocation6], 128
    $region81: #{summarizer_forward.1} parent=1 // pred_fallthru
      _
    // Predicated region
    $region82: #{summarizer_forward.1} parent=1 // pred_check
      _
    $region83: #{summarizer_forward.1} parent=1 // pred_check_branch
      %2773 = sbr.rel (0) target = $region85
    $region84: #{summarizer_forward.1} parent=1 // pred_region
      %2774 = dma.done [#allocation6], 128
    $region85: #{summarizer_forward.1} parent=1 // pred_fallthru
      _
    %2775 = vsyncpa [#allocation4], 1
    %2776 = vsyncpa [#allocation6], 1

</llo_original>
